<compile_context>
chip_gen: v6e
topology: v6e:2x2x1
jax: 0.10.0
libtpu: 0.0.40
codegen_flags: <defaults>
</compile_context>

<pallas_src>
import functools

import jax
import jax.numpy as jnp
from jax.experimental import pallas as pl
from jax.experimental.pallas import tpu as pltpu


# ----------------------------------------------------------------------------
# Per-tap constants (pure functions of B, H, W; computed once in the wrapper).
#   shifts[t]  : flattened-token offset of tap t's source pixel (dh*W + dw).
#   masks[t,p] : 1.0 iff tap t's source pixel for destination token p lies
#                inside the image (implicit zero padding + batch boundary);
#                this also guarantees rolled data never leaks across batches.
# ----------------------------------------------------------------------------

def _tap_shifts(W):
    return tuple(dh * W + dw for dh in (-1, 0, 1) for dw in (-1, 0, 1))


def _tap_masks(B, H, W):
    M = B * H * W
    p = jnp.arange(M, dtype=jnp.int32)
    i = (p // W) % H
    j = p % W
    rows = []
    for dh in (-1, 0, 1):
        for dw in (-1, 0, 1):
            valid = (i + dh >= 0) & (i + dh < H) & (j + dw >= 0) & (j + dw < W)
            rows.append(valid.astype(jnp.float32))
    return jnp.stack(rows, axis=0)                    # [9, M]


# ----------------------------------------------------------------------------
# Fused kernel: embeddings -> conv1 -> conv2 -> conv3, all resident in VMEM.
# Activations are channels-major [C, M] with M = B*H*W dense on the lane axis.
# ----------------------------------------------------------------------------

def _fused_kernel(idx_ref, mask_ref, tablesT_ref,
                  w1_ref, w2_ref, w3_ref, bias_ref,
                  out_ref, emb_ref, stack_ref, *,
                  num_channels, num_clusters, eo, shifts):
    c_in, M = emb_ref.shape

    # --- Embedding lookup: chunked in-kernel one-hot, gather on the MXU. ---
    KC = min(128, num_clusters)
    base_iota = jax.lax.broadcasted_iota(jnp.int32, (KC, M), 0)
    for e in range(num_channels):
        idx_row = idx_ref[e:e + 1, :]                 # [1, M] int32
        acc = jnp.zeros((eo, M), jnp.float32)
        for k0 in range(0, num_clusters, KC):
            kc = min(KC, num_clusters - k0)
            iota = (base_iota if kc == KC
                    else jax.lax.broadcasted_iota(jnp.int32, (kc, M), 0))
            onehot = (iota == (idx_row - k0)).astype(jnp.float32)   # [kc, M]
            acc = acc + jnp.dot(tablesT_ref[e, :, k0:k0 + kc], onehot,
                                preferred_element_type=jnp.float32)
        emb_ref[e * eo:(e + 1) * eo, :] = acc         # channel e sublane slab

    x = emb_ref[...]                                  # [c_in, M]

    # --- 3x3 'same' conv + bias + ReLU as ONE deep-K MXU matmul per layer. ---
    def conv3x3_relu(xin, w_ref, b_off):
        cin = xin.shape[0]
        cout = w_ref.shape[0]
        for t, s in enumerate(shifts):
            # rolled[p] = x[p + s] (no wrap at any position the mask keeps).
            piece = xin if s == 0 else pltpu.roll(xin, shift=(-s) % M, axis=1)
            if t != 4:                                # center tap mask == 1
                piece = piece * mask_ref[t:t + 1, :]
            stack_ref[t * cin:(t + 1) * cin, :] = piece
        y = jnp.dot(w_ref[...], stack_ref[0:9 * cin, :],
                    preferred_element_type=jnp.float32)
        return jnp.maximum(y + bias_ref[b_off:b_off + cout, :], 0.0)

    c1 = w1_ref.shape[0]
    c2 = w2_ref.shape[0]
    x = conv3x3_relu(x, w1_ref, 0)                    # [2*eo, M]
    x = conv3x3_relu(x, w2_ref, c1)                   # [eo,   M]
    x = conv3x3_relu(x, w3_ref, c1 + c2)              # [16,   M]

    # --- Lane-dense store: one unmasked (c_out, M) channels-major slab. ---
    out_ref[...] = x


# ----------------------------------------------------------------------------
# Wrapper
# ----------------------------------------------------------------------------

def core_net_embedding_forward(x_idx, params, *, reshape_size):
    """x_idx: [B, num_channels, H, W] int32 cluster indices."""
    B, num_channels, H, W = x_idx.shape
    HW = H * W
    M = B * HW

    # Parameters in channels-major / tap-flattened layouts (tiny, done once).
    tables_t = jnp.stack([jnp.transpose(t) for t in params["tables"]], axis=0)
    eo = tables_t.shape[1]
    num_clusters = tables_t.shape[2]

    def prep_w(w):    # torch OIHW [Cout, Cin, 3, 3] -> [Cout, 9*Cin] tap-major K
        cout, cin = w.shape[0], w.shape[1]
        return jnp.transpose(w, (0, 2, 3, 1)).reshape(cout, 9 * cin)

    w1f, w2f, w3f = prep_w(params["w1"]), prep_w(params["w2"]), prep_w(params["w3"])
    c1, c2, c3 = w1f.shape[0], w2f.shape[0], w3f.shape[0]
    c_in = eo * num_channels

    # One packed bias input (fewer DMA descriptors on a single-step launch).
    bias = jnp.concatenate(
        [params["b1"], params["b2"], params["b3"]]).reshape(-1, 1)

    # int32 indices: one row per embedding channel, tokens dense on lanes.
    idx = (x_idx.reshape(B, num_channels, HW)
                .transpose(1, 0, 2)
                .reshape(num_channels, M)
                .astype(jnp.int32))

    masks = _tap_masks(B, H, W)                       # [9, M] constant
    shifts = _tap_shifts(W)

    kernel = functools.partial(
        _fused_kernel, num_channels=num_channels,
        num_clusters=num_clusters, eo=eo, shifts=shifts)

    def full_spec(shape):
        n = len(shape)
        return pl.BlockSpec(tuple(shape), lambda i, n=n: (0,) * n)

    flops = 2 * M * (num_channels * eo * num_clusters
                     + 9 * (c1 * c_in + c2 * c1 + c3 * c2))
    bytes_accessed = (idx.nbytes + masks.nbytes + tables_t.nbytes + w1f.nbytes
                      + w2f.nbytes + w3f.nbytes + bias.nbytes + c3 * M * 4)

    out = pl.pallas_call(
        kernel,
        out_shape=jax.ShapeDtypeStruct((c3, M), jnp.float32),
        grid=(1,),
        in_specs=[
            full_spec(idx.shape),
            full_spec(masks.shape),
            full_spec(tables_t.shape),
            full_spec(w1f.shape), full_spec(w2f.shape), full_spec(w3f.shape),
            full_spec(bias.shape),
        ],
        out_specs=full_spec((c3, M)),
        scratch_shapes=[
            pltpu.VMEM((c_in, M), jnp.float32),                  # embeddings
            pltpu.VMEM((9 * max(c_in, c1, c2), M), jnp.float32),  # tap stack
        ],
        compiler_params=pltpu.CompilerParams(
            dimension_semantics=("arbitrary",)),
        cost_estimate=pl.CostEstimate(
            flops=flops, transcendentals=0, bytes_accessed=bytes_accessed),
    )(idx, masks, tables_t, w1f, w2f, w3f, bias)

    # Tiny [c_out, B*HW] -> NCHW reorder.  In a real model this would be folded
    # into the consumer (permute its weight columns); here it is one small XLA
    # reshape/transpose of 8 KiB outside the kernel.
    out = out.reshape(c3, B, HW).transpose(1, 0, 2)   # [B, c_out, HW] (NCHW flat)
    return out.reshape(-1, reshape_size)


# ----------------------------------------------------------------------------
# Parameter init (mirrors nn.Embedding + nn.Conv2d defaults closely enough)
# ----------------------------------------------------------------------------

def init_params(key, *, num_channels=1, num_clusters=512, eo=64):
    keys = jax.random.split(key, 4 + num_channels)
    params = {}
    params["tables"] = [
        jax.random.normal(keys[i], (num_clusters, eo), jnp.float32)
        for i in range(num_channels)
    ]
    c_in = eo * num_channels

    def conv_init(k, cout, cin):
        kw, kb = jax.random.split(k)
        scale = 1.0 / jnp.sqrt(cin * 9.0)
        w = jax.random.uniform(kw, (cout, cin, 3, 3), jnp.float32, -scale, scale)
        b = jax.random.uniform(kb, (cout,), jnp.float32, -scale, scale)
        return w, b

    params["w1"], params["b1"] = conv_init(keys[num_channels + 0], eo * 2, c_in)
    params["w2"], params["b2"] = conv_init(keys[num_channels + 1], eo * 1, eo * 2)
    params["w3"], params["b3"] = conv_init(keys[num_channels + 2], 16, eo)
    return params


# ----------------------------------------------------------------------------
# Pure-JAX reference (mirrors the PyTorch forward in NCHW)
# ----------------------------------------------------------------------------

def reference_forward(x_idx, params, *, reshape_size):
    B, num_channels, H, W = x_idx.shape
    chans = []
    for e in range(num_channels):
        emb = params["tables"][e][x_idx[:, e]]            # [B,H,W,eo]
        chans.append(jnp.transpose(emb, (0, 3, 1, 2)))    # [B,eo,H,W]
    xo = jnp.concatenate(chans, axis=1)
    for w, b in ((params["w1"], params["b1"]),
                 (params["w2"], params["b2"]),
                 (params["w3"], params["b3"])):
        xo = jax.lax.conv_general_dilated(
            xo, w, (1, 1), "SAME",
            dimension_numbers=("NCHW", "OIHW", "NCHW"),
        ) + b[None, :, None, None]
        xo = jax.nn.relu(xo)
    return xo.reshape(-1, reshape_size)


# ----------------------------------------------------------------------------

if __name__ == "__main__":
    # Small shapes consistent with the module: B=2, num_channels=1, H=W=8.
    B, NUM_CHANNELS, H, W = 2, 1, 8, 8
    NUM_CLUSTERS, EO = 512, 64
    RESHAPE_SIZE = 16 * H * W

    key = jax.random.PRNGKey(0)
    k_params, k_idx = jax.random.split(key)
    params = init_params(
        k_params, num_channels=NUM_CHANNELS, num_clusters=NUM_CLUSTERS, eo=EO
    )
    x_idx = jax.random.randint(
        k_idx, (B, NUM_CHANNELS, H, W), 0, NUM_CLUSTERS, dtype=jnp.int32
    )

    fwd = jax.jit(
        functools.partial(core_net_embedding_forward, reshape_size=RESHAPE_SIZE)
    )
    out = jax.block_until_ready(fwd(x_idx, params))

    ref = reference_forward(x_idx, params, reshape_size=RESHAPE_SIZE)
    assert out.shape == (B, RESHAPE_SIZE), out.shape
    max_err = float(jnp.max(jnp.abs(out - ref)))
    assert jnp.allclose(out, ref, rtol=1e-4, atol=1e-4), max_err

    print("KERNEL_OK")
</pallas_src>

<mosaic_0001>
module attributes {stable_mosaic.version = 11 : i64} {
  func.func @_fused_kernel(%arg0: i32, %arg1: memref<1x128xi32, #tpu.memory_space<vmem>>, %arg2: memref<9x128xf32, #tpu.memory_space<vmem>>, %arg3: memref<1x64x512xf32, #tpu.memory_space<vmem>>, %arg4: memref<128x576xf32, #tpu.memory_space<vmem>>, %arg5: memref<64x1152xf32, #tpu.memory_space<vmem>>, %arg6: memref<16x576xf32, #tpu.memory_space<vmem>>, %arg7: memref<208x1xf32, #tpu.memory_space<vmem>>, %arg8: memref<16x128xf32, #tpu.memory_space<vmem>>, %arg9: memref<64x128xf32, #tpu.memory_space<vmem>>, %arg10: memref<1152x128xf32, #tpu.memory_space<vmem>>) attributes {dimension_semantics = [#tpu.dimension_semantics<arbitrary>], iteration_bounds = array<i64: 1>, scalar_prefetch = 0 : i64, scratch_operands = 2 : i64, tpu.core_type = #tpu.core_type<tc>, window_params = [{pipeline_mode = #tpu.pipeline_mode<synchronous>, transform_indices = @transform_0, window_bounds = array<i64: 1, 128>}, {pipeline_mode = #tpu.pipeline_mode<synchronous>, transform_indices = @transform_1, window_bounds = array<i64: 9, 128>}, {pipeline_mode = #tpu.pipeline_mode<synchronous>, transform_indices = @transform_2, window_bounds = array<i64: 1, 64, 512>}, {pipeline_mode = #tpu.pipeline_mode<synchronous>, transform_indices = @transform_3, window_bounds = array<i64: 128, 576>}, {pipeline_mode = #tpu.pipeline_mode<synchronous>, transform_indices = @transform_4, window_bounds = array<i64: 64, 1152>}, {pipeline_mode = #tpu.pipeline_mode<synchronous>, transform_indices = @transform_5, window_bounds = array<i64: 16, 576>}, {pipeline_mode = #tpu.pipeline_mode<synchronous>, transform_indices = @transform_6, window_bounds = array<i64: 208, 1>}, {pipeline_mode = #tpu.pipeline_mode<synchronous>, transform_indices = @transform_7, window_bounds = array<i64: 16, 128>}]} {
    %0 = tpu.iota {dimensions = array<i32: 0>} : vector<128x128xi32>
    %c0 = arith.constant 0 : index
    %c0_0 = arith.constant 0 : index
    %1 = vector.load %arg1[%c0, %c0_0] : memref<1x128xi32, #tpu.memory_space<vmem>>, vector<1x128xi32>
    %cst = arith.constant 0.000000e+00 : f32
    %2 = vector.broadcast %cst : f32 to vector<64x128xf32>
    %c0_i32 = arith.constant 0 : i32
    %3 = vector.broadcast %c0_i32 : i32 to vector<1x128xi32>
    %4 = arith.subi %1, %3 : vector<1x128xi32>
    %5 = vector.broadcast %4 : vector<1x128xi32> to vector<128x128xi32>
    %6 = arith.cmpi eq, %0, %5 : vector<128x128xi32>
    %7 = arith.extui %6 : vector<128x128xi1> to vector<128x128xi32>
    %8 = arith.sitofp %7 : vector<128x128xi32> to vector<128x128xf32>
    %c0_1 = arith.constant 0 : index
    %c0_2 = arith.constant 0 : index
    %c0_3 = arith.constant 0 : index
    %9 = vector.load %arg3[%c0_1, %c0_2, %c0_3] : memref<1x64x512xf32, #tpu.memory_space<vmem>>, vector<1x64x128xf32>
    %10 = vector.shape_cast %9 : vector<1x64x128xf32> to vector<64x128xf32>
    %cst_4 = arith.constant dense<0.000000e+00> : vector<64x128xf32>
    %11 = tpu.matmul %10, %8, %cst_4 {dimension_numbers = #tpu.dot_dimension_numbers<[1], [0], [0], [1], [0, 0, 1, 1], [], []>} : vector<64x128xf32>, vector<128x128xf32>, vector<64x128xf32> -> vector<64x128xf32>
    %12 = arith.addf %2, %11 : vector<64x128xf32>
    %c128_i32 = arith.constant 128 : i32
    %13 = vector.broadcast %c128_i32 : i32 to vector<1x128xi32>
    %14 = arith.subi %1, %13 : vector<1x128xi32>
    %15 = vector.broadcast %14 : vector<1x128xi32> to vector<128x128xi32>
    %16 = arith.cmpi eq, %0, %15 : vector<128x128xi32>
    %17 = arith.extui %16 : vector<128x128xi1> to vector<128x128xi32>
    %18 = arith.sitofp %17 : vector<128x128xi32> to vector<128x128xf32>
    %c0_5 = arith.constant 0 : index
    %c0_6 = arith.constant 0 : index
    %c128 = arith.constant 128 : index
    %19 = vector.load %arg3[%c0_5, %c0_6, %c128] : memref<1x64x512xf32, #tpu.memory_space<vmem>>, vector<1x64x128xf32>
    %20 = vector.shape_cast %19 : vector<1x64x128xf32> to vector<64x128xf32>
    %cst_7 = arith.constant dense<0.000000e+00> : vector<64x128xf32>
    %21 = tpu.matmul %20, %18, %cst_7 {dimension_numbers = #tpu.dot_dimension_numbers<[1], [0], [0], [1], [0, 0, 1, 1], [], []>} : vector<64x128xf32>, vector<128x128xf32>, vector<64x128xf32> -> vector<64x128xf32>
    %22 = arith.addf %12, %21 : vector<64x128xf32>
    %c256_i32 = arith.constant 256 : i32
    %23 = vector.broadcast %c256_i32 : i32 to vector<1x128xi32>
    %24 = arith.subi %1, %23 : vector<1x128xi32>
    %25 = vector.broadcast %24 : vector<1x128xi32> to vector<128x128xi32>
    %26 = arith.cmpi eq, %0, %25 : vector<128x128xi32>
    %27 = arith.extui %26 : vector<128x128xi1> to vector<128x128xi32>
    %28 = arith.sitofp %27 : vector<128x128xi32> to vector<128x128xf32>
    %c0_8 = arith.constant 0 : index
    %c0_9 = arith.constant 0 : index
    %c256 = arith.constant 256 : index
    %29 = vector.load %arg3[%c0_8, %c0_9, %c256] : memref<1x64x512xf32, #tpu.memory_space<vmem>>, vector<1x64x128xf32>
    %30 = vector.shape_cast %29 : vector<1x64x128xf32> to vector<64x128xf32>
    %cst_10 = arith.constant dense<0.000000e+00> : vector<64x128xf32>
    %31 = tpu.matmul %30, %28, %cst_10 {dimension_numbers = #tpu.dot_dimension_numbers<[1], [0], [0], [1], [0, 0, 1, 1], [], []>} : vector<64x128xf32>, vector<128x128xf32>, vector<64x128xf32> -> vector<64x128xf32>
    %32 = arith.addf %22, %31 : vector<64x128xf32>
    %c384_i32 = arith.constant 384 : i32
    %33 = vector.broadcast %c384_i32 : i32 to vector<1x128xi32>
    %34 = arith.subi %1, %33 : vector<1x128xi32>
    %35 = vector.broadcast %34 : vector<1x128xi32> to vector<128x128xi32>
    %36 = arith.cmpi eq, %0, %35 : vector<128x128xi32>
    %37 = arith.extui %36 : vector<128x128xi1> to vector<128x128xi32>
    %38 = arith.sitofp %37 : vector<128x128xi32> to vector<128x128xf32>
    %c0_11 = arith.constant 0 : index
    %c0_12 = arith.constant 0 : index
    %c384 = arith.constant 384 : index
    %39 = vector.load %arg3[%c0_11, %c0_12, %c384] : memref<1x64x512xf32, #tpu.memory_space<vmem>>, vector<1x64x128xf32>
    %40 = vector.shape_cast %39 : vector<1x64x128xf32> to vector<64x128xf32>
    %cst_13 = arith.constant dense<0.000000e+00> : vector<64x128xf32>
    %41 = tpu.matmul %40, %38, %cst_13 {dimension_numbers = #tpu.dot_dimension_numbers<[1], [0], [0], [1], [0, 0, 1, 1], [], []>} : vector<64x128xf32>, vector<128x128xf32>, vector<64x128xf32> -> vector<64x128xf32>
    %42 = arith.addf %32, %41 : vector<64x128xf32>
    %c0_14 = arith.constant 0 : index
    %c0_15 = arith.constant 0 : index
    %43 = vector.load %arg9[%c0_14, %c0_15] : memref<64x128xf32, #tpu.memory_space<vmem>>, vector<64x128xf32>
    tpu.vector_store %arg9[%c0_14, %c0_15], %42 {strides = array<i32>} : memref<64x128xf32, #tpu.memory_space<vmem>>, vector<64x128xf32>,
    %c0_16 = arith.constant 0 : index
    %c0_17 = arith.constant 0 : index
    %44 = vector.load %arg9[%c0_16, %c0_17] : memref<64x128xf32, #tpu.memory_space<vmem>>, vector<64x128xf32>
    %c9_i32 = arith.constant 9 : i32
    %45 = tpu.dynamic_rotate %44 by %c9_i32 dim 1 : vector<64x128xf32>, i32 -> vector<64x128xf32>
    %c0_18 = arith.constant 0 : index
    %c0_19 = arith.constant 0 : index
    %46 = vector.load %arg2[%c0_18, %c0_19] : memref<9x128xf32, #tpu.memory_space<vmem>>, vector<1x128xf32>
    %47 = vector.broadcast %46 : vector<1x128xf32> to vector<64x128xf32>
    %48 = arith.mulf %45, %47 : vector<64x128xf32>
    %c0_20 = arith.constant 0 : index
    %c0_21 = arith.constant 0 : index
    %49 = vector.load %arg10[%c0_20, %c0_21] : memref<1152x128xf32, #tpu.memory_space<vmem>>, vector<64x128xf32>
    tpu.vector_store %arg10[%c0_20, %c0_21], %48 {strides = array<i32>} : memref<1152x128xf32, #tpu.memory_space<vmem>>, vector<64x128xf32>,
    %c8_i32 = arith.constant 8 : i32
    %50 = tpu.dynamic_rotate %44 by %c8_i32 dim 1 : vector<64x128xf32>, i32 -> vector<64x128xf32>
    %c1 = arith.constant 1 : index
    %c0_22 = arith.constant 0 : index
    %51 = vector.load %arg2[%c1, %c0_22] : memref<9x128xf32, #tpu.memory_space<vmem>>, vector<1x128xf32>
    %52 = vector.broadcast %51 : vector<1x128xf32> to vector<64x128xf32>
    %53 = arith.mulf %50, %52 : vector<64x128xf32>
    %c64 = arith.constant 64 : index
    %c0_23 = arith.constant 0 : index
    %54 = vector.load %arg10[%c64, %c0_23] : memref<1152x128xf32, #tpu.memory_space<vmem>>, vector<64x128xf32>
    tpu.vector_store %arg10[%c64, %c0_23], %53 {strides = array<i32>} : memref<1152x128xf32, #tpu.memory_space<vmem>>, vector<64x128xf32>,
    %c7_i32 = arith.constant 7 : i32
    %55 = tpu.dynamic_rotate %44 by %c7_i32 dim 1 : vector<64x128xf32>, i32 -> vector<64x128xf32>
    %c2 = arith.constant 2 : index
    %c0_24 = arith.constant 0 : index
    %56 = vector.load %arg2[%c2, %c0_24] : memref<9x128xf32, #tpu.memory_space<vmem>>, vector<1x128xf32>
    %57 = vector.broadcast %56 : vector<1x128xf32> to vector<64x128xf32>
    %58 = arith.mulf %55, %57 : vector<64x128xf32>
    %c128_25 = arith.constant 128 : index
    %c0_26 = arith.constant 0 : index
    %59 = vector.load %arg10[%c128_25, %c0_26] : memref<1152x128xf32, #tpu.memory_space<vmem>>, vector<64x128xf32>
    tpu.vector_store %arg10[%c128_25, %c0_26], %58 {strides = array<i32>} : memref<1152x128xf32, #tpu.memory_space<vmem>>, vector<64x128xf32>,
    %c1_i32 = arith.constant 1 : i32
    %60 = tpu.dynamic_rotate %44 by %c1_i32 dim 1 : vector<64x128xf32>, i32 -> vector<64x128xf32>
    %c3 = arith.constant 3 : index
    %c0_27 = arith.constant 0 : index
    %61 = vector.load %arg2[%c3, %c0_27] : memref<9x128xf32, #tpu.memory_space<vmem>>, vector<1x128xf32>
    %62 = vector.broadcast %61 : vector<1x128xf32> to vector<64x128xf32>
    %63 = arith.mulf %60, %62 : vector<64x128xf32>
    %c192 = arith.constant 192 : index
    %c0_28 = arith.constant 0 : index
    %64 = vector.load %arg10[%c192, %c0_28] : memref<1152x128xf32, #tpu.memory_space<vmem>>, vector<64x128xf32>
    tpu.vector_store %arg10[%c192, %c0_28], %63 {strides = array<i32>} : memref<1152x128xf32, #tpu.memory_space<vmem>>, vector<64x128xf32>,
    %c256_29 = arith.constant 256 : index
    %c0_30 = arith.constant 0 : index
    %65 = vector.load %arg10[%c256_29, %c0_30] : memref<1152x128xf32, #tpu.memory_space<vmem>>, vector<64x128xf32>
    tpu.vector_store %arg10[%c256_29, %c0_30], %44 {strides = array<i32>} : memref<1152x128xf32, #tpu.memory_space<vmem>>, vector<64x128xf32>,
    %c127_i32 = arith.constant 127 : i32
    %66 = tpu.dynamic_rotate %44 by %c127_i32 dim 1 : vector<64x128xf32>, i32 -> vector<64x128xf32>
    %c5 = arith.constant 5 : index
    %c0_31 = arith.constant 0 : index
    %67 = vector.load %arg2[%c5, %c0_31] : memref<9x128xf32, #tpu.memory_space<vmem>>, vector<1x128xf32>
    %68 = vector.broadcast %67 : vector<1x128xf32> to vector<64x128xf32>
    %69 = arith.mulf %66, %68 : vector<64x128xf32>
    %c320 = arith.constant 320 : index
    %c0_32 = arith.constant 0 : index
    %70 = vector.load %arg10[%c320, %c0_32] : memref<1152x128xf32, #tpu.memory_space<vmem>>, vector<64x128xf32>
    tpu.vector_store %arg10[%c320, %c0_32], %69 {strides = array<i32>} : memref<1152x128xf32, #tpu.memory_space<vmem>>, vector<64x128xf32>,
    %c121_i32 = arith.constant 121 : i32
    %71 = tpu.dynamic_rotate %44 by %c121_i32 dim 1 : vector<64x128xf32>, i32 -> vector<64x128xf32>
    %c6 = arith.constant 6 : index
    %c0_33 = arith.constant 0 : index
    %72 = vector.load %arg2[%c6, %c0_33] : memref<9x128xf32, #tpu.memory_space<vmem>>, vector<1x128xf32>
    %73 = vector.broadcast %72 : vector<1x128xf32> to vector<64x128xf32>
    %74 = arith.mulf %71, %73 : vector<64x128xf32>
    %c384_34 = arith.constant 384 : index
    %c0_35 = arith.constant 0 : index
    %75 = vector.load %arg10[%c384_34, %c0_35] : memref<1152x128xf32, #tpu.memory_space<vmem>>, vector<64x128xf32>
    tpu.vector_store %arg10[%c384_34, %c0_35], %74 {strides = array<i32>} : memref<1152x128xf32, #tpu.memory_space<vmem>>, vector<64x128xf32>,
    %c120_i32 = arith.constant 120 : i32
    %76 = tpu.dynamic_rotate %44 by %c120_i32 dim 1 : vector<64x128xf32>, i32 -> vector<64x128xf32>
    %c7 = arith.constant 7 : index
    %c0_36 = arith.constant 0 : index
    %77 = vector.load %arg2[%c7, %c0_36] : memref<9x128xf32, #tpu.memory_space<vmem>>, vector<1x128xf32>
    %78 = vector.broadcast %77 : vector<1x128xf32> to vector<64x128xf32>
    %79 = arith.mulf %76, %78 : vector<64x128xf32>
    %c448 = arith.constant 448 : index
    %c0_37 = arith.constant 0 : index
    %80 = vector.load %arg10[%c448, %c0_37] : memref<1152x128xf32, #tpu.memory_space<vmem>>, vector<64x128xf32>
    tpu.vector_store %arg10[%c448, %c0_37], %79 {strides = array<i32>} : memref<1152x128xf32, #tpu.memory_space<vmem>>, vector<64x128xf32>,
    %c119_i32 = arith.constant 119 : i32
    %81 = tpu.dynamic_rotate %44 by %c119_i32 dim 1 : vector<64x128xf32>, i32 -> vector<64x128xf32>
    %c8 = arith.constant 8 : index
    %c0_38 = arith.constant 0 : index
    %82 = vector.load %arg2[%c8, %c0_38] : memref<9x128xf32, #tpu.memory_space<vmem>>, vector<1x128xf32>
    %83 = vector.broadcast %82 : vector<1x128xf32> to vector<64x128xf32>
    %84 = arith.mulf %81, %83 : vector<64x128xf32>
    %c512 = arith.constant 512 : index
    %c0_39 = arith.constant 0 : index
    %85 = vector.load %arg10[%c512, %c0_39] : memref<1152x128xf32, #tpu.memory_space<vmem>>, vector<64x128xf32>
    tpu.vector_store %arg10[%c512, %c0_39], %84 {strides = array<i32>} : memref<1152x128xf32, #tpu.memory_space<vmem>>, vector<64x128xf32>,
    %c0_40 = arith.constant 0 : index
    %c0_41 = arith.constant 0 : index
    %86 = vector.load %arg4[%c0_40, %c0_41] : memref<128x576xf32, #tpu.memory_space<vmem>>, vector<128x576xf32>
    %c0_42 = arith.constant 0 : index
    %c0_43 = arith.constant 0 : index
    %87 = vector.load %arg10[%c0_42, %c0_43] : memref<1152x128xf32, #tpu.memory_space<vmem>>, vector<576x128xf32>
    %cst_44 = arith.constant dense<0.000000e+00> : vector<128x128xf32>
    %88 = tpu.matmul %86, %87, %cst_44 {dimension_numbers = #tpu.dot_dimension_numbers<[1], [0], [0], [1], [0, 0, 1, 1], [], []>} : vector<128x576xf32>, vector<576x128xf32>, vector<128x128xf32> -> vector<128x128xf32>
    %c0_45 = arith.constant 0 : index
    %c0_46 = arith.constant 0 : index
    %89 = vector.load %arg7[%c0_45, %c0_46] : memref<208x1xf32, #tpu.memory_space<vmem>>, vector<128x1xf32>
    %90 = vector.broadcast %89 : vector<128x1xf32> to vector<128x128xf32>
    %91 = arith.addf %88, %90 : vector<128x128xf32>
    %cst_47 = arith.constant 0.000000e+00 : f32
    %92 = vector.broadcast %cst_47 : f32 to vector<128x128xf32>
    %93 = arith.maximumf %91, %92 : vector<128x128xf32>
    %c9_i32_48 = arith.constant 9 : i32
    %94 = tpu.dynamic_rotate %93 by %c9_i32_48 dim 1 : vector<128x128xf32>, i32 -> vector<128x128xf32>
    %c0_49 = arith.constant 0 : index
    %c0_50 = arith.constant 0 : index
    %95 = vector.load %arg2[%c0_49, %c0_50] : memref<9x128xf32, #tpu.memory_space<vmem>>, vector<1x128xf32>
    %96 = vector.broadcast %95 : vector<1x128xf32> to vector<128x128xf32>
    %97 = arith.mulf %94, %96 : vector<128x128xf32>
    %c0_51 = arith.constant 0 : index
    %c0_52 = arith.constant 0 : index
    %98 = vector.load %arg10[%c0_51, %c0_52] : memref<1152x128xf32, #tpu.memory_space<vmem>>, vector<128x128xf32>
    tpu.vector_store %arg10[%c0_51, %c0_52], %97 {strides = array<i32>} : memref<1152x128xf32, #tpu.memory_space<vmem>>, vector<128x128xf32>,
    %c8_i32_53 = arith.constant 8 : i32
    %99 = tpu.dynamic_rotate %93 by %c8_i32_53 dim 1 : vector<128x128xf32>, i32 -> vector<128x128xf32>
    %c1_54 = arith.constant 1 : index
    %c0_55 = arith.constant 0 : index
    %100 = vector.load %arg2[%c1_54, %c0_55] : memref<9x128xf32, #tpu.memory_space<vmem>>, vector<1x128xf32>
    %101 = vector.broadcast %100 : vector<1x128xf32> to vector<128x128xf32>
    %102 = arith.mulf %99, %101 : vector<128x128xf32>
    %c128_56 = arith.constant 128 : index
    %c0_57 = arith.constant 0 : index
    %103 = vector.load %arg10[%c128_56, %c0_57] : memref<1152x128xf32, #tpu.memory_space<vmem>>, vector<128x128xf32>
    tpu.vector_store %arg10[%c128_56, %c0_57], %102 {strides = array<i32>} : memref<1152x128xf32, #tpu.memory_space<vmem>>, vector<128x128xf32>,
    %c7_i32_58 = arith.constant 7 : i32
    %104 = tpu.dynamic_rotate %93 by %c7_i32_58 dim 1 : vector<128x128xf32>, i32 -> vector<128x128xf32>
    %c2_59 = arith.constant 2 : index
    %c0_60 = arith.constant 0 : index
    %105 = vector.load %arg2[%c2_59, %c0_60] : memref<9x128xf32, #tpu.memory_space<vmem>>, vector<1x128xf32>
    %106 = vector.broadcast %105 : vector<1x128xf32> to vector<128x128xf32>
    %107 = arith.mulf %104, %106 : vector<128x128xf32>
    %c256_61 = arith.constant 256 : index
    %c0_62 = arith.constant 0 : index
    %108 = vector.load %arg10[%c256_61, %c0_62] : memref<1152x128xf32, #tpu.memory_space<vmem>>, vector<128x128xf32>
    tpu.vector_store %arg10[%c256_61, %c0_62], %107 {strides = array<i32>} : memref<1152x128xf32, #tpu.memory_space<vmem>>, vector<128x128xf32>,
    %c1_i32_63 = arith.constant 1 : i32
    %109 = tpu.dynamic_rotate %93 by %c1_i32_63 dim 1 : vector<128x128xf32>, i32 -> vector<128x128xf32>
    %c3_64 = arith.constant 3 : index
    %c0_65 = arith.constant 0 : index
    %110 = vector.load %arg2[%c3_64, %c0_65] : memref<9x128xf32, #tpu.memory_space<vmem>>, vector<1x128xf32>
    %111 = vector.broadcast %110 : vector<1x128xf32> to vector<128x128xf32>
    %112 = arith.mulf %109, %111 : vector<128x128xf32>
    %c384_66 = arith.constant 384 : index
    %c0_67 = arith.constant 0 : index
    %113 = vector.load %arg10[%c384_66, %c0_67] : memref<1152x128xf32, #tpu.memory_space<vmem>>, vector<128x128xf32>
    tpu.vector_store %arg10[%c384_66, %c0_67], %112 {strides = array<i32>} : memref<1152x128xf32, #tpu.memory_space<vmem>>, vector<128x128xf32>,
    %c512_68 = arith.constant 512 : index
    %c0_69 = arith.constant 0 : index
    %114 = vector.load %arg10[%c512_68, %c0_69] : memref<1152x128xf32, #tpu.memory_space<vmem>>, vector<128x128xf32>
    tpu.vector_store %arg10[%c512_68, %c0_69], %93 {strides = array<i32>} : memref<1152x128xf32, #tpu.memory_space<vmem>>, vector<128x128xf32>,
    %c127_i32_70 = arith.constant 127 : i32
    %115 = tpu.dynamic_rotate %93 by %c127_i32_70 dim 1 : vector<128x128xf32>, i32 -> vector<128x128xf32>
    %c5_71 = arith.constant 5 : index
    %c0_72 = arith.constant 0 : index
    %116 = vector.load %arg2[%c5_71, %c0_72] : memref<9x128xf32, #tpu.memory_space<vmem>>, vector<1x128xf32>
    %117 = vector.broadcast %116 : vector<1x128xf32> to vector<128x128xf32>
    %118 = arith.mulf %115, %117 : vector<128x128xf32>
    %c640 = arith.constant 640 : index
    %c0_73 = arith.constant 0 : index
    %119 = vector.load %arg10[%c640, %c0_73] : memref<1152x128xf32, #tpu.memory_space<vmem>>, vector<128x128xf32>
    tpu.vector_store %arg10[%c640, %c0_73], %118 {strides = array<i32>} : memref<1152x128xf32, #tpu.memory_space<vmem>>, vector<128x128xf32>,
    %c121_i32_74 = arith.constant 121 : i32
    %120 = tpu.dynamic_rotate %93 by %c121_i32_74 dim 1 : vector<128x128xf32>, i32 -> vector<128x128xf32>
    %c6_75 = arith.constant 6 : index
    %c0_76 = arith.constant 0 : index
    %121 = vector.load %arg2[%c6_75, %c0_76] : memref<9x128xf32, #tpu.memory_space<vmem>>, vector<1x128xf32>
    %122 = vector.broadcast %121 : vector<1x128xf32> to vector<128x128xf32>
    %123 = arith.mulf %120, %122 : vector<128x128xf32>
    %c768 = arith.constant 768 : index
    %c0_77 = arith.constant 0 : index
    %124 = vector.load %arg10[%c768, %c0_77] : memref<1152x128xf32, #tpu.memory_space<vmem>>, vector<128x128xf32>
    tpu.vector_store %arg10[%c768, %c0_77], %123 {strides = array<i32>} : memref<1152x128xf32, #tpu.memory_space<vmem>>, vector<128x128xf32>,
    %c120_i32_78 = arith.constant 120 : i32
    %125 = tpu.dynamic_rotate %93 by %c120_i32_78 dim 1 : vector<128x128xf32>, i32 -> vector<128x128xf32>
    %c7_79 = arith.constant 7 : index
    %c0_80 = arith.constant 0 : index
    %126 = vector.load %arg2[%c7_79, %c0_80] : memref<9x128xf32, #tpu.memory_space<vmem>>, vector<1x128xf32>
    %127 = vector.broadcast %126 : vector<1x128xf32> to vector<128x128xf32>
    %128 = arith.mulf %125, %127 : vector<128x128xf32>
    %c896 = arith.constant 896 : index
    %c0_81 = arith.constant 0 : index
    %129 = vector.load %arg10[%c896, %c0_81] : memref<1152x128xf32, #tpu.memory_space<vmem>>, vector<128x128xf32>
    tpu.vector_store %arg10[%c896, %c0_81], %128 {strides = array<i32>} : memref<1152x128xf32, #tpu.memory_space<vmem>>, vector<128x128xf32>,
    %c119_i32_82 = arith.constant 119 : i32
    %130 = tpu.dynamic_rotate %93 by %c119_i32_82 dim 1 : vector<128x128xf32>, i32 -> vector<128x128xf32>
    %c8_83 = arith.constant 8 : index
    %c0_84 = arith.constant 0 : index
    %131 = vector.load %arg2[%c8_83, %c0_84] : memref<9x128xf32, #tpu.memory_space<vmem>>, vector<1x128xf32>
    %132 = vector.broadcast %131 : vector<1x128xf32> to vector<128x128xf32>
    %133 = arith.mulf %130, %132 : vector<128x128xf32>
    %c1024 = arith.constant 1024 : index
    %c0_85 = arith.constant 0 : index
    %134 = vector.load %arg10[%c1024, %c0_85] : memref<1152x128xf32, #tpu.memory_space<vmem>>, vector<128x128xf32>
    tpu.vector_store %arg10[%c1024, %c0_85], %133 {strides = array<i32>} : memref<1152x128xf32, #tpu.memory_space<vmem>>, vector<128x128xf32>,
    %c0_86 = arith.constant 0 : index
    %c0_87 = arith.constant 0 : index
    %135 = vector.load %arg5[%c0_86, %c0_87] : memref<64x1152xf32, #tpu.memory_space<vmem>>, vector<64x1152xf32>
    %c0_88 = arith.constant 0 : index
    %c0_89 = arith.constant 0 : index
    %136 = vector.load %arg10[%c0_88, %c0_89] : memref<1152x128xf32, #tpu.memory_space<vmem>>, vector<1152x128xf32>
    %cst_90 = arith.constant dense<0.000000e+00> : vector<64x128xf32>
    %137 = tpu.matmul %135, %136, %cst_90 {dimension_numbers = #tpu.dot_dimension_numbers<[1], [0], [0], [1], [0, 0, 1, 1], [], []>} : vector<64x1152xf32>, vector<1152x128xf32>, vector<64x128xf32> -> vector<64x128xf32>
    %c128_91 = arith.constant 128 : index
    %c0_92 = arith.constant 0 : index
    %138 = vector.load %arg7[%c128_91, %c0_92] : memref<208x1xf32, #tpu.memory_space<vmem>>, vector<64x1xf32>
    %139 = vector.broadcast %138 : vector<64x1xf32> to vector<64x128xf32>
    %140 = arith.addf %137, %139 : vector<64x128xf32>
    %cst_93 = arith.constant 0.000000e+00 : f32
    %141 = vector.broadcast %cst_93 : f32 to vector<64x128xf32>
    %142 = arith.maximumf %140, %141 : vector<64x128xf32>
    %c9_i32_94 = arith.constant 9 : i32
    %143 = tpu.dynamic_rotate %142 by %c9_i32_94 dim 1 : vector<64x128xf32>, i32 -> vector<64x128xf32>
    %c0_95 = arith.constant 0 : index
    %c0_96 = arith.constant 0 : index
    %144 = vector.load %arg2[%c0_95, %c0_96] : memref<9x128xf32, #tpu.memory_space<vmem>>, vector<1x128xf32>
    %145 = vector.broadcast %144 : vector<1x128xf32> to vector<64x128xf32>
    %146 = arith.mulf %143, %145 : vector<64x128xf32>
    %c0_97 = arith.constant 0 : index
    %c0_98 = arith.constant 0 : index
    %147 = vector.load %arg10[%c0_97, %c0_98] : memref<1152x128xf32, #tpu.memory_space<vmem>>, vector<64x128xf32>
    tpu.vector_store %arg10[%c0_97, %c0_98], %146 {strides = array<i32>} : memref<1152x128xf32, #tpu.memory_space<vmem>>, vector<64x128xf32>,
    %c8_i32_99 = arith.constant 8 : i32
    %148 = tpu.dynamic_rotate %142 by %c8_i32_99 dim 1 : vector<64x128xf32>, i32 -> vector<64x128xf32>
    %c1_100 = arith.constant 1 : index
    %c0_101 = arith.constant 0 : index
    %149 = vector.load %arg2[%c1_100, %c0_101] : memref<9x128xf32, #tpu.memory_space<vmem>>, vector<1x128xf32>
    %150 = vector.broadcast %149 : vector<1x128xf32> to vector<64x128xf32>
    %151 = arith.mulf %148, %150 : vector<64x128xf32>
    %c64_102 = arith.constant 64 : index
    %c0_103 = arith.constant 0 : index
    %152 = vector.load %arg10[%c64_102, %c0_103] : memref<1152x128xf32, #tpu.memory_space<vmem>>, vector<64x128xf32>
    tpu.vector_store %arg10[%c64_102, %c0_103], %151 {strides = array<i32>} : memref<1152x128xf32, #tpu.memory_space<vmem>>, vector<64x128xf32>,
    %c7_i32_104 = arith.constant 7 : i32
    %153 = tpu.dynamic_rotate %142 by %c7_i32_104 dim 1 : vector<64x128xf32>, i32 -> vector<64x128xf32>
    %c2_105 = arith.constant 2 : index
    %c0_106 = arith.constant 0 : index
    %154 = vector.load %arg2[%c2_105, %c0_106] : memref<9x128xf32, #tpu.memory_space<vmem>>, vector<1x128xf32>
    %155 = vector.broadcast %154 : vector<1x128xf32> to vector<64x128xf32>
    %156 = arith.mulf %153, %155 : vector<64x128xf32>
    %c128_107 = arith.constant 128 : index
    %c0_108 = arith.constant 0 : index
    %157 = vector.load %arg10[%c128_107, %c0_108] : memref<1152x128xf32, #tpu.memory_space<vmem>>, vector<64x128xf32>
    tpu.vector_store %arg10[%c128_107, %c0_108], %156 {strides = array<i32>} : memref<1152x128xf32, #tpu.memory_space<vmem>>, vector<64x128xf32>,
    %c1_i32_109 = arith.constant 1 : i32
    %158 = tpu.dynamic_rotate %142 by %c1_i32_109 dim 1 : vector<64x128xf32>, i32 -> vector<64x128xf32>
    %c3_110 = arith.constant 3 : index
    %c0_111 = arith.constant 0 : index
    %159 = vector.load %arg2[%c3_110, %c0_111] : memref<9x128xf32, #tpu.memory_space<vmem>>, vector<1x128xf32>
    %160 = vector.broadcast %159 : vector<1x128xf32> to vector<64x128xf32>
    %161 = arith.mulf %158, %160 : vector<64x128xf32>
    %c192_112 = arith.constant 192 : index
    %c0_113 = arith.constant 0 : index
    %162 = vector.load %arg10[%c192_112, %c0_113] : memref<1152x128xf32, #tpu.memory_space<vmem>>, vector<64x128xf32>
    tpu.vector_store %arg10[%c192_112, %c0_113], %161 {strides = array<i32>} : memref<1152x128xf32, #tpu.memory_space<vmem>>, vector<64x128xf32>,
    %c256_114 = arith.constant 256 : index
    %c0_115 = arith.constant 0 : index
    %163 = vector.load %arg10[%c256_114, %c0_115] : memref<1152x128xf32, #tpu.memory_space<vmem>>, vector<64x128xf32>
    tpu.vector_store %arg10[%c256_114, %c0_115], %142 {strides = array<i32>} : memref<1152x128xf32, #tpu.memory_space<vmem>>, vector<64x128xf32>,
    %c127_i32_116 = arith.constant 127 : i32
    %164 = tpu.dynamic_rotate %142 by %c127_i32_116 dim 1 : vector<64x128xf32>, i32 -> vector<64x128xf32>
    %c5_117 = arith.constant 5 : index
    %c0_118 = arith.constant 0 : index
    %165 = vector.load %arg2[%c5_117, %c0_118] : memref<9x128xf32, #tpu.memory_space<vmem>>, vector<1x128xf32>
    %166 = vector.broadcast %165 : vector<1x128xf32> to vector<64x128xf32>
    %167 = arith.mulf %164, %166 : vector<64x128xf32>
    %c320_119 = arith.constant 320 : index
    %c0_120 = arith.constant 0 : index
    %168 = vector.load %arg10[%c320_119, %c0_120] : memref<1152x128xf32, #tpu.memory_space<vmem>>, vector<64x128xf32>
    tpu.vector_store %arg10[%c320_119, %c0_120], %167 {strides = array<i32>} : memref<1152x128xf32, #tpu.memory_space<vmem>>, vector<64x128xf32>,
    %c121_i32_121 = arith.constant 121 : i32
    %169 = tpu.dynamic_rotate %142 by %c121_i32_121 dim 1 : vector<64x128xf32>, i32 -> vector<64x128xf32>
    %c6_122 = arith.constant 6 : index
    %c0_123 = arith.constant 0 : index
    %170 = vector.load %arg2[%c6_122, %c0_123] : memref<9x128xf32, #tpu.memory_space<vmem>>, vector<1x128xf32>
    %171 = vector.broadcast %170 : vector<1x128xf32> to vector<64x128xf32>
    %172 = arith.mulf %169, %171 : vector<64x128xf32>
    %c384_124 = arith.constant 384 : index
    %c0_125 = arith.constant 0 : index
    %173 = vector.load %arg10[%c384_124, %c0_125] : memref<1152x128xf32, #tpu.memory_space<vmem>>, vector<64x128xf32>
    tpu.vector_store %arg10[%c384_124, %c0_125], %172 {strides = array<i32>} : memref<1152x128xf32, #tpu.memory_space<vmem>>, vector<64x128xf32>,
    %c120_i32_126 = arith.constant 120 : i32
    %174 = tpu.dynamic_rotate %142 by %c120_i32_126 dim 1 : vector<64x128xf32>, i32 -> vector<64x128xf32>
    %c7_127 = arith.constant 7 : index
    %c0_128 = arith.constant 0 : index
    %175 = vector.load %arg2[%c7_127, %c0_128] : memref<9x128xf32, #tpu.memory_space<vmem>>, vector<1x128xf32>
    %176 = vector.broadcast %175 : vector<1x128xf32> to vector<64x128xf32>
    %177 = arith.mulf %174, %176 : vector<64x128xf32>
    %c448_129 = arith.constant 448 : index
    %c0_130 = arith.constant 0 : index
    %178 = vector.load %arg10[%c448_129, %c0_130] : memref<1152x128xf32, #tpu.memory_space<vmem>>, vector<64x128xf32>
    tpu.vector_store %arg10[%c448_129, %c0_130], %177 {strides = array<i32>} : memref<1152x128xf32, #tpu.memory_space<vmem>>, vector<64x128xf32>,
    %c119_i32_131 = arith.constant 119 : i32
    %179 = tpu.dynamic_rotate %142 by %c119_i32_131 dim 1 : vector<64x128xf32>, i32 -> vector<64x128xf32>
    %c8_132 = arith.constant 8 : index
    %c0_133 = arith.constant 0 : index
    %180 = vector.load %arg2[%c8_132, %c0_133] : memref<9x128xf32, #tpu.memory_space<vmem>>, vector<1x128xf32>
    %181 = vector.broadcast %180 : vector<1x128xf32> to vector<64x128xf32>
    %182 = arith.mulf %179, %181 : vector<64x128xf32>
    %c512_134 = arith.constant 512 : index
    %c0_135 = arith.constant 0 : index
    %183 = vector.load %arg10[%c512_134, %c0_135] : memref<1152x128xf32, #tpu.memory_space<vmem>>, vector<64x128xf32>
    tpu.vector_store %arg10[%c512_134, %c0_135], %182 {strides = array<i32>} : memref<1152x128xf32, #tpu.memory_space<vmem>>, vector<64x128xf32>,
    %c0_136 = arith.constant 0 : index
    %c0_137 = arith.constant 0 : index
    %184 = vector.load %arg6[%c0_136, %c0_137] : memref<16x576xf32, #tpu.memory_space<vmem>>, vector<16x576xf32>
    %c0_138 = arith.constant 0 : index
    %c0_139 = arith.constant 0 : index
    %185 = vector.load %arg10[%c0_138, %c0_139] : memref<1152x128xf32, #tpu.memory_space<vmem>>, vector<576x128xf32>
    %cst_140 = arith.constant dense<0.000000e+00> : vector<16x128xf32>
    %186 = tpu.matmul %184, %185, %cst_140 {dimension_numbers = #tpu.dot_dimension_numbers<[1], [0], [0], [1], [0, 0, 1, 1], [], []>} : vector<16x576xf32>, vector<576x128xf32>, vector<16x128xf32> -> vector<16x128xf32>
    %c192_141 = arith.constant 192 : index
    %c0_142 = arith.constant 0 : index
    %187 = vector.load %arg7[%c192_141, %c0_142] : memref<208x1xf32, #tpu.memory_space<vmem>>, vector<16x1xf32>
    %188 = vector.broadcast %187 : vector<16x1xf32> to vector<16x128xf32>
    %189 = arith.addf %186, %188 : vector<16x128xf32>
    %cst_143 = arith.constant 0.000000e+00 : f32
    %190 = vector.broadcast %cst_143 : f32 to vector<16x128xf32>
    %191 = arith.maximumf %189, %190 : vector<16x128xf32>
    %c0_144 = arith.constant 0 : index
    %c0_145 = arith.constant 0 : index
    %192 = vector.load %arg8[%c0_144, %c0_145] : memref<16x128xf32, #tpu.memory_space<vmem>>, vector<16x128xf32>
    tpu.vector_store %arg8[%c0_144, %c0_145], %191 {strides = array<i32>} : memref<16x128xf32, #tpu.memory_space<vmem>>, vector<16x128xf32>,
    return
  }
  func.func @transform_0(%arg0: i32) -> (i32, i32) {
    %c0_i32 = arith.constant 0 : i32
    %c0_i32_0 = arith.constant 0 : i32
    %c0_i32_1 = arith.constant 0 : i32
    return %c0_i32, %c0_i32_0 : i32, i32
  }
  func.func @transform_1(%arg0: i32) -> (i32, i32) {
    %c0_i32 = arith.constant 0 : i32
    %c0_i32_0 = arith.constant 0 : i32
    %c0_i32_1 = arith.constant 0 : i32
    return %c0_i32, %c0_i32_0 : i32, i32
  }
  func.func @transform_2(%arg0: i32) -> (i32, i32, i32) {
    %c0_i32 = arith.constant 0 : i32
    %c0_i32_0 = arith.constant 0 : i32
    %c0_i32_1 = arith.constant 0 : i32
    %c0_i32_2 = arith.constant 0 : i32
    return %c0_i32, %c0_i32_0, %c0_i32_1 : i32, i32, i32
  }
  func.func @transform_3(%arg0: i32) -> (i32, i32) {
    %c0_i32 = arith.constant 0 : i32
    %c0_i32_0 = arith.constant 0 : i32
    %c0_i32_1 = arith.constant 0 : i32
    return %c0_i32, %c0_i32_0 : i32, i32
  }
  func.func @transform_4(%arg0: i32) -> (i32, i32) {
    %c0_i32 = arith.constant 0 : i32
    %c0_i32_0 = arith.constant 0 : i32
    %c0_i32_1 = arith.constant 0 : i32
    return %c0_i32, %c0_i32_0 : i32, i32
  }
  func.func @transform_5(%arg0: i32) -> (i32, i32) {
    %c0_i32 = arith.constant 0 : i32
    %c0_i32_0 = arith.constant 0 : i32
    %c0_i32_1 = arith.constant 0 : i32
    return %c0_i32, %c0_i32_0 : i32, i32
  }
  func.func @transform_6(%arg0: i32) -> (i32, i32) {
    %c0_i32 = arith.constant 0 : i32
    %c0_i32_0 = arith.constant 0 : i32
    %c0_i32_1 = arith.constant 0 : i32
    return %c0_i32, %c0_i32_0 : i32, i32
  }
  func.func @transform_7(%arg0: i32) -> (i32, i32) {
    %c0_i32 = arith.constant 0 : i32
    %c0_i32_0 = arith.constant 0 : i32
    %c0_i32_1 = arith.constant 0 : i32
    return %c0_i32, %c0_i32_0 : i32, i32
  }
}

</mosaic_0001>

<llo_original>
// kernel: core_net_embedding_forward.1
$region0: #{core_net_embedding_forward.1}
  #allocation0 [shape = 'u32[]', space=smem, size = 0x4, offset = 0x4, fixed_abs, tag = 'smem constant byte address 0x4 - core index']
  #allocation1 [shape = 'u32[144,128]{1,0:T(1,128)}', space=vmem, size = 0x12000, scoped, tag = 'internal scratch']
  #allocation2 [shape = 'f32[64,128]{1,0:T(8,128)}', space=vmem, size = 0x8000, scoped, tag = 'scratch operand']
  #allocation3 [shape = 'f32[1152,128]{1,0:T(8,128)}', space=vmem, size = 0x90000, scoped, tag = 'scratch operand']
  %s0 = inlined_call_operand.vmem [shape: s32[1,128], index: 0, kind: input, shape index: {}]
  %s1 = inlined_call_operand.vmem [shape: f32[9,128], index: 1, kind: input, shape index: {}]
  %s2 = inlined_call_operand.vmem [shape: f32[1,64,512], index: 2, kind: input, shape index: {}]
  %s3 = inlined_call_operand.vmem [shape: f32[128,576], index: 3, kind: input, shape index: {}]
  %s4 = inlined_call_operand.vmem [shape: f32[64,1152], index: 4, kind: input, shape index: {}]
  %s5 = inlined_call_operand.vmem [shape: f32[16,576], index: 5, kind: input, shape index: {}]
  %s6 = inlined_call_operand.vmem [shape: f32[208,1], index: 6, kind: input, shape index: {}]
  %s7 = inlined_call_operand.vmem [shape: f32[16,128], index: 7, kind: output, shape index: {}]
  %s8 = sld [smem:[#allocation0]]
  $region38: #{core_net_embedding_forward.1} parent=0
    _
  %s10 = ssub.s32 1, %s8
  %s11 = scalar_select 0, %s10, %s8
  // Predicated region
  $region2: #{core_net_embedding_forward.1} parent=0 // pred_check
    _
  $region3: #{core_net_embedding_forward.1} parent=0 // pred_check_branch
    %13 = sbr.rel (0) target = $region5
  $region4: #{core_net_embedding_forward.1} parent=0 // pred_region
    _
  $region5: #{core_net_embedding_forward.1} parent=0 // pred_fallthru
    _
  // Predicated region
  $region6: #{core_net_embedding_forward.1} parent=0 // pred_check
    _
  $region7: #{core_net_embedding_forward.1} parent=0 // pred_check_branch
    %15 = sbr.rel (0) target = $region9
  $region8: #{core_net_embedding_forward.1} parent=0 // pred_region
    _
  $region9: #{core_net_embedding_forward.1} parent=0 // pred_fallthru
    _
  // Predicated region
  $region10: #{core_net_embedding_forward.1} parent=0 // pred_check
    _
  $region11: #{core_net_embedding_forward.1} parent=0 // pred_check_branch
    %17 = sbr.rel (0) target = $region13
  $region12: #{core_net_embedding_forward.1} parent=0 // pred_region
    _
  $region13: #{core_net_embedding_forward.1} parent=0 // pred_fallthru
    _
  // Predicated region
  $region14: #{core_net_embedding_forward.1} parent=0 // pred_check
    _
  $region15: #{core_net_embedding_forward.1} parent=0 // pred_check_branch
    %19 = sbr.rel (0) target = $region17
  $region16: #{core_net_embedding_forward.1} parent=0 // pred_region
    _
  $region17: #{core_net_embedding_forward.1} parent=0 // pred_fallthru
    _
  // Predicated region
  $region18: #{core_net_embedding_forward.1} parent=0 // pred_check
    _
  $region19: #{core_net_embedding_forward.1} parent=0 // pred_check_branch
    %21 = sbr.rel (0) target = $region21
  $region20: #{core_net_embedding_forward.1} parent=0 // pred_region
    _
  $region21: #{core_net_embedding_forward.1} parent=0 // pred_fallthru
    _
  // Predicated region
  $region22: #{core_net_embedding_forward.1} parent=0 // pred_check
    _
  $region23: #{core_net_embedding_forward.1} parent=0 // pred_check_branch
    %23 = sbr.rel (0) target = $region25
  $region24: #{core_net_embedding_forward.1} parent=0 // pred_region
    _
  $region25: #{core_net_embedding_forward.1} parent=0 // pred_fallthru
    _
  // Predicated region
  $region26: #{core_net_embedding_forward.1} parent=0 // pred_check
    _
  $region27: #{core_net_embedding_forward.1} parent=0 // pred_check_branch
    %25 = sbr.rel (0) target = $region29
  $region28: #{core_net_embedding_forward.1} parent=0 // pred_region
    _
  $region29: #{core_net_embedding_forward.1} parent=0 // pred_fallthru
    _
  %v26 = vlaneseq
  %v27 = vshrl.u32 %v26, 7
  %v28 = vadd.s32 %v27, 8
  %v29 = vadd.s32 %v27, 16
  %v30 = vadd.s32 %v27, 24
  %v31 = vadd.s32 %v27, 32
  %v32 = vadd.s32 %v27, 40
  %v33 = vadd.s32 %v27, 48
  %v34 = vadd.s32 %v27, 56
  %v35 = vadd.s32 %v27, 64
  %v36 = vadd.s32 %v27, 72
  %v37 = vadd.s32 %v27, 80
  %v38 = vadd.s32 %v27, 88
  %v39 = vadd.s32 %v27, 96
  %v40 = vadd.s32 %v27, 104
  %v41 = vadd.s32 %v27, 112
  %v42 = vadd.s32 %v27, 120
  %v43 = vld [vmem:[%s0] sm:$0x1]
  %v44 = vlaneseq
  %v45 = vshrl.u32 %v44, 7
  %v46 = vsub.s32 0, %v45
  %v47 = vrot.slane %v43, %v46
  %vm48 = vcmp.eq.s32.totalorder %v27, %v47
  %vm49 = vcmp.eq.s32.totalorder %v28, %v47
  %vm50 = vcmp.eq.s32.totalorder %v29, %v47
  %vm51 = vcmp.eq.s32.totalorder %v30, %v47
  %vm52 = vcmp.eq.s32.totalorder %v31, %v47
  %vm53 = vcmp.eq.s32.totalorder %v32, %v47
  %vm54 = vcmp.eq.s32.totalorder %v33, %v47
  %vm55 = vcmp.eq.s32.totalorder %v34, %v47
  %vm56 = vcmp.eq.s32.totalorder %v35, %v47
  %vm57 = vcmp.eq.s32.totalorder %v36, %v47
  %vm58 = vcmp.eq.s32.totalorder %v37, %v47
  %vm59 = vcmp.eq.s32.totalorder %v38, %v47
  %vm60 = vcmp.eq.s32.totalorder %v39, %v47
  %vm61 = vcmp.eq.s32.totalorder %v40, %v47
  %vm62 = vcmp.eq.s32.totalorder %v41, %v47
  %vm63 = vcmp.eq.s32.totalorder %v42, %v47
  %v64 = vsel %vm48, 1, 0
  %v65 = vsel %vm49, 1, 0
  %v66 = vsel %vm50, 1, 0
  %v67 = vsel %vm51, 1, 0
  %v68 = vsel %vm52, 1, 0
  %v69 = vsel %vm53, 1, 0
  %v70 = vsel %vm54, 1, 0
  %v71 = vsel %vm55, 1, 0
  %v72 = vsel %vm56, 1, 0
  %v73 = vsel %vm57, 1, 0
  %v74 = vsel %vm58, 1, 0
  %v75 = vsel %vm59, 1, 0
  %v76 = vsel %vm60, 1, 0
  %v77 = vsel %vm61, 1, 0
  %v78 = vsel %vm62, 1, 0
  %v79 = vsel %vm63, 1, 0
  %v80 = vcvt.s32.f32 %v64
  %v81 = vcvt.s32.f32 %v65
  %v82 = vcvt.s32.f32 %v66
  %v83 = vcvt.s32.f32 %v67
  %v84 = vcvt.s32.f32 %v68
  %v85 = vcvt.s32.f32 %v69
  %v86 = vcvt.s32.f32 %v70
  %v87 = vcvt.s32.f32 %v71
  %v88 = vcvt.s32.f32 %v72
  %v89 = vcvt.s32.f32 %v73
  %v90 = vcvt.s32.f32 %v74
  %v91 = vcvt.s32.f32 %v75
  %v92 = vcvt.s32.f32 %v76
  %v93 = vcvt.s32.f32 %v77
  %v94 = vcvt.s32.f32 %v78
  %v95 = vcvt.s32.f32 %v79
  %v96 = vld [vmem:[%s2] sm:$0xff]
  %v97 = vld [vmem:[%s2 + $0x20] sm:$0xff]
  %v98 = vld [vmem:[%s2 + $0x40] sm:$0xff]
  %v99 = vld [vmem:[%s2 + $0x60] sm:$0xff]
  %v100 = vld [vmem:[%s2 + $0x80] sm:$0xff]
  %v101 = vld [vmem:[%s2 + $0xa0] sm:$0xff]
  %v102 = vld [vmem:[%s2 + $0xc0] sm:$0xff]
  %v103 = vld [vmem:[%s2 + $0xe0] sm:$0xff]
  %v104 = vsub.s32 %v43, 128
  %v105 = vlaneseq
  %v106 = vshrl.u32 %v105, 7
  %v107 = vsub.s32 0, %v106
  %v108 = vrot.slane %v104, %v107
  %vm109 = vcmp.eq.s32.totalorder %v27, %v108
  %vm110 = vcmp.eq.s32.totalorder %v28, %v108
  %vm111 = vcmp.eq.s32.totalorder %v29, %v108
  %vm112 = vcmp.eq.s32.totalorder %v30, %v108
  %vm113 = vcmp.eq.s32.totalorder %v31, %v108
  %vm114 = vcmp.eq.s32.totalorder %v32, %v108
  %vm115 = vcmp.eq.s32.totalorder %v33, %v108
  %vm116 = vcmp.eq.s32.totalorder %v34, %v108
  %vm117 = vcmp.eq.s32.totalorder %v35, %v108
  %vm118 = vcmp.eq.s32.totalorder %v36, %v108
  %vm119 = vcmp.eq.s32.totalorder %v37, %v108
  %vm120 = vcmp.eq.s32.totalorder %v38, %v108
  %vm121 = vcmp.eq.s32.totalorder %v39, %v108
  %vm122 = vcmp.eq.s32.totalorder %v40, %v108
  %vm123 = vcmp.eq.s32.totalorder %v41, %v108
  %vm124 = vcmp.eq.s32.totalorder %v42, %v108
  %v125 = vsel %vm109, 1, 0
  %v126 = vsel %vm110, 1, 0
  %v127 = vsel %vm111, 1, 0
  %v128 = vsel %vm112, 1, 0
  %v129 = vsel %vm113, 1, 0
  %v130 = vsel %vm114, 1, 0
  %v131 = vsel %vm115, 1, 0
  %v132 = vsel %vm116, 1, 0
  %v133 = vsel %vm117, 1, 0
  %v134 = vsel %vm118, 1, 0
  %v135 = vsel %vm119, 1, 0
  %v136 = vsel %vm120, 1, 0
  %v137 = vsel %vm121, 1, 0
  %v138 = vsel %vm122, 1, 0
  %v139 = vsel %vm123, 1, 0
  %v140 = vsel %vm124, 1, 0
  %v141 = vcvt.s32.f32 %v125
  %v142 = vcvt.s32.f32 %v126
  %v143 = vcvt.s32.f32 %v127
  %v144 = vcvt.s32.f32 %v128
  %v145 = vcvt.s32.f32 %v129
  %v146 = vcvt.s32.f32 %v130
  %v147 = vcvt.s32.f32 %v131
  %v148 = vcvt.s32.f32 %v132
  %v149 = vcvt.s32.f32 %v133
  %v150 = vcvt.s32.f32 %v134
  %v151 = vcvt.s32.f32 %v135
  %v152 = vcvt.s32.f32 %v136
  %v153 = vcvt.s32.f32 %v137
  %v154 = vcvt.s32.f32 %v138
  %v155 = vcvt.s32.f32 %v139
  %v156 = vcvt.s32.f32 %v140
  %v157 = vld [vmem:[%s2 + $0x8] sm:$0xff]
  %v158 = vld [vmem:[%s2 + $0x28] sm:$0xff]
  %v159 = vld [vmem:[%s2 + $0x48] sm:$0xff]
  %v160 = vld [vmem:[%s2 + $0x68] sm:$0xff]
  %v161 = vld [vmem:[%s2 + $0x88] sm:$0xff]
  %v162 = vld [vmem:[%s2 + $0xa8] sm:$0xff]
  %v163 = vld [vmem:[%s2 + $0xc8] sm:$0xff]
  %v164 = vld [vmem:[%s2 + $0xe8] sm:$0xff]
  %165 = vmatprep.subr.mxu0 0.0
  %166 = vmatpush1.msra.mxu0 %v156
  %167 = vmatprep.subr.mxu0 0.0
  %168 = vmatpush1.msra.mxu0 %v155
  %169 = vmatprep.subr.mxu0 0.0
  %170 = vmatpush1.msra.mxu0 %v154
  %171 = vmatprep.subr.mxu0 0.0
  %172 = vmatpush1.msra.mxu0 %v153
  %173 = vmatprep.subr.mxu0 0.0
  %174 = vmatpush1.msra.mxu0 %v152
  %175 = vmatprep.subr.mxu0 0.0
  %176 = vmatpush1.msra.mxu0 %v151
  %177 = vmatprep.subr.mxu0 0.0
  %178 = vmatpush1.msra.mxu0 %v150
  %179 = vmatprep.subr.mxu0 0.0
  %180 = vmatpush1.msra.mxu0 %v149
  %181 = vmatprep.subr.mxu0 0.0
  %182 = vmatpush1.msra.mxu0 %v148
  %183 = vmatprep.subr.mxu0 0.0
  %184 = vmatpush1.msra.mxu0 %v147
  %185 = vmatprep.subr.mxu0 0.0
  %186 = vmatpush1.msra.mxu0 %v146
  %187 = vmatprep.subr.mxu0 0.0
  %188 = vmatpush1.msra.mxu0 %v145
  %189 = vmatprep.subr.mxu0 0.0
  %190 = vmatpush1.msra.mxu0 %v144
  %191 = vmatprep.subr.mxu0 0.0
  %192 = vmatpush1.msra.mxu0 %v143
  %193 = vmatprep.subr.mxu0 0.0
  %194 = vmatpush1.msra.mxu0 %v142
  %195 = vmatprep.subr.mxu0 0.0
  %196 = vmatpush1.msra.mxu0 %v141
  %197 = vmatprep.subr.mxu0 0.0
  %198 = vmatpush2.msra.mxu0 0.0
  %199 = vmatprep.subr.mxu0 0.0
  %200 = vmatpush2.msra.mxu0 0.0
  %201 = vmatprep.subr.mxu0 0.0
  %202 = vmatpush2.msra.mxu0 0.0
  %203 = vmatprep.subr.mxu0 0.0
  %204 = vmatpush2.msra.mxu0 0.0
  %205 = vmatprep.subr.mxu0 0.0
  %206 = vmatpush2.msra.mxu0 0.0
  %207 = vmatprep.subr.mxu0 0.0
  %208 = vmatpush2.msra.mxu0 0.0
  %209 = vmatprep.subr.mxu0 0.0
  %210 = vmatpush2.msra.mxu0 0.0
  %211 = vmatprep.subr.mxu0 0.0
  %212 = vmatpush2.msra.mxu0 0.0
  %213 = vmatprep.subr.mxu0 0.0
  %214 = vmatpush2.msra.mxu0 0.0
  %215 = vmatprep.subr.mxu0 0.0
  %216 = vmatpush2.msra.mxu0 0.0
  %217 = vmatprep.subr.mxu0 0.0
  %218 = vmatpush2.msra.mxu0 0.0
  %219 = vmatprep.subr.mxu0 0.0
  %220 = vmatpush2.msra.mxu0 0.0
  %221 = vmatprep.subr.mxu0 0.0
  %222 = vmatpush2.msra.mxu0 0.0
  %223 = vmatprep.subr.mxu0 0.0
  %224 = vmatpush2.msra.mxu0 0.0
  %225 = vmatprep.subr.mxu0 0.0
  %226 = vmatpush2.msra.mxu0 0.0
  %227 = vmatprep.subr.mxu0 0.0
  %228 = vmatpush2.msra.mxu0 0.0
  %229 = vmatprep.mubr.f32.mxu0 0.0
  %230 = vmatmul.mubr.f32.gmra.mxu0 %v157
  %v231 = vpop.f32.mrf.mxu0
  %v232 = vadd.f32 0.0, %v231
  %v233 = vpop.f32.mrf.mxu0
  %234 = vmatprep.mubr.f32.mxu0 0.0
  %235 = vmatmul.mubr.f32.gmra.mxu0 %v158
  %v236 = vpop.f32.mrf.mxu0
  %v237 = vadd.f32 0.0, %v236
  %v238 = vpop.f32.mrf.mxu0
  %239 = vmatprep.mubr.f32.mxu0 0.0
  %240 = vmatmul.mubr.f32.gmra.mxu0 %v159
  %v241 = vpop.f32.mrf.mxu0
  %v242 = vadd.f32 0.0, %v241
  %v243 = vpop.f32.mrf.mxu0
  %244 = vmatprep.mubr.f32.mxu0 0.0
  %245 = vmatmul.mubr.f32.gmra.mxu0 %v160
  %v246 = vpop.f32.mrf.mxu0
  %v247 = vadd.f32 0.0, %v246
  %v248 = vpop.f32.mrf.mxu0
  %249 = vmatprep.mubr.f32.mxu0 0.0
  %250 = vmatmul.mubr.f32.gmra.mxu0 %v161
  %v251 = vpop.f32.mrf.mxu0
  %v252 = vadd.f32 0.0, %v251
  %v253 = vpop.f32.mrf.mxu0
  %254 = vmatprep.mubr.f32.mxu0 0.0
  %255 = vmatmul.mubr.f32.gmra.mxu0 %v162
  %v256 = vpop.f32.mrf.mxu0
  %v257 = vadd.f32 0.0, %v256
  %v258 = vpop.f32.mrf.mxu0
  %259 = vmatprep.mubr.f32.mxu0 0.0
  %260 = vmatmul.mubr.f32.gmra.mxu0 %v163
  %v261 = vpop.f32.mrf.mxu0
  %v262 = vadd.f32 0.0, %v261
  %v263 = vpop.f32.mrf.mxu0
  %264 = vmatprep.mubr.f32.mxu0 0.0
  %265 = vmatmul.mubr.f32.gmra.mxu0 %v164
  %v266 = vpop.f32.mrf.mxu0
  %v267 = vadd.f32 0.0, %v266
  %v268 = vpop.f32.mrf.mxu0
  %269 = vdwg.mxu0
  %270 = vmatprep.subr.mxu0 0.0
  %271 = vmatpush1.msra.mxu0 %v95
  %272 = vmatprep.subr.mxu0 0.0
  %273 = vmatpush1.msra.mxu0 %v94
  %274 = vmatprep.subr.mxu0 0.0
  %275 = vmatpush1.msra.mxu0 %v93
  %276 = vmatprep.subr.mxu0 0.0
  %277 = vmatpush1.msra.mxu0 %v92
  %278 = vmatprep.subr.mxu0 0.0
  %279 = vmatpush1.msra.mxu0 %v91
  %280 = vmatprep.subr.mxu0 0.0
  %281 = vmatpush1.msra.mxu0 %v90
  %282 = vmatprep.subr.mxu0 0.0
  %283 = vmatpush1.msra.mxu0 %v89
  %284 = vmatprep.subr.mxu0 0.0
  %285 = vmatpush1.msra.mxu0 %v88
  %286 = vmatprep.subr.mxu0 0.0
  %287 = vmatpush1.msra.mxu0 %v87
  %288 = vmatprep.subr.mxu0 0.0
  %289 = vmatpush1.msra.mxu0 %v86
  %290 = vmatprep.subr.mxu0 0.0
  %291 = vmatpush1.msra.mxu0 %v85
  %292 = vmatprep.subr.mxu0 0.0
  %293 = vmatpush1.msra.mxu0 %v84
  %294 = vmatprep.subr.mxu0 0.0
  %295 = vmatpush1.msra.mxu0 %v83
  %296 = vmatprep.subr.mxu0 0.0
  %297 = vmatpush1.msra.mxu0 %v82
  %298 = vmatprep.subr.mxu0 0.0
  %299 = vmatpush1.msra.mxu0 %v81
  %300 = vmatprep.subr.mxu0 0.0
  %301 = vmatpush1.msra.mxu0 %v80
  %302 = vmatprep.subr.mxu0 0.0
  %303 = vmatpush2.msra.mxu0 0.0
  %304 = vmatprep.subr.mxu0 0.0
  %305 = vmatpush2.msra.mxu0 0.0
  %306 = vmatprep.subr.mxu0 0.0
  %307 = vmatpush2.msra.mxu0 0.0
  %308 = vmatprep.subr.mxu0 0.0
  %309 = vmatpush2.msra.mxu0 0.0
  %310 = vmatprep.subr.mxu0 0.0
  %311 = vmatpush2.msra.mxu0 0.0
  %312 = vmatprep.subr.mxu0 0.0
  %313 = vmatpush2.msra.mxu0 0.0
  %314 = vmatprep.subr.mxu0 0.0
  %315 = vmatpush2.msra.mxu0 0.0
  %316 = vmatprep.subr.mxu0 0.0
  %317 = vmatpush2.msra.mxu0 0.0
  %318 = vmatprep.subr.mxu0 0.0
  %319 = vmatpush2.msra.mxu0 0.0
  %320 = vmatprep.subr.mxu0 0.0
  %321 = vmatpush2.msra.mxu0 0.0
  %322 = vmatprep.subr.mxu0 0.0
  %323 = vmatpush2.msra.mxu0 0.0
  %324 = vmatprep.subr.mxu0 0.0
  %325 = vmatpush2.msra.mxu0 0.0
  %326 = vmatprep.subr.mxu0 0.0
  %327 = vmatpush2.msra.mxu0 0.0
  %328 = vmatprep.subr.mxu0 0.0
  %329 = vmatpush2.msra.mxu0 0.0
  %330 = vmatprep.subr.mxu0 0.0
  %331 = vmatpush2.msra.mxu0 0.0
  %332 = vmatprep.subr.mxu0 0.0
  %333 = vmatpush2.msra.mxu0 0.0
  %334 = vmatprep.mubr.f32.mxu0 0.0
  %335 = vmatmul.mubr.f32.gmra.mxu0 %v96
  %v336 = vpop.f32.mrf.mxu0
  %v337 = vadd.f32 %v232, %v336
  %v338 = vpop.f32.mrf.mxu0
  %339 = vmatprep.mubr.f32.mxu0 0.0
  %340 = vmatmul.mubr.f32.gmra.mxu0 %v97
  %v341 = vpop.f32.mrf.mxu0
  %v342 = vadd.f32 %v237, %v341
  %v343 = vpop.f32.mrf.mxu0
  %344 = vmatprep.mubr.f32.mxu0 0.0
  %345 = vmatmul.mubr.f32.gmra.mxu0 %v98
  %v346 = vpop.f32.mrf.mxu0
  %v347 = vadd.f32 %v242, %v346
  %v348 = vpop.f32.mrf.mxu0
  %349 = vmatprep.mubr.f32.mxu0 0.0
  %350 = vmatmul.mubr.f32.gmra.mxu0 %v99
  %v351 = vpop.f32.mrf.mxu0
  %v352 = vadd.f32 %v247, %v351
  %v353 = vpop.f32.mrf.mxu0
  %354 = vmatprep.mubr.f32.mxu0 0.0
  %355 = vmatmul.mubr.f32.gmra.mxu0 %v100
  %v356 = vpop.f32.mrf.mxu0
  %v357 = vadd.f32 %v252, %v356
  %v358 = vpop.f32.mrf.mxu0
  %359 = vmatprep.mubr.f32.mxu0 0.0
  %360 = vmatmul.mubr.f32.gmra.mxu0 %v101
  %v361 = vpop.f32.mrf.mxu0
  %v362 = vadd.f32 %v257, %v361
  %v363 = vpop.f32.mrf.mxu0
  %364 = vmatprep.mubr.f32.mxu0 0.0
  %365 = vmatmul.mubr.f32.gmra.mxu0 %v102
  %v366 = vpop.f32.mrf.mxu0
  %v367 = vadd.f32 %v262, %v366
  %v368 = vpop.f32.mrf.mxu0
  %369 = vmatprep.mubr.f32.mxu0 0.0
  %370 = vmatmul.mubr.f32.gmra.mxu0 %v103
  %v371 = vpop.f32.mrf.mxu0
  %v372 = vadd.f32 %v267, %v371
  %v373 = vpop.f32.mrf.mxu0
  %374 = vdwg.mxu0
  %v375 = vsub.s32 %v43, 256
  %v376 = vlaneseq
  %v377 = vshrl.u32 %v376, 7
  %v378 = vsub.s32 0, %v377
  %v379 = vrot.slane %v375, %v378
  %vm380 = vcmp.eq.s32.totalorder %v27, %v379
  %vm381 = vcmp.eq.s32.totalorder %v28, %v379
  %vm382 = vcmp.eq.s32.totalorder %v29, %v379
  %vm383 = vcmp.eq.s32.totalorder %v30, %v379
  %vm384 = vcmp.eq.s32.totalorder %v31, %v379
  %vm385 = vcmp.eq.s32.totalorder %v32, %v379
  %vm386 = vcmp.eq.s32.totalorder %v33, %v379
  %vm387 = vcmp.eq.s32.totalorder %v34, %v379
  %vm388 = vcmp.eq.s32.totalorder %v35, %v379
  %vm389 = vcmp.eq.s32.totalorder %v36, %v379
  %vm390 = vcmp.eq.s32.totalorder %v37, %v379
  %vm391 = vcmp.eq.s32.totalorder %v38, %v379
  %vm392 = vcmp.eq.s32.totalorder %v39, %v379
  %vm393 = vcmp.eq.s32.totalorder %v40, %v379
  %vm394 = vcmp.eq.s32.totalorder %v41, %v379
  %vm395 = vcmp.eq.s32.totalorder %v42, %v379
  %v396 = vsel %vm380, 1, 0
  %v397 = vsel %vm381, 1, 0
  %v398 = vsel %vm382, 1, 0
  %v399 = vsel %vm383, 1, 0
  %v400 = vsel %vm384, 1, 0
  %v401 = vsel %vm385, 1, 0
  %v402 = vsel %vm386, 1, 0
  %v403 = vsel %vm387, 1, 0
  %v404 = vsel %vm388, 1, 0
  %v405 = vsel %vm389, 1, 0
  %v406 = vsel %vm390, 1, 0
  %v407 = vsel %vm391, 1, 0
  %v408 = vsel %vm392, 1, 0
  %v409 = vsel %vm393, 1, 0
  %v410 = vsel %vm394, 1, 0
  %v411 = vsel %vm395, 1, 0
  %v412 = vcvt.s32.f32 %v396
  %v413 = vcvt.s32.f32 %v397
  %v414 = vcvt.s32.f32 %v398
  %v415 = vcvt.s32.f32 %v399
  %v416 = vcvt.s32.f32 %v400
  %v417 = vcvt.s32.f32 %v401
  %v418 = vcvt.s32.f32 %v402
  %v419 = vcvt.s32.f32 %v403
  %v420 = vcvt.s32.f32 %v404
  %v421 = vcvt.s32.f32 %v405
  %v422 = vcvt.s32.f32 %v406
  %v423 = vcvt.s32.f32 %v407
  %v424 = vcvt.s32.f32 %v408
  %v425 = vcvt.s32.f32 %v409
  %v426 = vcvt.s32.f32 %v410
  %v427 = vcvt.s32.f32 %v411
  %v428 = vld [vmem:[%s2 + $0x10] sm:$0xff]
  %v429 = vld [vmem:[%s2 + $0x30] sm:$0xff]
  %v430 = vld [vmem:[%s2 + $0x50] sm:$0xff]
  %v431 = vld [vmem:[%s2 + $0x70] sm:$0xff]
  %v432 = vld [vmem:[%s2 + $0x90] sm:$0xff]
  %v433 = vld [vmem:[%s2 + $0xb0] sm:$0xff]
  %v434 = vld [vmem:[%s2 + $0xd0] sm:$0xff]
  %v435 = vld [vmem:[%s2 + $0xf0] sm:$0xff]
  %436 = vmatprep.subr.mxu0 0.0
  %437 = vmatpush1.msra.mxu0 %v427
  %438 = vmatprep.subr.mxu0 0.0
  %439 = vmatpush1.msra.mxu0 %v426
  %440 = vmatprep.subr.mxu0 0.0
  %441 = vmatpush1.msra.mxu0 %v425
  %442 = vmatprep.subr.mxu0 0.0
  %443 = vmatpush1.msra.mxu0 %v424
  %444 = vmatprep.subr.mxu0 0.0
  %445 = vmatpush1.msra.mxu0 %v423
  %446 = vmatprep.subr.mxu0 0.0
  %447 = vmatpush1.msra.mxu0 %v422
  %448 = vmatprep.subr.mxu0 0.0
  %449 = vmatpush1.msra.mxu0 %v421
  %450 = vmatprep.subr.mxu0 0.0
  %451 = vmatpush1.msra.mxu0 %v420
  %452 = vmatprep.subr.mxu0 0.0
  %453 = vmatpush1.msra.mxu0 %v419
  %454 = vmatprep.subr.mxu0 0.0
  %455 = vmatpush1.msra.mxu0 %v418
  %456 = vmatprep.subr.mxu0 0.0
  %457 = vmatpush1.msra.mxu0 %v417
  %458 = vmatprep.subr.mxu0 0.0
  %459 = vmatpush1.msra.mxu0 %v416
  %460 = vmatprep.subr.mxu0 0.0
  %461 = vmatpush1.msra.mxu0 %v415
  %462 = vmatprep.subr.mxu0 0.0
  %463 = vmatpush1.msra.mxu0 %v414
  %464 = vmatprep.subr.mxu0 0.0
  %465 = vmatpush1.msra.mxu0 %v413
  %466 = vmatprep.subr.mxu0 0.0
  %467 = vmatpush1.msra.mxu0 %v412
  %468 = vmatprep.subr.mxu0 0.0
  %469 = vmatpush2.msra.mxu0 0.0
  %470 = vmatprep.subr.mxu0 0.0
  %471 = vmatpush2.msra.mxu0 0.0
  %472 = vmatprep.subr.mxu0 0.0
  %473 = vmatpush2.msra.mxu0 0.0
  %474 = vmatprep.subr.mxu0 0.0
  %475 = vmatpush2.msra.mxu0 0.0
  %476 = vmatprep.subr.mxu0 0.0
  %477 = vmatpush2.msra.mxu0 0.0
  %478 = vmatprep.subr.mxu0 0.0
  %479 = vmatpush2.msra.mxu0 0.0
  %480 = vmatprep.subr.mxu0 0.0
  %481 = vmatpush2.msra.mxu0 0.0
  %482 = vmatprep.subr.mxu0 0.0
  %483 = vmatpush2.msra.mxu0 0.0
  %484 = vmatprep.subr.mxu0 0.0
  %485 = vmatpush2.msra.mxu0 0.0
  %486 = vmatprep.subr.mxu0 0.0
  %487 = vmatpush2.msra.mxu0 0.0
  %488 = vmatprep.subr.mxu0 0.0
  %489 = vmatpush2.msra.mxu0 0.0
  %490 = vmatprep.subr.mxu0 0.0
  %491 = vmatpush2.msra.mxu0 0.0
  %492 = vmatprep.subr.mxu0 0.0
  %493 = vmatpush2.msra.mxu0 0.0
  %494 = vmatprep.subr.mxu0 0.0
  %495 = vmatpush2.msra.mxu0 0.0
  %496 = vmatprep.subr.mxu0 0.0
  %497 = vmatpush2.msra.mxu0 0.0
  %498 = vmatprep.subr.mxu0 0.0
  %499 = vmatpush2.msra.mxu0 0.0
  %500 = vmatprep.mubr.f32.mxu0 0.0
  %501 = vmatmul.mubr.f32.gmra.mxu0 %v428
  %v502 = vpop.f32.mrf.mxu0
  %v503 = vadd.f32 0.0, %v502
  %v504 = vpop.f32.mrf.mxu0
  %505 = vmatprep.mubr.f32.mxu0 0.0
  %506 = vmatmul.mubr.f32.gmra.mxu0 %v429
  %v507 = vpop.f32.mrf.mxu0
  %v508 = vadd.f32 0.0, %v507
  %v509 = vpop.f32.mrf.mxu0
  %510 = vmatprep.mubr.f32.mxu0 0.0
  %511 = vmatmul.mubr.f32.gmra.mxu0 %v430
  %v512 = vpop.f32.mrf.mxu0
  %v513 = vadd.f32 0.0, %v512
  %v514 = vpop.f32.mrf.mxu0
  %515 = vmatprep.mubr.f32.mxu0 0.0
  %516 = vmatmul.mubr.f32.gmra.mxu0 %v431
  %v517 = vpop.f32.mrf.mxu0
  %v518 = vadd.f32 0.0, %v517
  %v519 = vpop.f32.mrf.mxu0
  %520 = vmatprep.mubr.f32.mxu0 0.0
  %521 = vmatmul.mubr.f32.gmra.mxu0 %v432
  %v522 = vpop.f32.mrf.mxu0
  %v523 = vadd.f32 0.0, %v522
  %v524 = vpop.f32.mrf.mxu0
  %525 = vmatprep.mubr.f32.mxu0 0.0
  %526 = vmatmul.mubr.f32.gmra.mxu0 %v433
  %v527 = vpop.f32.mrf.mxu0
  %v528 = vadd.f32 0.0, %v527
  %v529 = vpop.f32.mrf.mxu0
  %530 = vmatprep.mubr.f32.mxu0 0.0
  %531 = vmatmul.mubr.f32.gmra.mxu0 %v434
  %v532 = vpop.f32.mrf.mxu0
  %v533 = vadd.f32 0.0, %v532
  %v534 = vpop.f32.mrf.mxu0
  %535 = vmatprep.mubr.f32.mxu0 0.0
  %536 = vmatmul.mubr.f32.gmra.mxu0 %v435
  %v537 = vpop.f32.mrf.mxu0
  %v538 = vadd.f32 0.0, %v537
  %v539 = vpop.f32.mrf.mxu0
  %540 = vdwg.mxu0
  %v541 = vadd.f32 %v337, %v503
  %v542 = vadd.f32 %v342, %v508
  %v543 = vadd.f32 %v347, %v513
  %v544 = vadd.f32 %v352, %v518
  %v545 = vadd.f32 %v357, %v523
  %v546 = vadd.f32 %v362, %v528
  %v547 = vadd.f32 %v367, %v533
  %v548 = vadd.f32 %v372, %v538
  %v549 = vsub.s32 %v43, 384
  %v550 = vlaneseq
  %v551 = vshrl.u32 %v550, 7
  %v552 = vsub.s32 0, %v551
  %v553 = vrot.slane %v549, %v552
  %vm554 = vcmp.eq.s32.totalorder %v27, %v553
  %vm555 = vcmp.eq.s32.totalorder %v28, %v553
  %vm556 = vcmp.eq.s32.totalorder %v29, %v553
  %vm557 = vcmp.eq.s32.totalorder %v30, %v553
  %vm558 = vcmp.eq.s32.totalorder %v31, %v553
  %vm559 = vcmp.eq.s32.totalorder %v32, %v553
  %vm560 = vcmp.eq.s32.totalorder %v33, %v553
  %vm561 = vcmp.eq.s32.totalorder %v34, %v553
  %vm562 = vcmp.eq.s32.totalorder %v35, %v553
  %vm563 = vcmp.eq.s32.totalorder %v36, %v553
  %vm564 = vcmp.eq.s32.totalorder %v37, %v553
  %vm565 = vcmp.eq.s32.totalorder %v38, %v553
  %vm566 = vcmp.eq.s32.totalorder %v39, %v553
  %vm567 = vcmp.eq.s32.totalorder %v40, %v553
  %vm568 = vcmp.eq.s32.totalorder %v41, %v553
  %vm569 = vcmp.eq.s32.totalorder %v42, %v553
  %v570 = vsel %vm554, 1, 0
  %v571 = vsel %vm555, 1, 0
  %v572 = vsel %vm556, 1, 0
  %v573 = vsel %vm557, 1, 0
  %v574 = vsel %vm558, 1, 0
  %v575 = vsel %vm559, 1, 0
  %v576 = vsel %vm560, 1, 0
  %v577 = vsel %vm561, 1, 0
  %v578 = vsel %vm562, 1, 0
  %v579 = vsel %vm563, 1, 0
  %v580 = vsel %vm564, 1, 0
  %v581 = vsel %vm565, 1, 0
  %v582 = vsel %vm566, 1, 0
  %v583 = vsel %vm567, 1, 0
  %v584 = vsel %vm568, 1, 0
  %v585 = vsel %vm569, 1, 0
  %v586 = vcvt.s32.f32 %v570
  %v587 = vcvt.s32.f32 %v571
  %v588 = vcvt.s32.f32 %v572
  %v589 = vcvt.s32.f32 %v573
  %v590 = vcvt.s32.f32 %v574
  %v591 = vcvt.s32.f32 %v575
  %v592 = vcvt.s32.f32 %v576
  %v593 = vcvt.s32.f32 %v577
  %v594 = vcvt.s32.f32 %v578
  %v595 = vcvt.s32.f32 %v579
  %v596 = vcvt.s32.f32 %v580
  %v597 = vcvt.s32.f32 %v581
  %v598 = vcvt.s32.f32 %v582
  %v599 = vcvt.s32.f32 %v583
  %v600 = vcvt.s32.f32 %v584
  %v601 = vcvt.s32.f32 %v585
  %v602 = vld [vmem:[%s2 + $0x18] sm:$0xff]
  %v603 = vld [vmem:[%s2 + $0x38] sm:$0xff]
  %v604 = vld [vmem:[%s2 + $0x58] sm:$0xff]
  %v605 = vld [vmem:[%s2 + $0x78] sm:$0xff]
  %v606 = vld [vmem:[%s2 + $0x98] sm:$0xff]
  %v607 = vld [vmem:[%s2 + $0xb8] sm:$0xff]
  %v608 = vld [vmem:[%s2 + $0xd8] sm:$0xff]
  %v609 = vld [vmem:[%s2 + $0xf8] sm:$0xff]
  %610 = vmatprep.subr.mxu0 0.0
  %611 = vmatpush1.msra.mxu0 %v601
  %612 = vmatprep.subr.mxu0 0.0
  %613 = vmatpush1.msra.mxu0 %v600
  %614 = vmatprep.subr.mxu0 0.0
  %615 = vmatpush1.msra.mxu0 %v599
  %616 = vmatprep.subr.mxu0 0.0
  %617 = vmatpush1.msra.mxu0 %v598
  %618 = vmatprep.subr.mxu0 0.0
  %619 = vmatpush1.msra.mxu0 %v597
  %620 = vmatprep.subr.mxu0 0.0
  %621 = vmatpush1.msra.mxu0 %v596
  %622 = vmatprep.subr.mxu0 0.0
  %623 = vmatpush1.msra.mxu0 %v595
  %624 = vmatprep.subr.mxu0 0.0
  %625 = vmatpush1.msra.mxu0 %v594
  %626 = vmatprep.subr.mxu0 0.0
  %627 = vmatpush1.msra.mxu0 %v593
  %628 = vmatprep.subr.mxu0 0.0
  %629 = vmatpush1.msra.mxu0 %v592
  %630 = vmatprep.subr.mxu0 0.0
  %631 = vmatpush1.msra.mxu0 %v591
  %632 = vmatprep.subr.mxu0 0.0
  %633 = vmatpush1.msra.mxu0 %v590
  %634 = vmatprep.subr.mxu0 0.0
  %635 = vmatpush1.msra.mxu0 %v589
  %636 = vmatprep.subr.mxu0 0.0
  %637 = vmatpush1.msra.mxu0 %v588
  %638 = vmatprep.subr.mxu0 0.0
  %639 = vmatpush1.msra.mxu0 %v587
  %640 = vmatprep.subr.mxu0 0.0
  %641 = vmatpush1.msra.mxu0 %v586
  %642 = vmatprep.subr.mxu0 0.0
  %643 = vmatpush2.msra.mxu0 0.0
  %644 = vmatprep.subr.mxu0 0.0
  %645 = vmatpush2.msra.mxu0 0.0
  %646 = vmatprep.subr.mxu0 0.0
  %647 = vmatpush2.msra.mxu0 0.0
  %648 = vmatprep.subr.mxu0 0.0
  %649 = vmatpush2.msra.mxu0 0.0
  %650 = vmatprep.subr.mxu0 0.0
  %651 = vmatpush2.msra.mxu0 0.0
  %652 = vmatprep.subr.mxu0 0.0
  %653 = vmatpush2.msra.mxu0 0.0
  %654 = vmatprep.subr.mxu0 0.0
  %655 = vmatpush2.msra.mxu0 0.0
  %656 = vmatprep.subr.mxu0 0.0
  %657 = vmatpush2.msra.mxu0 0.0
  %658 = vmatprep.subr.mxu0 0.0
  %659 = vmatpush2.msra.mxu0 0.0
  %660 = vmatprep.subr.mxu0 0.0
  %661 = vmatpush2.msra.mxu0 0.0
  %662 = vmatprep.subr.mxu0 0.0
  %663 = vmatpush2.msra.mxu0 0.0
  %664 = vmatprep.subr.mxu0 0.0
  %665 = vmatpush2.msra.mxu0 0.0
  %666 = vmatprep.subr.mxu0 0.0
  %667 = vmatpush2.msra.mxu0 0.0
  %668 = vmatprep.subr.mxu0 0.0
  %669 = vmatpush2.msra.mxu0 0.0
  %670 = vmatprep.subr.mxu0 0.0
  %671 = vmatpush2.msra.mxu0 0.0
  %672 = vmatprep.subr.mxu0 0.0
  %673 = vmatpush2.msra.mxu0 0.0
  %674 = vmatprep.mubr.f32.mxu0 0.0
  %675 = vmatmul.mubr.f32.gmra.mxu0 %v602
  %v676 = vpop.f32.mrf.mxu0
  %v677 = vadd.f32 0.0, %v676
  %v678 = vpop.f32.mrf.mxu0
  %679 = vmatprep.mubr.f32.mxu0 0.0
  %680 = vmatmul.mubr.f32.gmra.mxu0 %v603
  %v681 = vpop.f32.mrf.mxu0
  %v682 = vadd.f32 0.0, %v681
  %v683 = vpop.f32.mrf.mxu0
  %684 = vmatprep.mubr.f32.mxu0 0.0
  %685 = vmatmul.mubr.f32.gmra.mxu0 %v604
  %v686 = vpop.f32.mrf.mxu0
  %v687 = vadd.f32 0.0, %v686
  %v688 = vpop.f32.mrf.mxu0
  %689 = vmatprep.mubr.f32.mxu0 0.0
  %690 = vmatmul.mubr.f32.gmra.mxu0 %v605
  %v691 = vpop.f32.mrf.mxu0
  %v692 = vadd.f32 0.0, %v691
  %v693 = vpop.f32.mrf.mxu0
  %694 = vmatprep.mubr.f32.mxu0 0.0
  %695 = vmatmul.mubr.f32.gmra.mxu0 %v606
  %v696 = vpop.f32.mrf.mxu0
  %v697 = vadd.f32 0.0, %v696
  %v698 = vpop.f32.mrf.mxu0
  %699 = vmatprep.mubr.f32.mxu0 0.0
  %700 = vmatmul.mubr.f32.gmra.mxu0 %v607
  %v701 = vpop.f32.mrf.mxu0
  %v702 = vadd.f32 0.0, %v701
  %v703 = vpop.f32.mrf.mxu0
  %704 = vmatprep.mubr.f32.mxu0 0.0
  %705 = vmatmul.mubr.f32.gmra.mxu0 %v608
  %v706 = vpop.f32.mrf.mxu0
  %v707 = vadd.f32 0.0, %v706
  %v708 = vpop.f32.mrf.mxu0
  %709 = vmatprep.mubr.f32.mxu0 0.0
  %710 = vmatmul.mubr.f32.gmra.mxu0 %v609
  %v711 = vpop.f32.mrf.mxu0
  %v712 = vadd.f32 0.0, %v711
  %v713 = vpop.f32.mrf.mxu0
  %714 = vdwg.mxu0
  %v715 = vadd.f32 %v541, %v677
  %v716 = vadd.f32 %v542, %v682
  %v717 = vadd.f32 %v543, %v687
  %v718 = vadd.f32 %v544, %v692
  %v719 = vadd.f32 %v545, %v697
  %v720 = vadd.f32 %v546, %v702
  %v721 = vadd.f32 %v547, %v707
  %v722 = vadd.f32 %v548, %v712
  %723 = vst [vmem:[#allocation2] sm:$0xff] %v715
  %724 = vst [vmem:[#allocation2 + $0x8] sm:$0xff] %v716
  %725 = vst [vmem:[#allocation2 + $0x10] sm:$0xff] %v717
  %726 = vst [vmem:[#allocation2 + $0x18] sm:$0xff] %v718
  %727 = vst [vmem:[#allocation2 + $0x20] sm:$0xff] %v719
  %728 = vst [vmem:[#allocation2 + $0x28] sm:$0xff] %v720
  %729 = vst [vmem:[#allocation2 + $0x30] sm:$0xff] %v721
  %730 = vst [vmem:[#allocation2 + $0x38] sm:$0xff] %v722
  %v731 = vld [vmem:[#allocation2] sm:$0xff]
  %v732 = vld [vmem:[#allocation2 + $0x8] sm:$0xff]
  %v733 = vld [vmem:[#allocation2 + $0x10] sm:$0xff]
  %v734 = vld [vmem:[#allocation2 + $0x18] sm:$0xff]
  %v735 = vld [vmem:[#allocation2 + $0x20] sm:$0xff]
  %v736 = vld [vmem:[#allocation2 + $0x28] sm:$0xff]
  %v737 = vld [vmem:[#allocation2 + $0x30] sm:$0xff]
  %v738 = vld [vmem:[#allocation2 + $0x38] sm:$0xff]
  %739 = vrot.lane.b32.xlu0 %v731, 9
  %v740 = vpop.permute.xlu0 %739
  %741 = vrot.lane.b32.xlu0 %v732, 9
  %v742 = vpop.permute.xlu0 %741
  %743 = vrot.lane.b32.xlu0 %v733, 9
  %v744 = vpop.permute.xlu0 %743
  %745 = vrot.lane.b32.xlu0 %v734, 9
  %v746 = vpop.permute.xlu0 %745
  %747 = vrot.lane.b32.xlu0 %v735, 9
  %v748 = vpop.permute.xlu0 %747
  %749 = vrot.lane.b32.xlu0 %v736, 9
  %v750 = vpop.permute.xlu0 %749
  %751 = vrot.lane.b32.xlu0 %v737, 9
  %v752 = vpop.permute.xlu0 %751
  %753 = vrot.lane.b32.xlu0 %v738, 9
  %v754 = vpop.permute.xlu0 %753
  %v755 = vld [vmem:[%s1] sm:$0x1]
  %v756 = vlaneseq
  %v757 = vshrl.u32 %v756, 7
  %v758 = vsub.s32 0, %v757
  %v759 = vrot.slane %v755, %v758
  %v760 = vmul.f32 %v740, %v759
  %v761 = vmul.f32 %v742, %v759
  %v762 = vmul.f32 %v744, %v759
  %v763 = vmul.f32 %v746, %v759
  %v764 = vmul.f32 %v748, %v759
  %v765 = vmul.f32 %v750, %v759
  %v766 = vmul.f32 %v752, %v759
  %v767 = vmul.f32 %v754, %v759
  %768 = vst [vmem:[#allocation3] sm:$0xff] %v760
  %769 = vst [vmem:[#allocation3 + $0x8] sm:$0xff] %v761
  %770 = vst [vmem:[#allocation3 + $0x10] sm:$0xff] %v762
  %771 = vst [vmem:[#allocation3 + $0x18] sm:$0xff] %v763
  %772 = vst [vmem:[#allocation3 + $0x20] sm:$0xff] %v764
  %773 = vst [vmem:[#allocation3 + $0x28] sm:$0xff] %v765
  %774 = vst [vmem:[#allocation3 + $0x30] sm:$0xff] %v766
  %775 = vst [vmem:[#allocation3 + $0x38] sm:$0xff] %v767
  %776 = vrot.lane.b32.xlu0 %v731, 8
  %v777 = vpop.permute.xlu0 %776
  %778 = vrot.lane.b32.xlu0 %v732, 8
  %v779 = vpop.permute.xlu0 %778
  %780 = vrot.lane.b32.xlu0 %v733, 8
  %v781 = vpop.permute.xlu0 %780
  %782 = vrot.lane.b32.xlu0 %v734, 8
  %v783 = vpop.permute.xlu0 %782
  %784 = vrot.lane.b32.xlu0 %v735, 8
  %v785 = vpop.permute.xlu0 %784
  %786 = vrot.lane.b32.xlu0 %v736, 8
  %v787 = vpop.permute.xlu0 %786
  %788 = vrot.lane.b32.xlu0 %v737, 8
  %v789 = vpop.permute.xlu0 %788
  %790 = vrot.lane.b32.xlu0 %v738, 8
  %v791 = vpop.permute.xlu0 %790
  %v792 = vld [vmem:[%s1 + $0x1] sm:$0x1]
  %v793 = vlaneseq
  %v794 = vshrl.u32 %v793, 7
  %v795 = vsub.s32 0, %v794
  %v796 = vrot.slane %v792, %v795
  %v797 = vmul.f32 %v777, %v796
  %v798 = vmul.f32 %v779, %v796
  %v799 = vmul.f32 %v781, %v796
  %v800 = vmul.f32 %v783, %v796
  %v801 = vmul.f32 %v785, %v796
  %v802 = vmul.f32 %v787, %v796
  %v803 = vmul.f32 %v789, %v796
  %v804 = vmul.f32 %v791, %v796
  %805 = vst [vmem:[#allocation3 + $0x40] sm:$0xff] %v797
  %806 = vst [vmem:[#allocation3 + $0x48] sm:$0xff] %v798
  %807 = vst [vmem:[#allocation3 + $0x50] sm:$0xff] %v799
  %808 = vst [vmem:[#allocation3 + $0x58] sm:$0xff] %v800
  %809 = vst [vmem:[#allocation3 + $0x60] sm:$0xff] %v801
  %810 = vst [vmem:[#allocation3 + $0x68] sm:$0xff] %v802
  %811 = vst [vmem:[#allocation3 + $0x70] sm:$0xff] %v803
  %812 = vst [vmem:[#allocation3 + $0x78] sm:$0xff] %v804
  %813 = vrot.lane.b32.xlu0 %v731, 7
  %v814 = vpop.permute.xlu0 %813
  %815 = vrot.lane.b32.xlu0 %v732, 7
  %v816 = vpop.permute.xlu0 %815
  %817 = vrot.lane.b32.xlu0 %v733, 7
  %v818 = vpop.permute.xlu0 %817
  %819 = vrot.lane.b32.xlu0 %v734, 7
  %v820 = vpop.permute.xlu0 %819
  %821 = vrot.lane.b32.xlu0 %v735, 7
  %v822 = vpop.permute.xlu0 %821
  %823 = vrot.lane.b32.xlu0 %v736, 7
  %v824 = vpop.permute.xlu0 %823
  %825 = vrot.lane.b32.xlu0 %v737, 7
  %v826 = vpop.permute.xlu0 %825
  %827 = vrot.lane.b32.xlu0 %v738, 7
  %v828 = vpop.permute.xlu0 %827
  %v829 = vld [vmem:[%s1 + $0x2] sm:$0x1]
  %v830 = vlaneseq
  %v831 = vshrl.u32 %v830, 7
  %v832 = vsub.s32 0, %v831
  %v833 = vrot.slane %v829, %v832
  %v834 = vmul.f32 %v814, %v833
  %v835 = vmul.f32 %v816, %v833
  %v836 = vmul.f32 %v818, %v833
  %v837 = vmul.f32 %v820, %v833
  %v838 = vmul.f32 %v822, %v833
  %v839 = vmul.f32 %v824, %v833
  %v840 = vmul.f32 %v826, %v833
  %v841 = vmul.f32 %v828, %v833
  %842 = vst [vmem:[#allocation3 + $0x80] sm:$0xff] %v834
  %843 = vst [vmem:[#allocation3 + $0x88] sm:$0xff] %v835
  %844 = vst [vmem:[#allocation3 + $0x90] sm:$0xff] %v836
  %845 = vst [vmem:[#allocation3 + $0x98] sm:$0xff] %v837
  %846 = vst [vmem:[#allocation3 + $0xa0] sm:$0xff] %v838
  %847 = vst [vmem:[#allocation3 + $0xa8] sm:$0xff] %v839
  %848 = vst [vmem:[#allocation3 + $0xb0] sm:$0xff] %v840
  %849 = vst [vmem:[#allocation3 + $0xb8] sm:$0xff] %v841
  %850 = vrot.lane.b32.xlu0 %v731, 1
  %v851 = vpop.permute.xlu0 %850
  %852 = vrot.lane.b32.xlu0 %v732, 1
  %v853 = vpop.permute.xlu0 %852
  %854 = vrot.lane.b32.xlu0 %v733, 1
  %v855 = vpop.permute.xlu0 %854
  %856 = vrot.lane.b32.xlu0 %v734, 1
  %v857 = vpop.permute.xlu0 %856
  %858 = vrot.lane.b32.xlu0 %v735, 1
  %v859 = vpop.permute.xlu0 %858
  %860 = vrot.lane.b32.xlu0 %v736, 1
  %v861 = vpop.permute.xlu0 %860
  %862 = vrot.lane.b32.xlu0 %v737, 1
  %v863 = vpop.permute.xlu0 %862
  %864 = vrot.lane.b32.xlu0 %v738, 1
  %v865 = vpop.permute.xlu0 %864
  %v866 = vld [vmem:[%s1 + $0x3] sm:$0x1]
  %v867 = vlaneseq
  %v868 = vshrl.u32 %v867, 7
  %v869 = vsub.s32 0, %v868
  %v870 = vrot.slane %v866, %v869
  %v871 = vmul.f32 %v851, %v870
  %v872 = vmul.f32 %v853, %v870
  %v873 = vmul.f32 %v855, %v870
  %v874 = vmul.f32 %v857, %v870
  %v875 = vmul.f32 %v859, %v870
  %v876 = vmul.f32 %v861, %v870
  %v877 = vmul.f32 %v863, %v870
  %v878 = vmul.f32 %v865, %v870
  %879 = vst [vmem:[#allocation3 + $0xc0] sm:$0xff] %v871
  %880 = vst [vmem:[#allocation3 + $0xc8] sm:$0xff] %v872
  %881 = vst [vmem:[#allocation3 + $0xd0] sm:$0xff] %v873
  %882 = vst [vmem:[#allocation3 + $0xd8] sm:$0xff] %v874
  %883 = vst [vmem:[#allocation3 + $0xe0] sm:$0xff] %v875
  %884 = vst [vmem:[#allocation3 + $0xe8] sm:$0xff] %v876
  %885 = vst [vmem:[#allocation3 + $0xf0] sm:$0xff] %v877
  %886 = vst [vmem:[#allocation3 + $0xf8] sm:$0xff] %v878
  %887 = vst [vmem:[#allocation3 + $0x100] sm:$0xff] %v731
  %888 = vst [vmem:[#allocation3 + $0x108] sm:$0xff] %v732
  %889 = vst [vmem:[#allocation3 + $0x110] sm:$0xff] %v733
  %890 = vst [vmem:[#allocation3 + $0x118] sm:$0xff] %v734
  %891 = vst [vmem:[#allocation3 + $0x120] sm:$0xff] %v735
  %892 = vst [vmem:[#allocation3 + $0x128] sm:$0xff] %v736
  %893 = vst [vmem:[#allocation3 + $0x130] sm:$0xff] %v737
  %894 = vst [vmem:[#allocation3 + $0x138] sm:$0xff] %v738
  %895 = vrot.lane.b32.xlu0 %v731, 127
  %v896 = vpop.permute.xlu0 %895
  %897 = vrot.lane.b32.xlu0 %v732, 127
  %v898 = vpop.permute.xlu0 %897
  %899 = vrot.lane.b32.xlu0 %v733, 127
  %v900 = vpop.permute.xlu0 %899
  %901 = vrot.lane.b32.xlu0 %v734, 127
  %v902 = vpop.permute.xlu0 %901
  %903 = vrot.lane.b32.xlu0 %v735, 127
  %v904 = vpop.permute.xlu0 %903
  %905 = vrot.lane.b32.xlu0 %v736, 127
  %v906 = vpop.permute.xlu0 %905
  %907 = vrot.lane.b32.xlu0 %v737, 127
  %v908 = vpop.permute.xlu0 %907
  %909 = vrot.lane.b32.xlu0 %v738, 127
  %v910 = vpop.permute.xlu0 %909
  %v911 = vld [vmem:[%s1 + $0x5] sm:$0x1]
  %v912 = vlaneseq
  %v913 = vshrl.u32 %v912, 7
  %v914 = vsub.s32 0, %v913
  %v915 = vrot.slane %v911, %v914
  %v916 = vmul.f32 %v896, %v915
  %v917 = vmul.f32 %v898, %v915
  %v918 = vmul.f32 %v900, %v915
  %v919 = vmul.f32 %v902, %v915
  %v920 = vmul.f32 %v904, %v915
  %v921 = vmul.f32 %v906, %v915
  %v922 = vmul.f32 %v908, %v915
  %v923 = vmul.f32 %v910, %v915
  %924 = vst [vmem:[#allocation3 + $0x140] sm:$0xff] %v916
  %925 = vst [vmem:[#allocation3 + $0x148] sm:$0xff] %v917
  %926 = vst [vmem:[#allocation3 + $0x150] sm:$0xff] %v918
  %927 = vst [vmem:[#allocation3 + $0x158] sm:$0xff] %v919
  %928 = vst [vmem:[#allocation3 + $0x160] sm:$0xff] %v920
  %929 = vst [vmem:[#allocation3 + $0x168] sm:$0xff] %v921
  %930 = vst [vmem:[#allocation3 + $0x170] sm:$0xff] %v922
  %931 = vst [vmem:[#allocation3 + $0x178] sm:$0xff] %v923
  %932 = vrot.lane.b32.xlu0 %v731, 121
  %v933 = vpop.permute.xlu0 %932
  %934 = vrot.lane.b32.xlu0 %v732, 121
  %v935 = vpop.permute.xlu0 %934
  %936 = vrot.lane.b32.xlu0 %v733, 121
  %v937 = vpop.permute.xlu0 %936
  %938 = vrot.lane.b32.xlu0 %v734, 121
  %v939 = vpop.permute.xlu0 %938
  %940 = vrot.lane.b32.xlu0 %v735, 121
  %v941 = vpop.permute.xlu0 %940
  %942 = vrot.lane.b32.xlu0 %v736, 121
  %v943 = vpop.permute.xlu0 %942
  %944 = vrot.lane.b32.xlu0 %v737, 121
  %v945 = vpop.permute.xlu0 %944
  %946 = vrot.lane.b32.xlu0 %v738, 121
  %v947 = vpop.permute.xlu0 %946
  %v948 = vld [vmem:[%s1 + $0x6] sm:$0x1]
  %v949 = vlaneseq
  %v950 = vshrl.u32 %v949, 7
  %v951 = vsub.s32 0, %v950
  %v952 = vrot.slane %v948, %v951
  %v953 = vmul.f32 %v933, %v952
  %v954 = vmul.f32 %v935, %v952
  %v955 = vmul.f32 %v937, %v952
  %v956 = vmul.f32 %v939, %v952
  %v957 = vmul.f32 %v941, %v952
  %v958 = vmul.f32 %v943, %v952
  %v959 = vmul.f32 %v945, %v952
  %v960 = vmul.f32 %v947, %v952
  %961 = vst [vmem:[#allocation3 + $0x180] sm:$0xff] %v953
  %962 = vst [vmem:[#allocation3 + $0x188] sm:$0xff] %v954
  %963 = vst [vmem:[#allocation3 + $0x190] sm:$0xff] %v955
  %964 = vst [vmem:[#allocation3 + $0x198] sm:$0xff] %v956
  %965 = vst [vmem:[#allocation3 + $0x1a0] sm:$0xff] %v957
  %966 = vst [vmem:[#allocation3 + $0x1a8] sm:$0xff] %v958
  %967 = vst [vmem:[#allocation3 + $0x1b0] sm:$0xff] %v959
  %968 = vst [vmem:[#allocation3 + $0x1b8] sm:$0xff] %v960
  %969 = vrot.lane.b32.xlu0 %v731, 120
  %v970 = vpop.permute.xlu0 %969
  %971 = vrot.lane.b32.xlu0 %v732, 120
  %v972 = vpop.permute.xlu0 %971
  %973 = vrot.lane.b32.xlu0 %v733, 120
  %v974 = vpop.permute.xlu0 %973
  %975 = vrot.lane.b32.xlu0 %v734, 120
  %v976 = vpop.permute.xlu0 %975
  %977 = vrot.lane.b32.xlu0 %v735, 120
  %v978 = vpop.permute.xlu0 %977
  %979 = vrot.lane.b32.xlu0 %v736, 120
  %v980 = vpop.permute.xlu0 %979
  %981 = vrot.lane.b32.xlu0 %v737, 120
  %v982 = vpop.permute.xlu0 %981
  %983 = vrot.lane.b32.xlu0 %v738, 120
  %v984 = vpop.permute.xlu0 %983
  %v985 = vld [vmem:[%s1 + $0x7] sm:$0x1]
  %v986 = vlaneseq
  %v987 = vshrl.u32 %v986, 7
  %v988 = vsub.s32 0, %v987
  %v989 = vrot.slane %v985, %v988
  %v990 = vmul.f32 %v970, %v989
  %v991 = vmul.f32 %v972, %v989
  %v992 = vmul.f32 %v974, %v989
  %v993 = vmul.f32 %v976, %v989
  %v994 = vmul.f32 %v978, %v989
  %v995 = vmul.f32 %v980, %v989
  %v996 = vmul.f32 %v982, %v989
  %v997 = vmul.f32 %v984, %v989
  %998 = vst [vmem:[#allocation3 + $0x1c0] sm:$0xff] %v990
  %999 = vst [vmem:[#allocation3 + $0x1c8] sm:$0xff] %v991
  %1000 = vst [vmem:[#allocation3 + $0x1d0] sm:$0xff] %v992
  %1001 = vst [vmem:[#allocation3 + $0x1d8] sm:$0xff] %v993
  %1002 = vst [vmem:[#allocation3 + $0x1e0] sm:$0xff] %v994
  %1003 = vst [vmem:[#allocation3 + $0x1e8] sm:$0xff] %v995
  %1004 = vst [vmem:[#allocation3 + $0x1f0] sm:$0xff] %v996
  %1005 = vst [vmem:[#allocation3 + $0x1f8] sm:$0xff] %v997
  %1006 = vrot.lane.b32.xlu0 %v731, 119
  %v1007 = vpop.permute.xlu0 %1006
  %1008 = vrot.lane.b32.xlu0 %v732, 119
  %v1009 = vpop.permute.xlu0 %1008
  %1010 = vrot.lane.b32.xlu0 %v733, 119
  %v1011 = vpop.permute.xlu0 %1010
  %1012 = vrot.lane.b32.xlu0 %v734, 119
  %v1013 = vpop.permute.xlu0 %1012
  %1014 = vrot.lane.b32.xlu0 %v735, 119
  %v1015 = vpop.permute.xlu0 %1014
  %1016 = vrot.lane.b32.xlu0 %v736, 119
  %v1017 = vpop.permute.xlu0 %1016
  %1018 = vrot.lane.b32.xlu0 %v737, 119
  %v1019 = vpop.permute.xlu0 %1018
  %1020 = vrot.lane.b32.xlu0 %v738, 119
  %v1021 = vpop.permute.xlu0 %1020
  %v1022 = vld [vmem:[%s1 + $0x8] sm:$0x1]
  %v1023 = vlaneseq
  %v1024 = vshrl.u32 %v1023, 7
  %v1025 = vsub.s32 0, %v1024
  %v1026 = vrot.slane %v1022, %v1025
  %v1027 = vmul.f32 %v1007, %v1026
  %v1028 = vmul.f32 %v1009, %v1026
  %v1029 = vmul.f32 %v1011, %v1026
  %v1030 = vmul.f32 %v1013, %v1026
  %v1031 = vmul.f32 %v1015, %v1026
  %v1032 = vmul.f32 %v1017, %v1026
  %v1033 = vmul.f32 %v1019, %v1026
  %v1034 = vmul.f32 %v1021, %v1026
  %1035 = vst [vmem:[#allocation3 + $0x200] sm:$0xff] %v1027
  %1036 = vst [vmem:[#allocation3 + $0x208] sm:$0xff] %v1028
  %1037 = vst [vmem:[#allocation3 + $0x210] sm:$0xff] %v1029
  %1038 = vst [vmem:[#allocation3 + $0x218] sm:$0xff] %v1030
  %1039 = vst [vmem:[#allocation3 + $0x220] sm:$0xff] %v1031
  %1040 = vst [vmem:[#allocation3 + $0x228] sm:$0xff] %v1032
  %1041 = vst [vmem:[#allocation3 + $0x230] sm:$0xff] %v1033
  %1042 = vst [vmem:[#allocation3 + $0x238] sm:$0xff] %v1034
  %v1043 = vld [vmem:[%s3] sm:$0xff]
  %v1044 = vld [vmem:[%s3 + $0x8] sm:$0xff]
  %v1045 = vld [vmem:[%s3 + $0x10] sm:$0xff]
  %v1046 = vld [vmem:[%s3 + $0x18] sm:$0xff]
  %v1047 = vld [vmem:[%s3 + $0x20] sm:$0xff]
  %v1048 = vld [vmem:[%s3 + $0x28] sm:$0xff]
  %v1049 = vld [vmem:[%s3 + $0x30] sm:$0xff]
  %v1050 = vld [vmem:[%s3 + $0x38] sm:$0xff]
  %v1051 = vld [vmem:[%s3 + $0x40] sm:$0xff]
  %v1052 = vld [vmem:[%s3 + $0x48] sm:$0xff]
  %v1053 = vld [vmem:[%s3 + $0x50] sm:$0xff]
  %v1054 = vld [vmem:[%s3 + $0x58] sm:$0xff]
  %v1055 = vld [vmem:[%s3 + $0x60] sm:$0xff]
  %v1056 = vld [vmem:[%s3 + $0x68] sm:$0xff]
  %v1057 = vld [vmem:[%s3 + $0x70] sm:$0xff]
  %v1058 = vld [vmem:[%s3 + $0x78] sm:$0xff]
  %v1059 = vld [vmem:[%s3 + $0x80] sm:$0xff]
  %v1060 = vld [vmem:[%s3 + $0x88] sm:$0xff]
  %v1061 = vld [vmem:[%s3 + $0x90] sm:$0xff]
  %v1062 = vld [vmem:[%s3 + $0x98] sm:$0xff]
  %v1063 = vld [vmem:[%s3 + $0xa0] sm:$0xff]
  %v1064 = vld [vmem:[%s3 + $0xa8] sm:$0xff]
  %v1065 = vld [vmem:[%s3 + $0xb0] sm:$0xff]
  %v1066 = vld [vmem:[%s3 + $0xb8] sm:$0xff]
  %v1067 = vld [vmem:[%s3 + $0xc0] sm:$0xff]
  %v1068 = vld [vmem:[%s3 + $0xc8] sm:$0xff]
  %v1069 = vld [vmem:[%s3 + $0xd0] sm:$0xff]
  %v1070 = vld [vmem:[%s3 + $0xd8] sm:$0xff]
  %v1071 = vld [vmem:[%s3 + $0xe0] sm:$0xff]
  %v1072 = vld [vmem:[%s3 + $0xe8] sm:$0xff]
  %v1073 = vld [vmem:[%s3 + $0xf0] sm:$0xff]
  %v1074 = vld [vmem:[%s3 + $0xf8] sm:$0xff]
  %v1075 = vld [vmem:[%s3 + $0x100] sm:$0xff]
  %v1076 = vld [vmem:[%s3 + $0x108] sm:$0xff]
  %v1077 = vld [vmem:[%s3 + $0x110] sm:$0xff]
  %v1078 = vld [vmem:[%s3 + $0x118] sm:$0xff]
  %v1079 = vld [vmem:[%s3 + $0x120] sm:$0xff]
  %v1080 = vld [vmem:[%s3 + $0x128] sm:$0xff]
  %v1081 = vld [vmem:[%s3 + $0x130] sm:$0xff]
  %v1082 = vld [vmem:[%s3 + $0x138] sm:$0xff]
  %v1083 = vld [vmem:[%s3 + $0x140] sm:$0xff]
  %v1084 = vld [vmem:[%s3 + $0x148] sm:$0xff]
  %v1085 = vld [vmem:[%s3 + $0x150] sm:$0xff]
  %v1086 = vld [vmem:[%s3 + $0x158] sm:$0xff]
  %v1087 = vld [vmem:[%s3 + $0x160] sm:$0xff]
  %v1088 = vld [vmem:[%s3 + $0x168] sm:$0xff]
  %v1089 = vld [vmem:[%s3 + $0x170] sm:$0xff]
  %v1090 = vld [vmem:[%s3 + $0x178] sm:$0xff]
  %v1091 = vld [vmem:[%s3 + $0x180] sm:$0xff]
  %v1092 = vld [vmem:[%s3 + $0x188] sm:$0xff]
  %v1093 = vld [vmem:[%s3 + $0x190] sm:$0xff]
  %v1094 = vld [vmem:[%s3 + $0x198] sm:$0xff]
  %v1095 = vld [vmem:[%s3 + $0x1a0] sm:$0xff]
  %v1096 = vld [vmem:[%s3 + $0x1a8] sm:$0xff]
  %v1097 = vld [vmem:[%s3 + $0x1b0] sm:$0xff]
  %v1098 = vld [vmem:[%s3 + $0x1b8] sm:$0xff]
  %v1099 = vld [vmem:[%s3 + $0x1c0] sm:$0xff]
  %v1100 = vld [vmem:[%s3 + $0x1c8] sm:$0xff]
  %v1101 = vld [vmem:[%s3 + $0x1d0] sm:$0xff]
  %v1102 = vld [vmem:[%s3 + $0x1d8] sm:$0xff]
  %v1103 = vld [vmem:[%s3 + $0x1e0] sm:$0xff]
  %v1104 = vld [vmem:[%s3 + $0x1e8] sm:$0xff]
  %v1105 = vld [vmem:[%s3 + $0x1f0] sm:$0xff]
  %v1106 = vld [vmem:[%s3 + $0x1f8] sm:$0xff]
  %v1107 = vld [vmem:[%s3 + $0x200] sm:$0xff]
  %v1108 = vld [vmem:[%s3 + $0x208] sm:$0xff]
  %v1109 = vld [vmem:[%s3 + $0x210] sm:$0xff]
  %v1110 = vld [vmem:[%s3 + $0x218] sm:$0xff]
  %v1111 = vld [vmem:[%s3 + $0x220] sm:$0xff]
  %v1112 = vld [vmem:[%s3 + $0x228] sm:$0xff]
  %v1113 = vld [vmem:[%s3 + $0x230] sm:$0xff]
  %v1114 = vld [vmem:[%s3 + $0x238] sm:$0xff]
  %v1115 = vld [vmem:[%s3 + $0x240] sm:$0xff]
  %v1116 = vld [vmem:[%s3 + $0x248] sm:$0xff]
  %v1117 = vld [vmem:[%s3 + $0x250] sm:$0xff]
  %v1118 = vld [vmem:[%s3 + $0x258] sm:$0xff]
  %v1119 = vld [vmem:[%s3 + $0x260] sm:$0xff]
  %v1120 = vld [vmem:[%s3 + $0x268] sm:$0xff]
  %v1121 = vld [vmem:[%s3 + $0x270] sm:$0xff]
  %v1122 = vld [vmem:[%s3 + $0x278] sm:$0xff]
  %v1123 = vld [vmem:[#allocation3] sm:$0xff]
  %v1124 = vld [vmem:[#allocation3 + $0x8] sm:$0xff]
  %v1125 = vld [vmem:[#allocation3 + $0x10] sm:$0xff]
  %v1126 = vld [vmem:[#allocation3 + $0x18] sm:$0xff]
  %v1127 = vld [vmem:[#allocation3 + $0x20] sm:$0xff]
  %v1128 = vld [vmem:[#allocation3 + $0x28] sm:$0xff]
  %v1129 = vld [vmem:[#allocation3 + $0x30] sm:$0xff]
  %v1130 = vld [vmem:[#allocation3 + $0x38] sm:$0xff]
  %v1131 = vld [vmem:[#allocation3 + $0x40] sm:$0xff]
  %v1132 = vld [vmem:[#allocation3 + $0x48] sm:$0xff]
  %v1133 = vld [vmem:[#allocation3 + $0x50] sm:$0xff]
  %v1134 = vld [vmem:[#allocation3 + $0x58] sm:$0xff]
  %v1135 = vld [vmem:[#allocation3 + $0x60] sm:$0xff]
  %v1136 = vld [vmem:[#allocation3 + $0x68] sm:$0xff]
  %v1137 = vld [vmem:[#allocation3 + $0x70] sm:$0xff]
  %v1138 = vld [vmem:[#allocation3 + $0x78] sm:$0xff]
  %v1139 = vld [vmem:[#allocation3 + $0x80] sm:$0xff]
  %v1140 = vld [vmem:[#allocation3 + $0x88] sm:$0xff]
  %v1141 = vld [vmem:[#allocation3 + $0x90] sm:$0xff]
  %v1142 = vld [vmem:[#allocation3 + $0x98] sm:$0xff]
  %v1143 = vld [vmem:[#allocation3 + $0xa0] sm:$0xff]
  %v1144 = vld [vmem:[#allocation3 + $0xa8] sm:$0xff]
  %v1145 = vld [vmem:[#allocation3 + $0xb0] sm:$0xff]
  %v1146 = vld [vmem:[#allocation3 + $0xb8] sm:$0xff]
  %v1147 = vld [vmem:[#allocation3 + $0xc0] sm:$0xff]
  %v1148 = vld [vmem:[#allocation3 + $0xc8] sm:$0xff]
  %v1149 = vld [vmem:[#allocation3 + $0xd0] sm:$0xff]
  %v1150 = vld [vmem:[#allocation3 + $0xd8] sm:$0xff]
  %v1151 = vld [vmem:[#allocation3 + $0xe0] sm:$0xff]
  %v1152 = vld [vmem:[#allocation3 + $0xe8] sm:$0xff]
  %v1153 = vld [vmem:[#allocation3 + $0xf0] sm:$0xff]
  %v1154 = vld [vmem:[#allocation3 + $0xf8] sm:$0xff]
  %v1155 = vld [vmem:[#allocation3 + $0x100] sm:$0xff]
  %v1156 = vld [vmem:[#allocation3 + $0x108] sm:$0xff]
  %v1157 = vld [vmem:[#allocation3 + $0x110] sm:$0xff]
  %v1158 = vld [vmem:[#allocation3 + $0x118] sm:$0xff]
  %v1159 = vld [vmem:[#allocation3 + $0x120] sm:$0xff]
  %v1160 = vld [vmem:[#allocation3 + $0x128] sm:$0xff]
  %v1161 = vld [vmem:[#allocation3 + $0x130] sm:$0xff]
  %v1162 = vld [vmem:[#allocation3 + $0x138] sm:$0xff]
  %v1163 = vld [vmem:[#allocation3 + $0x140] sm:$0xff]
  %v1164 = vld [vmem:[#allocation3 + $0x148] sm:$0xff]
  %v1165 = vld [vmem:[#allocation3 + $0x150] sm:$0xff]
  %v1166 = vld [vmem:[#allocation3 + $0x158] sm:$0xff]
  %v1167 = vld [vmem:[#allocation3 + $0x160] sm:$0xff]
  %v1168 = vld [vmem:[#allocation3 + $0x168] sm:$0xff]
  %v1169 = vld [vmem:[#allocation3 + $0x170] sm:$0xff]
  %v1170 = vld [vmem:[#allocation3 + $0x178] sm:$0xff]
  %v1171 = vld [vmem:[#allocation3 + $0x180] sm:$0xff]
  %v1172 = vld [vmem:[#allocation3 + $0x188] sm:$0xff]
  %v1173 = vld [vmem:[#allocation3 + $0x190] sm:$0xff]
  %v1174 = vld [vmem:[#allocation3 + $0x198] sm:$0xff]
  %v1175 = vld [vmem:[#allocation3 + $0x1a0] sm:$0xff]
  %v1176 = vld [vmem:[#allocation3 + $0x1a8] sm:$0xff]
  %v1177 = vld [vmem:[#allocation3 + $0x1b0] sm:$0xff]
  %v1178 = vld [vmem:[#allocation3 + $0x1b8] sm:$0xff]
  %v1179 = vld [vmem:[#allocation3 + $0x1c0] sm:$0xff]
  %v1180 = vld [vmem:[#allocation3 + $0x1c8] sm:$0xff]
  %v1181 = vld [vmem:[#allocation3 + $0x1d0] sm:$0xff]
  %v1182 = vld [vmem:[#allocation3 + $0x1d8] sm:$0xff]
  %v1183 = vld [vmem:[#allocation3 + $0x1e0] sm:$0xff]
  %v1184 = vld [vmem:[#allocation3 + $0x1e8] sm:$0xff]
  %v1185 = vld [vmem:[#allocation3 + $0x1f0] sm:$0xff]
  %v1186 = vld [vmem:[#allocation3 + $0x1f8] sm:$0xff]
  %v1187 = vld [vmem:[#allocation3 + $0x200] sm:$0xff]
  %v1188 = vld [vmem:[#allocation3 + $0x208] sm:$0xff]
  %v1189 = vld [vmem:[#allocation3 + $0x210] sm:$0xff]
  %v1190 = vld [vmem:[#allocation3 + $0x218] sm:$0xff]
  %v1191 = vld [vmem:[#allocation3 + $0x220] sm:$0xff]
  %v1192 = vld [vmem:[#allocation3 + $0x228] sm:$0xff]
  %v1193 = vld [vmem:[#allocation3 + $0x230] sm:$0xff]
  %v1194 = vld [vmem:[#allocation3 + $0x238] sm:$0xff]
  %v1195 = vld [vmem:[%s6] sm:$0xff]
  %v1196 = vld [vmem:[%s6 + $0x8] sm:$0xff]
  %v1197 = vld [vmem:[%s6 + $0x10] sm:$0xff]
  %v1198 = vld [vmem:[%s6 + $0x18] sm:$0xff]
  %v1199 = vld [vmem:[%s6 + $0x20] sm:$0xff]
  %v1200 = vld [vmem:[%s6 + $0x28] sm:$0xff]
  %v1201 = vld [vmem:[%s6 + $0x30] sm:$0xff]
  %v1202 = vld [vmem:[%s6 + $0x38] sm:$0xff]
  %v1203 = vld [vmem:[%s6 + $0x40] sm:$0xff]
  %v1204 = vld [vmem:[%s6 + $0x48] sm:$0xff]
  %v1205 = vld [vmem:[%s6 + $0x50] sm:$0xff]
  %v1206 = vld [vmem:[%s6 + $0x58] sm:$0xff]
  %v1207 = vld [vmem:[%s6 + $0x60] sm:$0xff]
  %v1208 = vld [vmem:[%s6 + $0x68] sm:$0xff]
  %v1209 = vld [vmem:[%s6 + $0x70] sm:$0xff]
  %v1210 = vld [vmem:[%s6 + $0x78] sm:$0xff]
  %1212 = vset.pattern.permute.xlu0 0
  %1213 = vperm.xlu0 %1212, %v1195
  %v1214 = vpop.permute.xlu0 %1213
  %1217 = vset.pattern.permute.xlu0 0
  %1218 = vperm.xlu0 %1217, %v1196
  %v1219 = vpop.permute.xlu0 %1218
  %1222 = vset.pattern.permute.xlu0 0
  %1223 = vperm.xlu0 %1222, %v1197
  %v1224 = vpop.permute.xlu0 %1223
  %1227 = vset.pattern.permute.xlu0 0
  %1228 = vperm.xlu0 %1227, %v1198
  %v1229 = vpop.permute.xlu0 %1228
  %1232 = vset.pattern.permute.xlu0 0
  %1233 = vperm.xlu0 %1232, %v1199
  %v1234 = vpop.permute.xlu0 %1233
  %1237 = vset.pattern.permute.xlu0 0
  %1238 = vperm.xlu0 %1237, %v1200
  %v1239 = vpop.permute.xlu0 %1238
  %1242 = vset.pattern.permute.xlu0 0
  %1243 = vperm.xlu0 %1242, %v1201
  %v1244 = vpop.permute.xlu0 %1243
  %1247 = vset.pattern.permute.xlu0 0
  %1248 = vperm.xlu0 %1247, %v1202
  %v1249 = vpop.permute.xlu0 %1248
  %1252 = vset.pattern.permute.xlu0 0
  %1253 = vperm.xlu0 %1252, %v1203
  %v1254 = vpop.permute.xlu0 %1253
  %1257 = vset.pattern.permute.xlu0 0
  %1258 = vperm.xlu0 %1257, %v1204
  %v1259 = vpop.permute.xlu0 %1258
  %1262 = vset.pattern.permute.xlu0 0
  %1263 = vperm.xlu0 %1262, %v1205
  %v1264 = vpop.permute.xlu0 %1263
  %1267 = vset.pattern.permute.xlu0 0
  %1268 = vperm.xlu0 %1267, %v1206
  %v1269 = vpop.permute.xlu0 %1268
  %1272 = vset.pattern.permute.xlu0 0
  %1273 = vperm.xlu0 %1272, %v1207
  %v1274 = vpop.permute.xlu0 %1273
  %1277 = vset.pattern.permute.xlu0 0
  %1278 = vperm.xlu0 %1277, %v1208
  %v1279 = vpop.permute.xlu0 %1278
  %1282 = vset.pattern.permute.xlu0 0
  %1283 = vperm.xlu0 %1282, %v1209
  %v1284 = vpop.permute.xlu0 %1283
  %1287 = vset.pattern.permute.xlu0 0
  %1288 = vperm.xlu0 %1287, %v1210
  %v1289 = vpop.permute.xlu0 %1288
  %vm1291 = vcmask 523264
  %v1293 = vsel %vm1291, %v1047, 0
  %v1296 = vsel %vm1291, %v1052, 0
  %v1299 = vsel %vm1291, %v1057, 0
  %v1302 = vsel %vm1291, %v1062, 0
  %v1305 = vsel %vm1291, %v1067, 0
  %v1308 = vsel %vm1291, %v1072, 0
  %v1311 = vsel %vm1291, %v1077, 0
  %v1314 = vsel %vm1291, %v1082, 0
  %v1317 = vsel %vm1291, %v1087, 0
  %v1320 = vsel %vm1291, %v1092, 0
  %v1323 = vsel %vm1291, %v1097, 0
  %v1326 = vsel %vm1291, %v1102, 0
  %v1329 = vsel %vm1291, %v1107, 0
  %v1332 = vsel %vm1291, %v1112, 0
  %v1335 = vsel %vm1291, %v1117, 0
  %v1338 = vsel %vm1291, %v1122, 0
  %1340 = vmatprep.subr.mxu0 0.0
  %1341 = vmatpush1.msra.mxu0 %v1138
  %1342 = vmatprep.subr.mxu0 0.0
  %1343 = vmatpush1.msra.mxu0 %v1137
  %1344 = vmatprep.subr.mxu0 0.0
  %1345 = vmatpush1.msra.mxu0 %v1136
  %1346 = vmatprep.subr.mxu0 0.0
  %1347 = vmatpush1.msra.mxu0 %v1135
  %1348 = vmatprep.subr.mxu0 0.0
  %1349 = vmatpush1.msra.mxu0 %v1134
  %1350 = vmatprep.subr.mxu0 0.0
  %1351 = vmatpush1.msra.mxu0 %v1133
  %1352 = vmatprep.subr.mxu0 0.0
  %1353 = vmatpush1.msra.mxu0 %v1132
  %1354 = vmatprep.subr.mxu0 0.0
  %1355 = vmatpush1.msra.mxu0 %v1131
  %1356 = vmatprep.subr.mxu0 0.0
  %1357 = vmatpush1.msra.mxu0 %v1130
  %1358 = vmatprep.subr.mxu0 0.0
  %1359 = vmatpush1.msra.mxu0 %v1129
  %1360 = vmatprep.subr.mxu0 0.0
  %1361 = vmatpush1.msra.mxu0 %v1128
  %1362 = vmatprep.subr.mxu0 0.0
  %1363 = vmatpush1.msra.mxu0 %v1127
  %1364 = vmatprep.subr.mxu0 0.0
  %1365 = vmatpush1.msra.mxu0 %v1126
  %1366 = vmatprep.subr.mxu0 0.0
  %1367 = vmatpush1.msra.mxu0 %v1125
  %1368 = vmatprep.subr.mxu0 0.0
  %1369 = vmatpush1.msra.mxu0 %v1124
  %1370 = vmatprep.subr.mxu0 0.0
  %1371 = vmatpush1.msra.mxu0 %v1123
  %1372 = vmatprep.subr.mxu0 0.0
  %1373 = vmatpush2.msra.mxu0 %v1154
  %1374 = vmatprep.subr.mxu0 0.0
  %1375 = vmatpush2.msra.mxu0 %v1153
  %1376 = vmatprep.subr.mxu0 0.0
  %1377 = vmatpush2.msra.mxu0 %v1152
  %1378 = vmatprep.subr.mxu0 0.0
  %1379 = vmatpush2.msra.mxu0 %v1151
  %1380 = vmatprep.subr.mxu0 0.0
  %1381 = vmatpush2.msra.mxu0 %v1150
  %1382 = vmatprep.subr.mxu0 0.0
  %1383 = vmatpush2.msra.mxu0 %v1149
  %1384 = vmatprep.subr.mxu0 0.0
  %1385 = vmatpush2.msra.mxu0 %v1148
  %1386 = vmatprep.subr.mxu0 0.0
  %1387 = vmatpush2.msra.mxu0 %v1147
  %1388 = vmatprep.subr.mxu0 0.0
  %1389 = vmatpush2.msra.mxu0 %v1146
  %1390 = vmatprep.subr.mxu0 0.0
  %1391 = vmatpush2.msra.mxu0 %v1145
  %1392 = vmatprep.subr.mxu0 0.0
  %1393 = vmatpush2.msra.mxu0 %v1144
  %1394 = vmatprep.subr.mxu0 0.0
  %1395 = vmatpush2.msra.mxu0 %v1143
  %1396 = vmatprep.subr.mxu0 0.0
  %1397 = vmatpush2.msra.mxu0 %v1142
  %1398 = vmatprep.subr.mxu0 0.0
  %1399 = vmatpush2.msra.mxu0 %v1141
  %1400 = vmatprep.subr.mxu0 0.0
  %1401 = vmatpush2.msra.mxu0 %v1140
  %1402 = vmatprep.subr.mxu0 0.0
  %1403 = vmatpush2.msra.mxu0 %v1139
  %1404 = vmatprep.mubr.f32.mxu0 %v1044
  %1405 = vmatmul.mubr.f32.gmra.mxu0 %v1043
  %v1406 = vpop.f32.mrf.mxu0
  %v1407 = vadd.f32 %v1214, %v1406
  %v1408 = vpop.f32.mrf.mxu0
  %1409 = vmatprep.mubr.f32.mxu0 %v1049
  %1410 = vmatmul.mubr.f32.gmra.mxu0 %v1048
  %v1411 = vpop.f32.mrf.mxu0
  %v1412 = vadd.f32 %v1219, %v1411
  %v1413 = vpop.f32.mrf.mxu0
  %1414 = vmatprep.mubr.f32.mxu0 %v1054
  %1415 = vmatmul.mubr.f32.gmra.mxu0 %v1053
  %v1416 = vpop.f32.mrf.mxu0
  %v1417 = vadd.f32 %v1224, %v1416
  %v1418 = vpop.f32.mrf.mxu0
  %1419 = vmatprep.mubr.f32.mxu0 %v1059
  %1420 = vmatmul.mubr.f32.gmra.mxu0 %v1058
  %v1421 = vpop.f32.mrf.mxu0
  %v1422 = vadd.f32 %v1229, %v1421
  %v1423 = vpop.f32.mrf.mxu0
  %1424 = vmatprep.mubr.f32.mxu0 %v1064
  %1425 = vmatmul.mubr.f32.gmra.mxu0 %v1063
  %v1426 = vpop.f32.mrf.mxu0
  %v1427 = vadd.f32 %v1234, %v1426
  %v1428 = vpop.f32.mrf.mxu0
  %1429 = vmatprep.mubr.f32.mxu0 %v1069
  %1430 = vmatmul.mubr.f32.gmra.mxu0 %v1068
  %v1431 = vpop.f32.mrf.mxu0
  %v1432 = vadd.f32 %v1239, %v1431
  %v1433 = vpop.f32.mrf.mxu0
  %1434 = vmatprep.mubr.f32.mxu0 %v1074
  %1435 = vmatmul.mubr.f32.gmra.mxu0 %v1073
  %v1436 = vpop.f32.mrf.mxu0
  %v1437 = vadd.f32 %v1244, %v1436
  %v1438 = vpop.f32.mrf.mxu0
  %1439 = vmatprep.mubr.f32.mxu0 %v1079
  %1440 = vmatmul.mubr.f32.gmra.mxu0 %v1078
  %v1441 = vpop.f32.mrf.mxu0
  %v1442 = vadd.f32 %v1249, %v1441
  %v1443 = vpop.f32.mrf.mxu0
  %1444 = vmatprep.mubr.f32.mxu0 %v1084
  %1445 = vmatmul.mubr.f32.gmra.mxu0 %v1083
  %v1446 = vpop.f32.mrf.mxu0
  %v1447 = vadd.f32 %v1254, %v1446
  %v1448 = vpop.f32.mrf.mxu0
  %1449 = vmatprep.mubr.f32.mxu0 %v1089
  %1450 = vmatmul.mubr.f32.gmra.mxu0 %v1088
  %v1451 = vpop.f32.mrf.mxu0
  %v1452 = vadd.f32 %v1259, %v1451
  %v1453 = vpop.f32.mrf.mxu0
  %1454 = vmatprep.mubr.f32.mxu0 %v1094
  %1455 = vmatmul.mubr.f32.gmra.mxu0 %v1093
  %v1456 = vpop.f32.mrf.mxu0
  %v1457 = vadd.f32 %v1264, %v1456
  %v1458 = vpop.f32.mrf.mxu0
  %1459 = vmatprep.mubr.f32.mxu0 %v1099
  %1460 = vmatmul.mubr.f32.gmra.mxu0 %v1098
  %v1461 = vpop.f32.mrf.mxu0
  %v1462 = vadd.f32 %v1269, %v1461
  %v1463 = vpop.f32.mrf.mxu0
  %1464 = vmatprep.mubr.f32.mxu0 %v1104
  %1465 = vmatmul.mubr.f32.gmra.mxu0 %v1103
  %v1466 = vpop.f32.mrf.mxu0
  %v1467 = vadd.f32 %v1274, %v1466
  %v1468 = vpop.f32.mrf.mxu0
  %1469 = vmatprep.mubr.f32.mxu0 %v1109
  %1470 = vmatmul.mubr.f32.gmra.mxu0 %v1108
  %v1471 = vpop.f32.mrf.mxu0
  %v1472 = vadd.f32 %v1279, %v1471
  %v1473 = vpop.f32.mrf.mxu0
  %1474 = vmatprep.mubr.f32.mxu0 %v1114
  %1475 = vmatmul.mubr.f32.gmra.mxu0 %v1113
  %v1476 = vpop.f32.mrf.mxu0
  %v1477 = vadd.f32 %v1284, %v1476
  %v1478 = vpop.f32.mrf.mxu0
  %1479 = vmatprep.mubr.f32.mxu0 %v1119
  %1480 = vmatmul.mubr.f32.gmra.mxu0 %v1118
  %v1481 = vpop.f32.mrf.mxu0
  %v1482 = vadd.f32 %v1289, %v1481
  %v1483 = vpop.f32.mrf.mxu0
  %1484 = vdwg.mxu0
  %1485 = vmatprep.subr.mxu0 0.0
  %1486 = vmatpush1.msra.mxu0 %v1170
  %1487 = vmatprep.subr.mxu0 0.0
  %1488 = vmatpush1.msra.mxu0 %v1169
  %1489 = vmatprep.subr.mxu0 0.0
  %1490 = vmatpush1.msra.mxu0 %v1168
  %1491 = vmatprep.subr.mxu0 0.0
  %1492 = vmatpush1.msra.mxu0 %v1167
  %1493 = vmatprep.subr.mxu0 0.0
  %1494 = vmatpush1.msra.mxu0 %v1166
  %1495 = vmatprep.subr.mxu0 0.0
  %1496 = vmatpush1.msra.mxu0 %v1165
  %1497 = vmatprep.subr.mxu0 0.0
  %1498 = vmatpush1.msra.mxu0 %v1164
  %1499 = vmatprep.subr.mxu0 0.0
  %1500 = vmatpush1.msra.mxu0 %v1163
  %1501 = vmatprep.subr.mxu0 0.0
  %1502 = vmatpush1.msra.mxu0 %v1162
  %1503 = vmatprep.subr.mxu0 0.0
  %1504 = vmatpush1.msra.mxu0 %v1161
  %1505 = vmatprep.subr.mxu0 0.0
  %1506 = vmatpush1.msra.mxu0 %v1160
  %1507 = vmatprep.subr.mxu0 0.0
  %1508 = vmatpush1.msra.mxu0 %v1159
  %1509 = vmatprep.subr.mxu0 0.0
  %1510 = vmatpush1.msra.mxu0 %v1158
  %1511 = vmatprep.subr.mxu0 0.0
  %1512 = vmatpush1.msra.mxu0 %v1157
  %1513 = vmatprep.subr.mxu0 0.0
  %1514 = vmatpush1.msra.mxu0 %v1156
  %1515 = vmatprep.subr.mxu0 0.0
  %1516 = vmatpush1.msra.mxu0 %v1155
  %1517 = vmatprep.subr.mxu0 0.0
  %1518 = vmatpush2.msra.mxu0 %v1186
  %1519 = vmatprep.subr.mxu0 0.0
  %1520 = vmatpush2.msra.mxu0 %v1185
  %1521 = vmatprep.subr.mxu0 0.0
  %1522 = vmatpush2.msra.mxu0 %v1184
  %1523 = vmatprep.subr.mxu0 0.0
  %1524 = vmatpush2.msra.mxu0 %v1183
  %1525 = vmatprep.subr.mxu0 0.0
  %1526 = vmatpush2.msra.mxu0 %v1182
  %1527 = vmatprep.subr.mxu0 0.0
  %1528 = vmatpush2.msra.mxu0 %v1181
  %1529 = vmatprep.subr.mxu0 0.0
  %1530 = vmatpush2.msra.mxu0 %v1180
  %1531 = vmatprep.subr.mxu0 0.0
  %1532 = vmatpush2.msra.mxu0 %v1179
  %1533 = vmatprep.subr.mxu0 0.0
  %1534 = vmatpush2.msra.mxu0 %v1178
  %1535 = vmatprep.subr.mxu0 0.0
  %1536 = vmatpush2.msra.mxu0 %v1177
  %1537 = vmatprep.subr.mxu0 0.0
  %1538 = vmatpush2.msra.mxu0 %v1176
  %1539 = vmatprep.subr.mxu0 0.0
  %1540 = vmatpush2.msra.mxu0 %v1175
  %1541 = vmatprep.subr.mxu0 0.0
  %1542 = vmatpush2.msra.mxu0 %v1174
  %1543 = vmatprep.subr.mxu0 0.0
  %1544 = vmatpush2.msra.mxu0 %v1173
  %1545 = vmatprep.subr.mxu0 0.0
  %1546 = vmatpush2.msra.mxu0 %v1172
  %1547 = vmatprep.subr.mxu0 0.0
  %1548 = vmatpush2.msra.mxu0 %v1171
  %1549 = vmatprep.mubr.f32.mxu0 %v1046
  %1550 = vmatmul.mubr.f32.gmra.mxu0 %v1045
  %v1551 = vpop.f32.mrf.mxu0
  %v1552 = vadd.f32 %v1407, %v1551
  %v1553 = vpop.f32.mrf.mxu0
  %1554 = vmatprep.mubr.f32.mxu0 %v1051
  %1555 = vmatmul.mubr.f32.gmra.mxu0 %v1050
  %v1556 = vpop.f32.mrf.mxu0
  %v1557 = vadd.f32 %v1412, %v1556
  %v1558 = vpop.f32.mrf.mxu0
  %1559 = vmatprep.mubr.f32.mxu0 %v1056
  %1560 = vmatmul.mubr.f32.gmra.mxu0 %v1055
  %v1561 = vpop.f32.mrf.mxu0
  %v1562 = vadd.f32 %v1417, %v1561
  %v1563 = vpop.f32.mrf.mxu0
  %1564 = vmatprep.mubr.f32.mxu0 %v1061
  %1565 = vmatmul.mubr.f32.gmra.mxu0 %v1060
  %v1566 = vpop.f32.mrf.mxu0
  %v1567 = vadd.f32 %v1422, %v1566
  %v1568 = vpop.f32.mrf.mxu0
  %1569 = vmatprep.mubr.f32.mxu0 %v1066
  %1570 = vmatmul.mubr.f32.gmra.mxu0 %v1065
  %v1571 = vpop.f32.mrf.mxu0
  %v1572 = vadd.f32 %v1427, %v1571
  %v1573 = vpop.f32.mrf.mxu0
  %1574 = vmatprep.mubr.f32.mxu0 %v1071
  %1575 = vmatmul.mubr.f32.gmra.mxu0 %v1070
  %v1576 = vpop.f32.mrf.mxu0
  %v1577 = vadd.f32 %v1432, %v1576
  %v1578 = vpop.f32.mrf.mxu0
  %1579 = vmatprep.mubr.f32.mxu0 %v1076
  %1580 = vmatmul.mubr.f32.gmra.mxu0 %v1075
  %v1581 = vpop.f32.mrf.mxu0
  %v1582 = vadd.f32 %v1437, %v1581
  %v1583 = vpop.f32.mrf.mxu0
  %1584 = vmatprep.mubr.f32.mxu0 %v1081
  %1585 = vmatmul.mubr.f32.gmra.mxu0 %v1080
  %v1586 = vpop.f32.mrf.mxu0
  %v1587 = vadd.f32 %v1442, %v1586
  %v1588 = vpop.f32.mrf.mxu0
  %1589 = vmatprep.mubr.f32.mxu0 %v1086
  %1590 = vmatmul.mubr.f32.gmra.mxu0 %v1085
  %v1591 = vpop.f32.mrf.mxu0
  %v1592 = vadd.f32 %v1447, %v1591
  %v1593 = vpop.f32.mrf.mxu0
  %1594 = vmatprep.mubr.f32.mxu0 %v1091
  %1595 = vmatmul.mubr.f32.gmra.mxu0 %v1090
  %v1596 = vpop.f32.mrf.mxu0
  %v1597 = vadd.f32 %v1452, %v1596
  %v1598 = vpop.f32.mrf.mxu0
  %1599 = vmatprep.mubr.f32.mxu0 %v1096
  %1600 = vmatmul.mubr.f32.gmra.mxu0 %v1095
  %v1601 = vpop.f32.mrf.mxu0
  %v1602 = vadd.f32 %v1457, %v1601
  %v1603 = vpop.f32.mrf.mxu0
  %1604 = vmatprep.mubr.f32.mxu0 %v1101
  %1605 = vmatmul.mubr.f32.gmra.mxu0 %v1100
  %v1606 = vpop.f32.mrf.mxu0
  %v1607 = vadd.f32 %v1462, %v1606
  %v1608 = vpop.f32.mrf.mxu0
  %1609 = vmatprep.mubr.f32.mxu0 %v1106
  %1610 = vmatmul.mubr.f32.gmra.mxu0 %v1105
  %v1611 = vpop.f32.mrf.mxu0
  %v1612 = vadd.f32 %v1467, %v1611
  %v1613 = vpop.f32.mrf.mxu0
  %1614 = vmatprep.mubr.f32.mxu0 %v1111
  %1615 = vmatmul.mubr.f32.gmra.mxu0 %v1110
  %v1616 = vpop.f32.mrf.mxu0
  %v1617 = vadd.f32 %v1472, %v1616
  %v1618 = vpop.f32.mrf.mxu0
  %1619 = vmatprep.mubr.f32.mxu0 %v1116
  %1620 = vmatmul.mubr.f32.gmra.mxu0 %v1115
  %v1621 = vpop.f32.mrf.mxu0
  %v1622 = vadd.f32 %v1477, %v1621
  %v1623 = vpop.f32.mrf.mxu0
  %1624 = vmatprep.mubr.f32.mxu0 %v1121
  %1625 = vmatmul.mubr.f32.gmra.mxu0 %v1120
  %v1626 = vpop.f32.mrf.mxu0
  %v1627 = vadd.f32 %v1482, %v1626
  %v1628 = vpop.f32.mrf.mxu0
  %1629 = vdwg.mxu0
  %1630 = vmatprep.subr.mxu0 0.0
  %1631 = vmatpush1.msra.mxu0 0.0
  %1632 = vmatprep.subr.mxu0 0.0
  %1633 = vmatpush1.msra.mxu0 0.0
  %1634 = vmatprep.subr.mxu0 0.0
  %1635 = vmatpush1.msra.mxu0 0.0
  %1636 = vmatprep.subr.mxu0 0.0
  %1637 = vmatpush1.msra.mxu0 0.0
  %1638 = vmatprep.subr.mxu0 0.0
  %1639 = vmatpush1.msra.mxu0 0.0
  %1640 = vmatprep.subr.mxu0 0.0
  %1641 = vmatpush1.msra.mxu0 0.0
  %1642 = vmatprep.subr.mxu0 0.0
  %1643 = vmatpush1.msra.mxu0 0.0
  %1644 = vmatprep.subr.mxu0 0.0
  %1645 = vmatpush1.msra.mxu0 0.0
  %1646 = vmatprep.subr.mxu0 0.0
  %1647 = vmatpush1.msra.mxu0 %v1194
  %1648 = vmatprep.subr.mxu0 0.0
  %1649 = vmatpush1.msra.mxu0 %v1193
  %1650 = vmatprep.subr.mxu0 0.0
  %1651 = vmatpush1.msra.mxu0 %v1192
  %1652 = vmatprep.subr.mxu0 0.0
  %1653 = vmatpush1.msra.mxu0 %v1191
  %1654 = vmatprep.subr.mxu0 0.0
  %1655 = vmatpush1.msra.mxu0 %v1190
  %1656 = vmatprep.subr.mxu0 0.0
  %1657 = vmatpush1.msra.mxu0 %v1189
  %1658 = vmatprep.subr.mxu0 0.0
  %1659 = vmatpush1.msra.mxu0 %v1188
  %1660 = vmatprep.subr.mxu0 0.0
  %1661 = vmatpush1.msra.mxu0 %v1187
  %1662 = vmatprep.subr.mxu0 0.0
  %1663 = vmatpush2.msra.mxu0 0.0
  %1664 = vmatprep.subr.mxu0 0.0
  %1665 = vmatpush2.msra.mxu0 0.0
  %1666 = vmatprep.subr.mxu0 0.0
  %1667 = vmatpush2.msra.mxu0 0.0
  %1668 = vmatprep.subr.mxu0 0.0
  %1669 = vmatpush2.msra.mxu0 0.0
  %1670 = vmatprep.subr.mxu0 0.0
  %1671 = vmatpush2.msra.mxu0 0.0
  %1672 = vmatprep.subr.mxu0 0.0
  %1673 = vmatpush2.msra.mxu0 0.0
  %1674 = vmatprep.subr.mxu0 0.0
  %1675 = vmatpush2.msra.mxu0 0.0
  %1676 = vmatprep.subr.mxu0 0.0
  %1677 = vmatpush2.msra.mxu0 0.0
  %1678 = vmatprep.subr.mxu0 0.0
  %1679 = vmatpush2.msra.mxu0 0.0
  %1680 = vmatprep.subr.mxu0 0.0
  %1681 = vmatpush2.msra.mxu0 0.0
  %1682 = vmatprep.subr.mxu0 0.0
  %1683 = vmatpush2.msra.mxu0 0.0
  %1684 = vmatprep.subr.mxu0 0.0
  %1685 = vmatpush2.msra.mxu0 0.0
  %1686 = vmatprep.subr.mxu0 0.0
  %1687 = vmatpush2.msra.mxu0 0.0
  %1688 = vmatprep.subr.mxu0 0.0
  %1689 = vmatpush2.msra.mxu0 0.0
  %1690 = vmatprep.subr.mxu0 0.0
  %1691 = vmatpush2.msra.mxu0 0.0
  %1692 = vmatprep.subr.mxu0 0.0
  %1693 = vmatpush2.msra.mxu0 0.0
  %1694 = vmatprep.mubr.f32.mxu0 0.0
  %1695 = vmatmul.mubr.f32.gmra.mxu0 %v1293
  %v1696 = vpop.f32.mrf.mxu0
  %v1697 = vadd.f32 %v1552, %v1696
  %v1698 = vpop.f32.mrf.mxu0
  %1699 = vmatprep.mubr.f32.mxu0 0.0
  %1700 = vmatmul.mubr.f32.gmra.mxu0 %v1296
  %v1701 = vpop.f32.mrf.mxu0
  %v1702 = vadd.f32 %v1557, %v1701
  %v1703 = vpop.f32.mrf.mxu0
  %1704 = vmatprep.mubr.f32.mxu0 0.0
  %1705 = vmatmul.mubr.f32.gmra.mxu0 %v1299
  %v1706 = vpop.f32.mrf.mxu0
  %v1707 = vadd.f32 %v1562, %v1706
  %v1708 = vpop.f32.mrf.mxu0
  %1709 = vmatprep.mubr.f32.mxu0 0.0
  %1710 = vmatmul.mubr.f32.gmra.mxu0 %v1302
  %v1711 = vpop.f32.mrf.mxu0
  %v1712 = vadd.f32 %v1567, %v1711
  %v1713 = vpop.f32.mrf.mxu0
  %1714 = vmatprep.mubr.f32.mxu0 0.0
  %1715 = vmatmul.mubr.f32.gmra.mxu0 %v1305
  %v1716 = vpop.f32.mrf.mxu0
  %v1717 = vadd.f32 %v1572, %v1716
  %v1718 = vpop.f32.mrf.mxu0
  %1719 = vmatprep.mubr.f32.mxu0 0.0
  %1720 = vmatmul.mubr.f32.gmra.mxu0 %v1308
  %v1721 = vpop.f32.mrf.mxu0
  %v1722 = vadd.f32 %v1577, %v1721
  %v1723 = vpop.f32.mrf.mxu0
  %1724 = vmatprep.mubr.f32.mxu0 0.0
  %1725 = vmatmul.mubr.f32.gmra.mxu0 %v1311
  %v1726 = vpop.f32.mrf.mxu0
  %v1727 = vadd.f32 %v1582, %v1726
  %v1728 = vpop.f32.mrf.mxu0
  %1729 = vmatprep.mubr.f32.mxu0 0.0
  %1730 = vmatmul.mubr.f32.gmra.mxu0 %v1314
  %v1731 = vpop.f32.mrf.mxu0
  %v1732 = vadd.f32 %v1587, %v1731
  %v1733 = vpop.f32.mrf.mxu0
  %1734 = vmatprep.mubr.f32.mxu0 0.0
  %1735 = vmatmul.mubr.f32.gmra.mxu0 %v1317
  %v1736 = vpop.f32.mrf.mxu0
  %v1737 = vadd.f32 %v1592, %v1736
  %v1738 = vpop.f32.mrf.mxu0
  %1739 = vmatprep.mubr.f32.mxu0 0.0
  %1740 = vmatmul.mubr.f32.gmra.mxu0 %v1320
  %v1741 = vpop.f32.mrf.mxu0
  %v1742 = vadd.f32 %v1597, %v1741
  %v1743 = vpop.f32.mrf.mxu0
  %1744 = vmatprep.mubr.f32.mxu0 0.0
  %1745 = vmatmul.mubr.f32.gmra.mxu0 %v1323
  %v1746 = vpop.f32.mrf.mxu0
  %v1747 = vadd.f32 %v1602, %v1746
  %v1748 = vpop.f32.mrf.mxu0
  %1749 = vmatprep.mubr.f32.mxu0 0.0
  %1750 = vmatmul.mubr.f32.gmra.mxu0 %v1326
  %v1751 = vpop.f32.mrf.mxu0
  %v1752 = vadd.f32 %v1607, %v1751
  %v1753 = vpop.f32.mrf.mxu0
  %1754 = vmatprep.mubr.f32.mxu0 0.0
  %1755 = vmatmul.mubr.f32.gmra.mxu0 %v1329
  %v1756 = vpop.f32.mrf.mxu0
  %v1757 = vadd.f32 %v1612, %v1756
  %v1758 = vpop.f32.mrf.mxu0
  %1759 = vmatprep.mubr.f32.mxu0 0.0
  %1760 = vmatmul.mubr.f32.gmra.mxu0 %v1332
  %v1761 = vpop.f32.mrf.mxu0
  %v1762 = vadd.f32 %v1617, %v1761
  %v1763 = vpop.f32.mrf.mxu0
  %1764 = vmatprep.mubr.f32.mxu0 0.0
  %1765 = vmatmul.mubr.f32.gmra.mxu0 %v1335
  %v1766 = vpop.f32.mrf.mxu0
  %v1767 = vadd.f32 %v1622, %v1766
  %v1768 = vpop.f32.mrf.mxu0
  %1769 = vmatprep.mubr.f32.mxu0 0.0
  %1770 = vmatmul.mubr.f32.gmra.mxu0 %v1338
  %v1771 = vpop.f32.mrf.mxu0
  %v1772 = vadd.f32 %v1627, %v1771
  %v1773 = vpop.f32.mrf.mxu0
  %1774 = vdwg.mxu0
  %v1775 = vmax.f32 %v1697, 0.0
  %v1776 = vmax.f32 %v1702, 0.0
  %v1777 = vmax.f32 %v1707, 0.0
  %v1778 = vmax.f32 %v1712, 0.0
  %v1779 = vmax.f32 %v1717, 0.0
  %v1780 = vmax.f32 %v1722, 0.0
  %v1781 = vmax.f32 %v1727, 0.0
  %v1782 = vmax.f32 %v1732, 0.0
  %v1783 = vmax.f32 %v1737, 0.0
  %v1784 = vmax.f32 %v1742, 0.0
  %v1785 = vmax.f32 %v1747, 0.0
  %v1786 = vmax.f32 %v1752, 0.0
  %v1787 = vmax.f32 %v1757, 0.0
  %v1788 = vmax.f32 %v1762, 0.0
  %v1789 = vmax.f32 %v1767, 0.0
  %v1790 = vmax.f32 %v1772, 0.0
  %1791 = vrot.lane.b32.xlu0 %v1775, 9
  %v1792 = vpop.permute.xlu0 %1791
  %1793 = vrot.lane.b32.xlu0 %v1776, 9
  %v1794 = vpop.permute.xlu0 %1793
  %1795 = vrot.lane.b32.xlu0 %v1777, 9
  %v1796 = vpop.permute.xlu0 %1795
  %1797 = vrot.lane.b32.xlu0 %v1778, 9
  %v1798 = vpop.permute.xlu0 %1797
  %1799 = vrot.lane.b32.xlu0 %v1779, 9
  %v1800 = vpop.permute.xlu0 %1799
  %1801 = vrot.lane.b32.xlu0 %v1780, 9
  %v1802 = vpop.permute.xlu0 %1801
  %1803 = vrot.lane.b32.xlu0 %v1781, 9
  %v1804 = vpop.permute.xlu0 %1803
  %1805 = vrot.lane.b32.xlu0 %v1782, 9
  %v1806 = vpop.permute.xlu0 %1805
  %1807 = vrot.lane.b32.xlu0 %v1783, 9
  %v1808 = vpop.permute.xlu0 %1807
  %1809 = vrot.lane.b32.xlu0 %v1784, 9
  %v1810 = vpop.permute.xlu0 %1809
  %1811 = vrot.lane.b32.xlu0 %v1785, 9
  %v1812 = vpop.permute.xlu0 %1811
  %1813 = vrot.lane.b32.xlu0 %v1786, 9
  %v1814 = vpop.permute.xlu0 %1813
  %1815 = vrot.lane.b32.xlu0 %v1787, 9
  %v1816 = vpop.permute.xlu0 %1815
  %1817 = vrot.lane.b32.xlu0 %v1788, 9
  %v1818 = vpop.permute.xlu0 %1817
  %1819 = vrot.lane.b32.xlu0 %v1789, 9
  %v1820 = vpop.permute.xlu0 %1819
  %1821 = vrot.lane.b32.xlu0 %v1790, 9
  %v1822 = vpop.permute.xlu0 %1821
  %v1823 = vld [vmem:[%s1] sm:$0x1]
  %v1824 = vlaneseq
  %v1825 = vshrl.u32 %v1824, 7
  %v1826 = vsub.s32 0, %v1825
  %v1827 = vrot.slane %v1823, %v1826
  %v1828 = vmul.f32 %v1792, %v1827
  %v1829 = vmul.f32 %v1794, %v1827
  %v1830 = vmul.f32 %v1796, %v1827
  %v1831 = vmul.f32 %v1798, %v1827
  %v1832 = vmul.f32 %v1800, %v1827
  %v1833 = vmul.f32 %v1802, %v1827
  %v1834 = vmul.f32 %v1804, %v1827
  %v1835 = vmul.f32 %v1806, %v1827
  %v1836 = vmul.f32 %v1808, %v1827
  %v1837 = vmul.f32 %v1810, %v1827
  %v1838 = vmul.f32 %v1812, %v1827
  %v1839 = vmul.f32 %v1814, %v1827
  %v1840 = vmul.f32 %v1816, %v1827
  %v1841 = vmul.f32 %v1818, %v1827
  %v1842 = vmul.f32 %v1820, %v1827
  %v1843 = vmul.f32 %v1822, %v1827
  %1844 = vst [vmem:[#allocation3] sm:$0xff] %v1828
  %1845 = vst [vmem:[#allocation3 + $0x8] sm:$0xff] %v1829
  %1846 = vst [vmem:[#allocation3 + $0x10] sm:$0xff] %v1830
  %1847 = vst [vmem:[#allocation3 + $0x18] sm:$0xff] %v1831
  %1848 = vst [vmem:[#allocation3 + $0x20] sm:$0xff] %v1832
  %1849 = vst [vmem:[#allocation3 + $0x28] sm:$0xff] %v1833
  %1850 = vst [vmem:[#allocation3 + $0x30] sm:$0xff] %v1834
  %1851 = vst [vmem:[#allocation3 + $0x38] sm:$0xff] %v1835
  %1852 = vst [vmem:[#allocation3 + $0x40] sm:$0xff] %v1836
  %1853 = vst [vmem:[#allocation3 + $0x48] sm:$0xff] %v1837
  %1854 = vst [vmem:[#allocation3 + $0x50] sm:$0xff] %v1838
  %1855 = vst [vmem:[#allocation3 + $0x58] sm:$0xff] %v1839
  %1856 = vst [vmem:[#allocation3 + $0x60] sm:$0xff] %v1840
  %1857 = vst [vmem:[#allocation3 + $0x68] sm:$0xff] %v1841
  %1858 = vst [vmem:[#allocation3 + $0x70] sm:$0xff] %v1842
  %1859 = vst [vmem:[#allocation3 + $0x78] sm:$0xff] %v1843
  %1860 = vrot.lane.b32.xlu0 %v1775, 8
  %v1861 = vpop.permute.xlu0 %1860
  %1862 = vrot.lane.b32.xlu0 %v1776, 8
  %v1863 = vpop.permute.xlu0 %1862
  %1864 = vrot.lane.b32.xlu0 %v1777, 8
  %v1865 = vpop.permute.xlu0 %1864
  %1866 = vrot.lane.b32.xlu0 %v1778, 8
  %v1867 = vpop.permute.xlu0 %1866
  %1868 = vrot.lane.b32.xlu0 %v1779, 8
  %v1869 = vpop.permute.xlu0 %1868
  %1870 = vrot.lane.b32.xlu0 %v1780, 8
  %v1871 = vpop.permute.xlu0 %1870
  %1872 = vrot.lane.b32.xlu0 %v1781, 8
  %v1873 = vpop.permute.xlu0 %1872
  %1874 = vrot.lane.b32.xlu0 %v1782, 8
  %v1875 = vpop.permute.xlu0 %1874
  %1876 = vrot.lane.b32.xlu0 %v1783, 8
  %v1877 = vpop.permute.xlu0 %1876
  %1878 = vrot.lane.b32.xlu0 %v1784, 8
  %v1879 = vpop.permute.xlu0 %1878
  %1880 = vrot.lane.b32.xlu0 %v1785, 8
  %v1881 = vpop.permute.xlu0 %1880
  %1882 = vrot.lane.b32.xlu0 %v1786, 8
  %v1883 = vpop.permute.xlu0 %1882
  %1884 = vrot.lane.b32.xlu0 %v1787, 8
  %v1885 = vpop.permute.xlu0 %1884
  %1886 = vrot.lane.b32.xlu0 %v1788, 8
  %v1887 = vpop.permute.xlu0 %1886
  %1888 = vrot.lane.b32.xlu0 %v1789, 8
  %v1889 = vpop.permute.xlu0 %1888
  %1890 = vrot.lane.b32.xlu0 %v1790, 8
  %v1891 = vpop.permute.xlu0 %1890
  %v1892 = vld [vmem:[%s1 + $0x1] sm:$0x1]
  %v1893 = vlaneseq
  %v1894 = vshrl.u32 %v1893, 7
  %v1895 = vsub.s32 0, %v1894
  %v1896 = vrot.slane %v1892, %v1895
  %v1897 = vmul.f32 %v1861, %v1896
  %v1898 = vmul.f32 %v1863, %v1896
  %v1899 = vmul.f32 %v1865, %v1896
  %v1900 = vmul.f32 %v1867, %v1896
  %v1901 = vmul.f32 %v1869, %v1896
  %v1902 = vmul.f32 %v1871, %v1896
  %v1903 = vmul.f32 %v1873, %v1896
  %v1904 = vmul.f32 %v1875, %v1896
  %v1905 = vmul.f32 %v1877, %v1896
  %v1906 = vmul.f32 %v1879, %v1896
  %v1907 = vmul.f32 %v1881, %v1896
  %v1908 = vmul.f32 %v1883, %v1896
  %v1909 = vmul.f32 %v1885, %v1896
  %v1910 = vmul.f32 %v1887, %v1896
  %v1911 = vmul.f32 %v1889, %v1896
  %v1912 = vmul.f32 %v1891, %v1896
  %1913 = vst [vmem:[#allocation3 + $0x80] sm:$0xff] %v1897
  %1914 = vst [vmem:[#allocation3 + $0x88] sm:$0xff] %v1898
  %1915 = vst [vmem:[#allocation3 + $0x90] sm:$0xff] %v1899
  %1916 = vst [vmem:[#allocation3 + $0x98] sm:$0xff] %v1900
  %1917 = vst [vmem:[#allocation3 + $0xa0] sm:$0xff] %v1901
  %1918 = vst [vmem:[#allocation3 + $0xa8] sm:$0xff] %v1902
  %1919 = vst [vmem:[#allocation3 + $0xb0] sm:$0xff] %v1903
  %1920 = vst [vmem:[#allocation3 + $0xb8] sm:$0xff] %v1904
  %1921 = vst [vmem:[#allocation3 + $0xc0] sm:$0xff] %v1905
  %1922 = vst [vmem:[#allocation3 + $0xc8] sm:$0xff] %v1906
  %1923 = vst [vmem:[#allocation3 + $0xd0] sm:$0xff] %v1907
  %1924 = vst [vmem:[#allocation3 + $0xd8] sm:$0xff] %v1908
  %1925 = vst [vmem:[#allocation3 + $0xe0] sm:$0xff] %v1909
  %1926 = vst [vmem:[#allocation3 + $0xe8] sm:$0xff] %v1910
  %1927 = vst [vmem:[#allocation3 + $0xf0] sm:$0xff] %v1911
  %1928 = vst [vmem:[#allocation3 + $0xf8] sm:$0xff] %v1912
  %1929 = vrot.lane.b32.xlu0 %v1775, 7
  %v1930 = vpop.permute.xlu0 %1929
  %1931 = vrot.lane.b32.xlu0 %v1776, 7
  %v1932 = vpop.permute.xlu0 %1931
  %1933 = vrot.lane.b32.xlu0 %v1777, 7
  %v1934 = vpop.permute.xlu0 %1933
  %1935 = vrot.lane.b32.xlu0 %v1778, 7
  %v1936 = vpop.permute.xlu0 %1935
  %1937 = vrot.lane.b32.xlu0 %v1779, 7
  %v1938 = vpop.permute.xlu0 %1937
  %1939 = vrot.lane.b32.xlu0 %v1780, 7
  %v1940 = vpop.permute.xlu0 %1939
  %1941 = vrot.lane.b32.xlu0 %v1781, 7
  %v1942 = vpop.permute.xlu0 %1941
  %1943 = vrot.lane.b32.xlu0 %v1782, 7
  %v1944 = vpop.permute.xlu0 %1943
  %1945 = vrot.lane.b32.xlu0 %v1783, 7
  %v1946 = vpop.permute.xlu0 %1945
  %1947 = vrot.lane.b32.xlu0 %v1784, 7
  %v1948 = vpop.permute.xlu0 %1947
  %1949 = vrot.lane.b32.xlu0 %v1785, 7
  %v1950 = vpop.permute.xlu0 %1949
  %1951 = vrot.lane.b32.xlu0 %v1786, 7
  %v1952 = vpop.permute.xlu0 %1951
  %1953 = vrot.lane.b32.xlu0 %v1787, 7
  %v1954 = vpop.permute.xlu0 %1953
  %1955 = vrot.lane.b32.xlu0 %v1788, 7
  %v1956 = vpop.permute.xlu0 %1955
  %1957 = vrot.lane.b32.xlu0 %v1789, 7
  %v1958 = vpop.permute.xlu0 %1957
  %1959 = vrot.lane.b32.xlu0 %v1790, 7
  %v1960 = vpop.permute.xlu0 %1959
  %v1961 = vld [vmem:[%s1 + $0x2] sm:$0x1]
  %v1962 = vlaneseq
  %v1963 = vshrl.u32 %v1962, 7
  %v1964 = vsub.s32 0, %v1963
  %v1965 = vrot.slane %v1961, %v1964
  %v1966 = vmul.f32 %v1930, %v1965
  %v1967 = vmul.f32 %v1932, %v1965
  %v1968 = vmul.f32 %v1934, %v1965
  %v1969 = vmul.f32 %v1936, %v1965
  %v1970 = vmul.f32 %v1938, %v1965
  %v1971 = vmul.f32 %v1940, %v1965
  %v1972 = vmul.f32 %v1942, %v1965
  %v1973 = vmul.f32 %v1944, %v1965
  %v1974 = vmul.f32 %v1946, %v1965
  %v1975 = vmul.f32 %v1948, %v1965
  %v1976 = vmul.f32 %v1950, %v1965
  %v1977 = vmul.f32 %v1952, %v1965
  %v1978 = vmul.f32 %v1954, %v1965
  %v1979 = vmul.f32 %v1956, %v1965
  %v1980 = vmul.f32 %v1958, %v1965
  %v1981 = vmul.f32 %v1960, %v1965
  %1982 = vst [vmem:[#allocation3 + $0x100] sm:$0xff] %v1966
  %1983 = vst [vmem:[#allocation3 + $0x108] sm:$0xff] %v1967
  %1984 = vst [vmem:[#allocation3 + $0x110] sm:$0xff] %v1968
  %1985 = vst [vmem:[#allocation3 + $0x118] sm:$0xff] %v1969
  %1986 = vst [vmem:[#allocation3 + $0x120] sm:$0xff] %v1970
  %1987 = vst [vmem:[#allocation3 + $0x128] sm:$0xff] %v1971
  %1988 = vst [vmem:[#allocation3 + $0x130] sm:$0xff] %v1972
  %1989 = vst [vmem:[#allocation3 + $0x138] sm:$0xff] %v1973
  %1990 = vst [vmem:[#allocation3 + $0x140] sm:$0xff] %v1974
  %1991 = vst [vmem:[#allocation3 + $0x148] sm:$0xff] %v1975
  %1992 = vst [vmem:[#allocation3 + $0x150] sm:$0xff] %v1976
  %1993 = vst [vmem:[#allocation3 + $0x158] sm:$0xff] %v1977
  %1994 = vst [vmem:[#allocation3 + $0x160] sm:$0xff] %v1978
  %1995 = vst [vmem:[#allocation3 + $0x168] sm:$0xff] %v1979
  %1996 = vst [vmem:[#allocation3 + $0x170] sm:$0xff] %v1980
  %1997 = vst [vmem:[#allocation3 + $0x178] sm:$0xff] %v1981
  %1998 = vrot.lane.b32.xlu0 %v1775, 1
  %v1999 = vpop.permute.xlu0 %1998
  %2000 = vrot.lane.b32.xlu0 %v1776, 1
  %v2001 = vpop.permute.xlu0 %2000
  %2002 = vrot.lane.b32.xlu0 %v1777, 1
  %v2003 = vpop.permute.xlu0 %2002
  %2004 = vrot.lane.b32.xlu0 %v1778, 1
  %v2005 = vpop.permute.xlu0 %2004
  %2006 = vrot.lane.b32.xlu0 %v1779, 1
  %v2007 = vpop.permute.xlu0 %2006
  %2008 = vrot.lane.b32.xlu0 %v1780, 1
  %v2009 = vpop.permute.xlu0 %2008
  %2010 = vrot.lane.b32.xlu0 %v1781, 1
  %v2011 = vpop.permute.xlu0 %2010
  %2012 = vrot.lane.b32.xlu0 %v1782, 1
  %v2013 = vpop.permute.xlu0 %2012
  %2014 = vrot.lane.b32.xlu0 %v1783, 1
  %v2015 = vpop.permute.xlu0 %2014
  %2016 = vrot.lane.b32.xlu0 %v1784, 1
  %v2017 = vpop.permute.xlu0 %2016
  %2018 = vrot.lane.b32.xlu0 %v1785, 1
  %v2019 = vpop.permute.xlu0 %2018
  %2020 = vrot.lane.b32.xlu0 %v1786, 1
  %v2021 = vpop.permute.xlu0 %2020
  %2022 = vrot.lane.b32.xlu0 %v1787, 1
  %v2023 = vpop.permute.xlu0 %2022
  %2024 = vrot.lane.b32.xlu0 %v1788, 1
  %v2025 = vpop.permute.xlu0 %2024
  %2026 = vrot.lane.b32.xlu0 %v1789, 1
  %v2027 = vpop.permute.xlu0 %2026
  %2028 = vrot.lane.b32.xlu0 %v1790, 1
  %v2029 = vpop.permute.xlu0 %2028
  %v2030 = vld [vmem:[%s1 + $0x3] sm:$0x1]
  %v2031 = vlaneseq
  %v2032 = vshrl.u32 %v2031, 7
  %v2033 = vsub.s32 0, %v2032
  %v2034 = vrot.slane %v2030, %v2033
  %v2035 = vmul.f32 %v1999, %v2034
  %v2036 = vmul.f32 %v2001, %v2034
  %v2037 = vmul.f32 %v2003, %v2034
  %v2038 = vmul.f32 %v2005, %v2034
  %v2039 = vmul.f32 %v2007, %v2034
  %v2040 = vmul.f32 %v2009, %v2034
  %v2041 = vmul.f32 %v2011, %v2034
  %v2042 = vmul.f32 %v2013, %v2034
  %v2043 = vmul.f32 %v2015, %v2034
  %v2044 = vmul.f32 %v2017, %v2034
  %v2045 = vmul.f32 %v2019, %v2034
  %v2046 = vmul.f32 %v2021, %v2034
  %v2047 = vmul.f32 %v2023, %v2034
  %v2048 = vmul.f32 %v2025, %v2034
  %v2049 = vmul.f32 %v2027, %v2034
  %v2050 = vmul.f32 %v2029, %v2034
  %2051 = vst [vmem:[#allocation3 + $0x180] sm:$0xff] %v2035
  %2052 = vst [vmem:[#allocation3 + $0x188] sm:$0xff] %v2036
  %2053 = vst [vmem:[#allocation3 + $0x190] sm:$0xff] %v2037
  %2054 = vst [vmem:[#allocation3 + $0x198] sm:$0xff] %v2038
  %2055 = vst [vmem:[#allocation3 + $0x1a0] sm:$0xff] %v2039
  %2056 = vst [vmem:[#allocation3 + $0x1a8] sm:$0xff] %v2040
  %2057 = vst [vmem:[#allocation3 + $0x1b0] sm:$0xff] %v2041
  %2058 = vst [vmem:[#allocation3 + $0x1b8] sm:$0xff] %v2042
  %2059 = vst [vmem:[#allocation3 + $0x1c0] sm:$0xff] %v2043
  %2060 = vst [vmem:[#allocation3 + $0x1c8] sm:$0xff] %v2044
  %2061 = vst [vmem:[#allocation3 + $0x1d0] sm:$0xff] %v2045
  %2062 = vst [vmem:[#allocation3 + $0x1d8] sm:$0xff] %v2046
  %2063 = vst [vmem:[#allocation3 + $0x1e0] sm:$0xff] %v2047
  %2064 = vst [vmem:[#allocation3 + $0x1e8] sm:$0xff] %v2048
  %2065 = vst [vmem:[#allocation3 + $0x1f0] sm:$0xff] %v2049
  %2066 = vst [vmem:[#allocation3 + $0x1f8] sm:$0xff] %v2050
  %2067 = vst [vmem:[#allocation3 + $0x200] sm:$0xff] %v1775
  %2068 = vst [vmem:[#allocation3 + $0x208] sm:$0xff] %v1776
  %2069 = vst [vmem:[#allocation3 + $0x210] sm:$0xff] %v1777
  %2070 = vst [vmem:[#allocation3 + $0x218] sm:$0xff] %v1778
  %2071 = vst [vmem:[#allocation3 + $0x220] sm:$0xff] %v1779
  %2072 = vst [vmem:[#allocation3 + $0x228] sm:$0xff] %v1780
  %2073 = vst [vmem:[#allocation3 + $0x230] sm:$0xff] %v1781
  %2074 = vst [vmem:[#allocation3 + $0x238] sm:$0xff] %v1782
  %2075 = vst [vmem:[#allocation3 + $0x240] sm:$0xff] %v1783
  %2076 = vst [vmem:[#allocation3 + $0x248] sm:$0xff] %v1784
  %2077 = vst [vmem:[#allocation3 + $0x250] sm:$0xff] %v1785
  %2078 = vst [vmem:[#allocation3 + $0x258] sm:$0xff] %v1786
  %2079 = vst [vmem:[#allocation3 + $0x260] sm:$0xff] %v1787
  %2080 = vst [vmem:[#allocation3 + $0x268] sm:$0xff] %v1788
  %2081 = vst [vmem:[#allocation3 + $0x270] sm:$0xff] %v1789
  %2082 = vst [vmem:[#allocation3 + $0x278] sm:$0xff] %v1790
  %2083 = vrot.lane.b32.xlu0 %v1775, 127
  %v2084 = vpop.permute.xlu0 %2083
  %2085 = vrot.lane.b32.xlu0 %v1776, 127
  %v2086 = vpop.permute.xlu0 %2085
  %2087 = vrot.lane.b32.xlu0 %v1777, 127
  %v2088 = vpop.permute.xlu0 %2087
  %2089 = vrot.lane.b32.xlu0 %v1778, 127
  %v2090 = vpop.permute.xlu0 %2089
  %2091 = vrot.lane.b32.xlu0 %v1779, 127
  %v2092 = vpop.permute.xlu0 %2091
  %2093 = vrot.lane.b32.xlu0 %v1780, 127
  %v2094 = vpop.permute.xlu0 %2093
  %2095 = vrot.lane.b32.xlu0 %v1781, 127
  %v2096 = vpop.permute.xlu0 %2095
  %2097 = vrot.lane.b32.xlu0 %v1782, 127
  %v2098 = vpop.permute.xlu0 %2097
  %2099 = vrot.lane.b32.xlu0 %v1783, 127
  %v2100 = vpop.permute.xlu0 %2099
  %2101 = vrot.lane.b32.xlu0 %v1784, 127
  %v2102 = vpop.permute.xlu0 %2101
  %2103 = vrot.lane.b32.xlu0 %v1785, 127
  %v2104 = vpop.permute.xlu0 %2103
  %2105 = vrot.lane.b32.xlu0 %v1786, 127
  %v2106 = vpop.permute.xlu0 %2105
  %2107 = vrot.lane.b32.xlu0 %v1787, 127
  %v2108 = vpop.permute.xlu0 %2107
  %2109 = vrot.lane.b32.xlu0 %v1788, 127
  %v2110 = vpop.permute.xlu0 %2109
  %2111 = vrot.lane.b32.xlu0 %v1789, 127
  %v2112 = vpop.permute.xlu0 %2111
  %2113 = vrot.lane.b32.xlu0 %v1790, 127
  %v2114 = vpop.permute.xlu0 %2113
  %v2115 = vld [vmem:[%s1 + $0x5] sm:$0x1]
  %v2116 = vlaneseq
  %v2117 = vshrl.u32 %v2116, 7
  %v2118 = vsub.s32 0, %v2117
  %v2119 = vrot.slane %v2115, %v2118
  %v2120 = vmul.f32 %v2084, %v2119
  %v2121 = vmul.f32 %v2086, %v2119
  %v2122 = vmul.f32 %v2088, %v2119
  %v2123 = vmul.f32 %v2090, %v2119
  %v2124 = vmul.f32 %v2092, %v2119
  %v2125 = vmul.f32 %v2094, %v2119
  %v2126 = vmul.f32 %v2096, %v2119
  %v2127 = vmul.f32 %v2098, %v2119
  %v2128 = vmul.f32 %v2100, %v2119
  %v2129 = vmul.f32 %v2102, %v2119
  %v2130 = vmul.f32 %v2104, %v2119
  %v2131 = vmul.f32 %v2106, %v2119
  %v2132 = vmul.f32 %v2108, %v2119
  %v2133 = vmul.f32 %v2110, %v2119
  %v2134 = vmul.f32 %v2112, %v2119
  %v2135 = vmul.f32 %v2114, %v2119
  %2136 = vst [vmem:[#allocation3 + $0x280] sm:$0xff] %v2120
  %2137 = vst [vmem:[#allocation3 + $0x288] sm:$0xff] %v2121
  %2138 = vst [vmem:[#allocation3 + $0x290] sm:$0xff] %v2122
  %2139 = vst [vmem:[#allocation3 + $0x298] sm:$0xff] %v2123
  %2140 = vst [vmem:[#allocation3 + $0x2a0] sm:$0xff] %v2124
  %2141 = vst [vmem:[#allocation3 + $0x2a8] sm:$0xff] %v2125
  %2142 = vst [vmem:[#allocation3 + $0x2b0] sm:$0xff] %v2126
  %2143 = vst [vmem:[#allocation3 + $0x2b8] sm:$0xff] %v2127
  %2144 = vst [vmem:[#allocation3 + $0x2c0] sm:$0xff] %v2128
  %2145 = vst [vmem:[#allocation3 + $0x2c8] sm:$0xff] %v2129
  %2146 = vst [vmem:[#allocation3 + $0x2d0] sm:$0xff] %v2130
  %2147 = vst [vmem:[#allocation3 + $0x2d8] sm:$0xff] %v2131
  %2148 = vst [vmem:[#allocation3 + $0x2e0] sm:$0xff] %v2132
  %2149 = vst [vmem:[#allocation3 + $0x2e8] sm:$0xff] %v2133
  %2150 = vst [vmem:[#allocation3 + $0x2f0] sm:$0xff] %v2134
  %2151 = vst [vmem:[#allocation3 + $0x2f8] sm:$0xff] %v2135
  %2152 = vrot.lane.b32.xlu0 %v1775, 121
  %v2153 = vpop.permute.xlu0 %2152
  %2154 = vrot.lane.b32.xlu0 %v1776, 121
  %v2155 = vpop.permute.xlu0 %2154
  %2156 = vrot.lane.b32.xlu0 %v1777, 121
  %v2157 = vpop.permute.xlu0 %2156
  %2158 = vrot.lane.b32.xlu0 %v1778, 121
  %v2159 = vpop.permute.xlu0 %2158
  %2160 = vrot.lane.b32.xlu0 %v1779, 121
  %v2161 = vpop.permute.xlu0 %2160
  %2162 = vrot.lane.b32.xlu0 %v1780, 121
  %v2163 = vpop.permute.xlu0 %2162
  %2164 = vrot.lane.b32.xlu0 %v1781, 121
  %v2165 = vpop.permute.xlu0 %2164
  %2166 = vrot.lane.b32.xlu0 %v1782, 121
  %v2167 = vpop.permute.xlu0 %2166
  %2168 = vrot.lane.b32.xlu0 %v1783, 121
  %v2169 = vpop.permute.xlu0 %2168
  %2170 = vrot.lane.b32.xlu0 %v1784, 121
  %v2171 = vpop.permute.xlu0 %2170
  %2172 = vrot.lane.b32.xlu0 %v1785, 121
  %v2173 = vpop.permute.xlu0 %2172
  %2174 = vrot.lane.b32.xlu0 %v1786, 121
  %v2175 = vpop.permute.xlu0 %2174
  %2176 = vrot.lane.b32.xlu0 %v1787, 121
  %v2177 = vpop.permute.xlu0 %2176
  %2178 = vrot.lane.b32.xlu0 %v1788, 121
  %v2179 = vpop.permute.xlu0 %2178
  %2180 = vrot.lane.b32.xlu0 %v1789, 121
  %v2181 = vpop.permute.xlu0 %2180
  %2182 = vrot.lane.b32.xlu0 %v1790, 121
  %v2183 = vpop.permute.xlu0 %2182
  %v2184 = vld [vmem:[%s1 + $0x6] sm:$0x1]
  %v2185 = vlaneseq
  %v2186 = vshrl.u32 %v2185, 7
  %v2187 = vsub.s32 0, %v2186
  %v2188 = vrot.slane %v2184, %v2187
  %v2189 = vmul.f32 %v2153, %v2188
  %v2190 = vmul.f32 %v2155, %v2188
  %v2191 = vmul.f32 %v2157, %v2188
  %v2192 = vmul.f32 %v2159, %v2188
  %v2193 = vmul.f32 %v2161, %v2188
  %v2194 = vmul.f32 %v2163, %v2188
  %v2195 = vmul.f32 %v2165, %v2188
  %v2196 = vmul.f32 %v2167, %v2188
  %v2197 = vmul.f32 %v2169, %v2188
  %v2198 = vmul.f32 %v2171, %v2188
  %v2199 = vmul.f32 %v2173, %v2188
  %v2200 = vmul.f32 %v2175, %v2188
  %v2201 = vmul.f32 %v2177, %v2188
  %v2202 = vmul.f32 %v2179, %v2188
  %v2203 = vmul.f32 %v2181, %v2188
  %v2204 = vmul.f32 %v2183, %v2188
  %2205 = vst [vmem:[#allocation3 + $0x300] sm:$0xff] %v2189
  %2206 = vst [vmem:[#allocation3 + $0x308] sm:$0xff] %v2190
  %2207 = vst [vmem:[#allocation3 + $0x310] sm:$0xff] %v2191
  %2208 = vst [vmem:[#allocation3 + $0x318] sm:$0xff] %v2192
  %2209 = vst [vmem:[#allocation3 + $0x320] sm:$0xff] %v2193
  %2210 = vst [vmem:[#allocation3 + $0x328] sm:$0xff] %v2194
  %2211 = vst [vmem:[#allocation3 + $0x330] sm:$0xff] %v2195
  %2212 = vst [vmem:[#allocation3 + $0x338] sm:$0xff] %v2196
  %2213 = vst [vmem:[#allocation3 + $0x340] sm:$0xff] %v2197
  %2214 = vst [vmem:[#allocation3 + $0x348] sm:$0xff] %v2198
  %2215 = vst [vmem:[#allocation3 + $0x350] sm:$0xff] %v2199
  %2216 = vst [vmem:[#allocation3 + $0x358] sm:$0xff] %v2200
  %2217 = vst [vmem:[#allocation3 + $0x360] sm:$0xff] %v2201
  %2218 = vst [vmem:[#allocation3 + $0x368] sm:$0xff] %v2202
  %2219 = vst [vmem:[#allocation3 + $0x370] sm:$0xff] %v2203
  %2220 = vst [vmem:[#allocation3 + $0x378] sm:$0xff] %v2204
  %2221 = vrot.lane.b32.xlu0 %v1775, 120
  %v2222 = vpop.permute.xlu0 %2221
  %2223 = vrot.lane.b32.xlu0 %v1776, 120
  %v2224 = vpop.permute.xlu0 %2223
  %2225 = vrot.lane.b32.xlu0 %v1777, 120
  %v2226 = vpop.permute.xlu0 %2225
  %2227 = vrot.lane.b32.xlu0 %v1778, 120
  %v2228 = vpop.permute.xlu0 %2227
  %2229 = vrot.lane.b32.xlu0 %v1779, 120
  %v2230 = vpop.permute.xlu0 %2229
  %2231 = vrot.lane.b32.xlu0 %v1780, 120
  %v2232 = vpop.permute.xlu0 %2231
  %2233 = vrot.lane.b32.xlu0 %v1781, 120
  %v2234 = vpop.permute.xlu0 %2233
  %2235 = vrot.lane.b32.xlu0 %v1782, 120
  %v2236 = vpop.permute.xlu0 %2235
  %2237 = vrot.lane.b32.xlu0 %v1783, 120
  %v2238 = vpop.permute.xlu0 %2237
  %2239 = vrot.lane.b32.xlu0 %v1784, 120
  %v2240 = vpop.permute.xlu0 %2239
  %2241 = vrot.lane.b32.xlu0 %v1785, 120
  %v2242 = vpop.permute.xlu0 %2241
  %2243 = vrot.lane.b32.xlu0 %v1786, 120
  %v2244 = vpop.permute.xlu0 %2243
  %2245 = vrot.lane.b32.xlu0 %v1787, 120
  %v2246 = vpop.permute.xlu0 %2245
  %2247 = vrot.lane.b32.xlu0 %v1788, 120
  %v2248 = vpop.permute.xlu0 %2247
  %2249 = vrot.lane.b32.xlu0 %v1789, 120
  %v2250 = vpop.permute.xlu0 %2249
  %2251 = vrot.lane.b32.xlu0 %v1790, 120
  %v2252 = vpop.permute.xlu0 %2251
  %v2253 = vld [vmem:[%s1 + $0x7] sm:$0x1]
  %v2254 = vlaneseq
  %v2255 = vshrl.u32 %v2254, 7
  %v2256 = vsub.s32 0, %v2255
  %v2257 = vrot.slane %v2253, %v2256
  %v2258 = vmul.f32 %v2222, %v2257
  %v2259 = vmul.f32 %v2224, %v2257
  %v2260 = vmul.f32 %v2226, %v2257
  %v2261 = vmul.f32 %v2228, %v2257
  %v2262 = vmul.f32 %v2230, %v2257
  %v2263 = vmul.f32 %v2232, %v2257
  %v2264 = vmul.f32 %v2234, %v2257
  %v2265 = vmul.f32 %v2236, %v2257
  %v2266 = vmul.f32 %v2238, %v2257
  %v2267 = vmul.f32 %v2240, %v2257
  %v2268 = vmul.f32 %v2242, %v2257
  %v2269 = vmul.f32 %v2244, %v2257
  %v2270 = vmul.f32 %v2246, %v2257
  %v2271 = vmul.f32 %v2248, %v2257
  %v2272 = vmul.f32 %v2250, %v2257
  %v2273 = vmul.f32 %v2252, %v2257
  %2274 = vst [vmem:[#allocation3 + $0x380] sm:$0xff] %v2258
  %2275 = vst [vmem:[#allocation3 + $0x388] sm:$0xff] %v2259
  %2276 = vst [vmem:[#allocation3 + $0x390] sm:$0xff] %v2260
  %2277 = vst [vmem:[#allocation3 + $0x398] sm:$0xff] %v2261
  %2278 = vst [vmem:[#allocation3 + $0x3a0] sm:$0xff] %v2262
  %2279 = vst [vmem:[#allocation3 + $0x3a8] sm:$0xff] %v2263
  %2280 = vst [vmem:[#allocation3 + $0x3b0] sm:$0xff] %v2264
  %2281 = vst [vmem:[#allocation3 + $0x3b8] sm:$0xff] %v2265
  %2282 = vst [vmem:[#allocation3 + $0x3c0] sm:$0xff] %v2266
  %2283 = vst [vmem:[#allocation3 + $0x3c8] sm:$0xff] %v2267
  %2284 = vst [vmem:[#allocation3 + $0x3d0] sm:$0xff] %v2268
  %2285 = vst [vmem:[#allocation3 + $0x3d8] sm:$0xff] %v2269
  %2286 = vst [vmem:[#allocation3 + $0x3e0] sm:$0xff] %v2270
  %2287 = vst [vmem:[#allocation3 + $0x3e8] sm:$0xff] %v2271
  %2288 = vst [vmem:[#allocation3 + $0x3f0] sm:$0xff] %v2272
  %2289 = vst [vmem:[#allocation3 + $0x3f8] sm:$0xff] %v2273
  %2290 = vrot.lane.b32.xlu0 %v1775, 119
  %v2291 = vpop.permute.xlu0 %2290
  %2292 = vrot.lane.b32.xlu0 %v1776, 119
  %v2293 = vpop.permute.xlu0 %2292
  %2294 = vrot.lane.b32.xlu0 %v1777, 119
  %v2295 = vpop.permute.xlu0 %2294
  %2296 = vrot.lane.b32.xlu0 %v1778, 119
  %v2297 = vpop.permute.xlu0 %2296
  %2298 = vrot.lane.b32.xlu0 %v1779, 119
  %v2299 = vpop.permute.xlu0 %2298
  %2300 = vrot.lane.b32.xlu0 %v1780, 119
  %v2301 = vpop.permute.xlu0 %2300
  %2302 = vrot.lane.b32.xlu0 %v1781, 119
  %v2303 = vpop.permute.xlu0 %2302
  %2304 = vrot.lane.b32.xlu0 %v1782, 119
  %v2305 = vpop.permute.xlu0 %2304
  %2306 = vrot.lane.b32.xlu0 %v1783, 119
  %v2307 = vpop.permute.xlu0 %2306
  %2308 = vrot.lane.b32.xlu0 %v1784, 119
  %v2309 = vpop.permute.xlu0 %2308
  %2310 = vrot.lane.b32.xlu0 %v1785, 119
  %v2311 = vpop.permute.xlu0 %2310
  %2312 = vrot.lane.b32.xlu0 %v1786, 119
  %v2313 = vpop.permute.xlu0 %2312
  %2314 = vrot.lane.b32.xlu0 %v1787, 119
  %v2315 = vpop.permute.xlu0 %2314
  %2316 = vrot.lane.b32.xlu0 %v1788, 119
  %v2317 = vpop.permute.xlu0 %2316
  %2318 = vrot.lane.b32.xlu0 %v1789, 119
  %v2319 = vpop.permute.xlu0 %2318
  %2320 = vrot.lane.b32.xlu0 %v1790, 119
  %v2321 = vpop.permute.xlu0 %2320
  %v2322 = vld [vmem:[%s1 + $0x8] sm:$0x1]
  %v2323 = vlaneseq
  %v2324 = vshrl.u32 %v2323, 7
  %v2325 = vsub.s32 0, %v2324
  %v2326 = vrot.slane %v2322, %v2325
  %v2327 = vmul.f32 %v2291, %v2326
  %v2328 = vmul.f32 %v2293, %v2326
  %v2329 = vmul.f32 %v2295, %v2326
  %v2330 = vmul.f32 %v2297, %v2326
  %v2331 = vmul.f32 %v2299, %v2326
  %v2332 = vmul.f32 %v2301, %v2326
  %v2333 = vmul.f32 %v2303, %v2326
  %v2334 = vmul.f32 %v2305, %v2326
  %v2335 = vmul.f32 %v2307, %v2326
  %v2336 = vmul.f32 %v2309, %v2326
  %v2337 = vmul.f32 %v2311, %v2326
  %v2338 = vmul.f32 %v2313, %v2326
  %v2339 = vmul.f32 %v2315, %v2326
  %v2340 = vmul.f32 %v2317, %v2326
  %v2341 = vmul.f32 %v2319, %v2326
  %v2342 = vmul.f32 %v2321, %v2326
  %2343 = vst [vmem:[#allocation3 + $0x400] sm:$0xff] %v2327
  %2344 = vst [vmem:[#allocation3 + $0x408] sm:$0xff] %v2328
  %2345 = vst [vmem:[#allocation3 + $0x410] sm:$0xff] %v2329
  %2346 = vst [vmem:[#allocation3 + $0x418] sm:$0xff] %v2330
  %2347 = vst [vmem:[#allocation3 + $0x420] sm:$0xff] %v2331
  %2348 = vst [vmem:[#allocation3 + $0x428] sm:$0xff] %v2332
  %2349 = vst [vmem:[#allocation3 + $0x430] sm:$0xff] %v2333
  %2350 = vst [vmem:[#allocation3 + $0x438] sm:$0xff] %v2334
  %2351 = vst [vmem:[#allocation3 + $0x440] sm:$0xff] %v2335
  %2352 = vst [vmem:[#allocation3 + $0x448] sm:$0xff] %v2336
  %2353 = vst [vmem:[#allocation3 + $0x450] sm:$0xff] %v2337
  %2354 = vst [vmem:[#allocation3 + $0x458] sm:$0xff] %v2338
  %2355 = vst [vmem:[#allocation3 + $0x460] sm:$0xff] %v2339
  %2356 = vst [vmem:[#allocation3 + $0x468] sm:$0xff] %v2340
  %2357 = vst [vmem:[#allocation3 + $0x470] sm:$0xff] %v2341
  %2358 = vst [vmem:[#allocation3 + $0x478] sm:$0xff] %v2342
  %v2359 = vld [vmem:[%s4] sm:$0xff]
  %v2360 = vld [vmem:[%s4 + $0x8] sm:$0xff]
  %v2361 = vld [vmem:[%s4 + $0x10] sm:$0xff]
  %v2362 = vld [vmem:[%s4 + $0x18] sm:$0xff]
  %v2363 = vld [vmem:[%s4 + $0x20] sm:$0xff]
  %v2364 = vld [vmem:[%s4 + $0x28] sm:$0xff]
  %v2365 = vld [vmem:[%s4 + $0x30] sm:$0xff]
  %v2366 = vld [vmem:[%s4 + $0x38] sm:$0xff]
  %v2367 = vld [vmem:[%s4 + $0x40] sm:$0xff]
  %v2368 = vld [vmem:[%s4 + $0x48] sm:$0xff]
  %v2369 = vld [vmem:[%s4 + $0x50] sm:$0xff]
  %v2370 = vld [vmem:[%s4 + $0x58] sm:$0xff]
  %v2371 = vld [vmem:[%s4 + $0x60] sm:$0xff]
  %v2372 = vld [vmem:[%s4 + $0x68] sm:$0xff]
  %v2373 = vld [vmem:[%s4 + $0x70] sm:$0xff]
  %v2374 = vld [vmem:[%s4 + $0x78] sm:$0xff]
  %v2375 = vld [vmem:[%s4 + $0x80] sm:$0xff]
  %v2376 = vld [vmem:[%s4 + $0x88] sm:$0xff]
  %v2377 = vld [vmem:[%s4 + $0x90] sm:$0xff]
  %v2378 = vld [vmem:[%s4 + $0x98] sm:$0xff]
  %v2379 = vld [vmem:[%s4 + $0xa0] sm:$0xff]
  %v2380 = vld [vmem:[%s4 + $0xa8] sm:$0xff]
  %v2381 = vld [vmem:[%s4 + $0xb0] sm:$0xff]
  %v2382 = vld [vmem:[%s4 + $0xb8] sm:$0xff]
  %v2383 = vld [vmem:[%s4 + $0xc0] sm:$0xff]
  %v2384 = vld [vmem:[%s4 + $0xc8] sm:$0xff]
  %v2385 = vld [vmem:[%s4 + $0xd0] sm:$0xff]
  %v2386 = vld [vmem:[%s4 + $0xd8] sm:$0xff]
  %v2387 = vld [vmem:[%s4 + $0xe0] sm:$0xff]
  %v2388 = vld [vmem:[%s4 + $0xe8] sm:$0xff]
  %v2389 = vld [vmem:[%s4 + $0xf0] sm:$0xff]
  %v2390 = vld [vmem:[%s4 + $0xf8] sm:$0xff]
  %v2391 = vld [vmem:[%s4 + $0x100] sm:$0xff]
  %v2392 = vld [vmem:[%s4 + $0x108] sm:$0xff]
  %v2393 = vld [vmem:[%s4 + $0x110] sm:$0xff]
  %v2394 = vld [vmem:[%s4 + $0x118] sm:$0xff]
  %v2395 = vld [vmem:[%s4 + $0x120] sm:$0xff]
  %v2396 = vld [vmem:[%s4 + $0x128] sm:$0xff]
  %v2397 = vld [vmem:[%s4 + $0x130] sm:$0xff]
  %v2398 = vld [vmem:[%s4 + $0x138] sm:$0xff]
  %v2399 = vld [vmem:[%s4 + $0x140] sm:$0xff]
  %v2400 = vld [vmem:[%s4 + $0x148] sm:$0xff]
  %v2401 = vld [vmem:[%s4 + $0x150] sm:$0xff]
  %v2402 = vld [vmem:[%s4 + $0x158] sm:$0xff]
  %v2403 = vld [vmem:[%s4 + $0x160] sm:$0xff]
  %v2404 = vld [vmem:[%s4 + $0x168] sm:$0xff]
  %v2405 = vld [vmem:[%s4 + $0x170] sm:$0xff]
  %v2406 = vld [vmem:[%s4 + $0x178] sm:$0xff]
  %v2407 = vld [vmem:[%s4 + $0x180] sm:$0xff]
  %v2408 = vld [vmem:[%s4 + $0x188] sm:$0xff]
  %v2409 = vld [vmem:[%s4 + $0x190] sm:$0xff]
  %v2410 = vld [vmem:[%s4 + $0x198] sm:$0xff]
  %v2411 = vld [vmem:[%s4 + $0x1a0] sm:$0xff]
  %v2412 = vld [vmem:[%s4 + $0x1a8] sm:$0xff]
  %v2413 = vld [vmem:[%s4 + $0x1b0] sm:$0xff]
  %v2414 = vld [vmem:[%s4 + $0x1b8] sm:$0xff]
  %v2415 = vld [vmem:[%s4 + $0x1c0] sm:$0xff]
  %v2416 = vld [vmem:[%s4 + $0x1c8] sm:$0xff]
  %v2417 = vld [vmem:[%s4 + $0x1d0] sm:$0xff]
  %v2418 = vld [vmem:[%s4 + $0x1d8] sm:$0xff]
  %v2419 = vld [vmem:[%s4 + $0x1e0] sm:$0xff]
  %v2420 = vld [vmem:[%s4 + $0x1e8] sm:$0xff]
  %v2421 = vld [vmem:[%s4 + $0x1f0] sm:$0xff]
  %v2422 = vld [vmem:[%s4 + $0x1f8] sm:$0xff]
  %v2423 = vld [vmem:[%s4 + $0x200] sm:$0xff]
  %v2424 = vld [vmem:[%s4 + $0x208] sm:$0xff]
  %v2425 = vld [vmem:[%s4 + $0x210] sm:$0xff]
  %v2426 = vld [vmem:[%s4 + $0x218] sm:$0xff]
  %v2427 = vld [vmem:[%s4 + $0x220] sm:$0xff]
  %v2428 = vld [vmem:[%s4 + $0x228] sm:$0xff]
  %v2429 = vld [vmem:[%s4 + $0x230] sm:$0xff]
  %v2430 = vld [vmem:[%s4 + $0x238] sm:$0xff]
  %v2431 = vld [vmem:[#allocation3] sm:$0xff]
  %v2432 = vld [vmem:[#allocation3 + $0x8] sm:$0xff]
  %v2433 = vld [vmem:[#allocation3 + $0x10] sm:$0xff]
  %v2434 = vld [vmem:[#allocation3 + $0x18] sm:$0xff]
  %v2435 = vld [vmem:[#allocation3 + $0x20] sm:$0xff]
  %v2436 = vld [vmem:[#allocation3 + $0x28] sm:$0xff]
  %v2437 = vld [vmem:[#allocation3 + $0x30] sm:$0xff]
  %v2438 = vld [vmem:[#allocation3 + $0x38] sm:$0xff]
  %v2439 = vld [vmem:[#allocation3 + $0x40] sm:$0xff]
  %v2440 = vld [vmem:[#allocation3 + $0x48] sm:$0xff]
  %v2441 = vld [vmem:[#allocation3 + $0x50] sm:$0xff]
  %v2442 = vld [vmem:[#allocation3 + $0x58] sm:$0xff]
  %v2443 = vld [vmem:[#allocation3 + $0x60] sm:$0xff]
  %v2444 = vld [vmem:[#allocation3 + $0x68] sm:$0xff]
  %v2445 = vld [vmem:[#allocation3 + $0x70] sm:$0xff]
  %v2446 = vld [vmem:[#allocation3 + $0x78] sm:$0xff]
  %v2447 = vld [vmem:[#allocation3 + $0x80] sm:$0xff]
  %v2448 = vld [vmem:[#allocation3 + $0x88] sm:$0xff]
  %v2449 = vld [vmem:[#allocation3 + $0x90] sm:$0xff]
  %v2450 = vld [vmem:[#allocation3 + $0x98] sm:$0xff]
  %v2451 = vld [vmem:[#allocation3 + $0xa0] sm:$0xff]
  %v2452 = vld [vmem:[#allocation3 + $0xa8] sm:$0xff]
  %v2453 = vld [vmem:[#allocation3 + $0xb0] sm:$0xff]
  %v2454 = vld [vmem:[#allocation3 + $0xb8] sm:$0xff]
  %v2455 = vld [vmem:[#allocation3 + $0xc0] sm:$0xff]
  %v2456 = vld [vmem:[#allocation3 + $0xc8] sm:$0xff]
  %v2457 = vld [vmem:[#allocation3 + $0xd0] sm:$0xff]
  %v2458 = vld [vmem:[#allocation3 + $0xd8] sm:$0xff]
  %v2459 = vld [vmem:[#allocation3 + $0xe0] sm:$0xff]
  %v2460 = vld [vmem:[#allocation3 + $0xe8] sm:$0xff]
  %v2461 = vld [vmem:[#allocation3 + $0xf0] sm:$0xff]
  %v2462 = vld [vmem:[#allocation3 + $0xf8] sm:$0xff]
  %v2463 = vld [vmem:[#allocation3 + $0x100] sm:$0xff]
  %v2464 = vld [vmem:[#allocation3 + $0x108] sm:$0xff]
  %v2465 = vld [vmem:[#allocation3 + $0x110] sm:$0xff]
  %v2466 = vld [vmem:[#allocation3 + $0x118] sm:$0xff]
  %v2467 = vld [vmem:[#allocation3 + $0x120] sm:$0xff]
  %v2468 = vld [vmem:[#allocation3 + $0x128] sm:$0xff]
  %v2469 = vld [vmem:[#allocation3 + $0x130] sm:$0xff]
  %v2470 = vld [vmem:[#allocation3 + $0x138] sm:$0xff]
  %v2471 = vld [vmem:[#allocation3 + $0x140] sm:$0xff]
  %v2472 = vld [vmem:[#allocation3 + $0x148] sm:$0xff]
  %v2473 = vld [vmem:[#allocation3 + $0x150] sm:$0xff]
  %v2474 = vld [vmem:[#allocation3 + $0x158] sm:$0xff]
  %v2475 = vld [vmem:[#allocation3 + $0x160] sm:$0xff]
  %v2476 = vld [vmem:[#allocation3 + $0x168] sm:$0xff]
  %v2477 = vld [vmem:[#allocation3 + $0x170] sm:$0xff]
  %v2478 = vld [vmem:[#allocation3 + $0x178] sm:$0xff]
  %v2479 = vld [vmem:[#allocation3 + $0x180] sm:$0xff]
  %v2480 = vld [vmem:[#allocation3 + $0x188] sm:$0xff]
  %v2481 = vld [vmem:[#allocation3 + $0x190] sm:$0xff]
  %v2482 = vld [vmem:[#allocation3 + $0x198] sm:$0xff]
  %v2483 = vld [vmem:[#allocation3 + $0x1a0] sm:$0xff]
  %v2484 = vld [vmem:[#allocation3 + $0x1a8] sm:$0xff]
  %v2485 = vld [vmem:[#allocation3 + $0x1b0] sm:$0xff]
  %v2486 = vld [vmem:[#allocation3 + $0x1b8] sm:$0xff]
  %v2487 = vld [vmem:[#allocation3 + $0x1c0] sm:$0xff]
  %v2488 = vld [vmem:[#allocation3 + $0x1c8] sm:$0xff]
  %v2489 = vld [vmem:[#allocation3 + $0x1d0] sm:$0xff]
  %v2490 = vld [vmem:[#allocation3 + $0x1d8] sm:$0xff]
  %v2491 = vld [vmem:[#allocation3 + $0x1e0] sm:$0xff]
  %v2492 = vld [vmem:[#allocation3 + $0x1e8] sm:$0xff]
  %v2493 = vld [vmem:[#allocation3 + $0x1f0] sm:$0xff]
  %v2494 = vld [vmem:[#allocation3 + $0x1f8] sm:$0xff]
  %v2495 = vld [vmem:[#allocation3 + $0x200] sm:$0xff]
  %v2496 = vld [vmem:[#allocation3 + $0x208] sm:$0xff]
  %v2497 = vld [vmem:[#allocation3 + $0x210] sm:$0xff]
  %v2498 = vld [vmem:[#allocation3 + $0x218] sm:$0xff]
  %v2499 = vld [vmem:[#allocation3 + $0x220] sm:$0xff]
  %v2500 = vld [vmem:[#allocation3 + $0x228] sm:$0xff]
  %v2501 = vld [vmem:[#allocation3 + $0x230] sm:$0xff]
  %v2502 = vld [vmem:[#allocation3 + $0x238] sm:$0xff]
  %v2503 = vld [vmem:[#allocation3 + $0x240] sm:$0xff]
  %v2504 = vld [vmem:[#allocation3 + $0x248] sm:$0xff]
  %v2505 = vld [vmem:[#allocation3 + $0x250] sm:$0xff]
  %v2506 = vld [vmem:[#allocation3 + $0x258] sm:$0xff]
  %v2507 = vld [vmem:[#allocation3 + $0x260] sm:$0xff]
  %v2508 = vld [vmem:[#allocation3 + $0x268] sm:$0xff]
  %v2509 = vld [vmem:[#allocation3 + $0x270] sm:$0xff]
  %v2510 = vld [vmem:[#allocation3 + $0x278] sm:$0xff]
  %v2511 = vld [vmem:[#allocation3 + $0x280] sm:$0xff]
  %v2512 = vld [vmem:[#allocation3 + $0x288] sm:$0xff]
  %v2513 = vld [vmem:[#allocation3 + $0x290] sm:$0xff]
  %v2514 = vld [vmem:[#allocation3 + $0x298] sm:$0xff]
  %v2515 = vld [vmem:[#allocation3 + $0x2a0] sm:$0xff]
  %v2516 = vld [vmem:[#allocation3 + $0x2a8] sm:$0xff]
  %v2517 = vld [vmem:[#allocation3 + $0x2b0] sm:$0xff]
  %v2518 = vld [vmem:[#allocation3 + $0x2b8] sm:$0xff]
  %v2519 = vld [vmem:[#allocation3 + $0x2c0] sm:$0xff]
  %v2520 = vld [vmem:[#allocation3 + $0x2c8] sm:$0xff]
  %v2521 = vld [vmem:[#allocation3 + $0x2d0] sm:$0xff]
  %v2522 = vld [vmem:[#allocation3 + $0x2d8] sm:$0xff]
  %v2523 = vld [vmem:[#allocation3 + $0x2e0] sm:$0xff]
  %v2524 = vld [vmem:[#allocation3 + $0x2e8] sm:$0xff]
  %v2525 = vld [vmem:[#allocation3 + $0x2f0] sm:$0xff]
  %v2526 = vld [vmem:[#allocation3 + $0x2f8] sm:$0xff]
  %v2527 = vld [vmem:[#allocation3 + $0x300] sm:$0xff]
  %v2528 = vld [vmem:[#allocation3 + $0x308] sm:$0xff]
  %v2529 = vld [vmem:[#allocation3 + $0x310] sm:$0xff]
  %v2530 = vld [vmem:[#allocation3 + $0x318] sm:$0xff]
  %v2531 = vld [vmem:[#allocation3 + $0x320] sm:$0xff]
  %v2532 = vld [vmem:[#allocation3 + $0x328] sm:$0xff]
  %v2533 = vld [vmem:[#allocation3 + $0x330] sm:$0xff]
  %v2534 = vld [vmem:[#allocation3 + $0x338] sm:$0xff]
  %v2535 = vld [vmem:[#allocation3 + $0x340] sm:$0xff]
  %v2536 = vld [vmem:[#allocation3 + $0x348] sm:$0xff]
  %v2537 = vld [vmem:[#allocation3 + $0x350] sm:$0xff]
  %v2538 = vld [vmem:[#allocation3 + $0x358] sm:$0xff]
  %v2539 = vld [vmem:[#allocation3 + $0x360] sm:$0xff]
  %v2540 = vld [vmem:[#allocation3 + $0x368] sm:$0xff]
  %v2541 = vld [vmem:[#allocation3 + $0x370] sm:$0xff]
  %v2542 = vld [vmem:[#allocation3 + $0x378] sm:$0xff]
  %v2543 = vld [vmem:[#allocation3 + $0x380] sm:$0xff]
  %v2544 = vld [vmem:[#allocation3 + $0x388] sm:$0xff]
  %v2545 = vld [vmem:[#allocation3 + $0x390] sm:$0xff]
  %v2546 = vld [vmem:[#allocation3 + $0x398] sm:$0xff]
  %v2547 = vld [vmem:[#allocation3 + $0x3a0] sm:$0xff]
  %v2548 = vld [vmem:[#allocation3 + $0x3a8] sm:$0xff]
  %v2549 = vld [vmem:[#allocation3 + $0x3b0] sm:$0xff]
  %v2550 = vld [vmem:[#allocation3 + $0x3b8] sm:$0xff]
  %v2551 = vld [vmem:[#allocation3 + $0x3c0] sm:$0xff]
  %v2552 = vld [vmem:[#allocation3 + $0x3c8] sm:$0xff]
  %v2553 = vld [vmem:[#allocation3 + $0x3d0] sm:$0xff]
  %v2554 = vld [vmem:[#allocation3 + $0x3d8] sm:$0xff]
  %v2555 = vld [vmem:[#allocation3 + $0x3e0] sm:$0xff]
  %v2556 = vld [vmem:[#allocation3 + $0x3e8] sm:$0xff]
  %v2557 = vld [vmem:[#allocation3 + $0x3f0] sm:$0xff]
  %v2558 = vld [vmem:[#allocation3 + $0x3f8] sm:$0xff]
  %v2559 = vld [vmem:[#allocation3 + $0x400] sm:$0xff]
  %v2560 = vld [vmem:[#allocation3 + $0x408] sm:$0xff]
  %v2561 = vld [vmem:[#allocation3 + $0x410] sm:$0xff]
  %v2562 = vld [vmem:[#allocation3 + $0x418] sm:$0xff]
  %v2563 = vld [vmem:[#allocation3 + $0x420] sm:$0xff]
  %v2564 = vld [vmem:[#allocation3 + $0x428] sm:$0xff]
  %v2565 = vld [vmem:[#allocation3 + $0x430] sm:$0xff]
  %v2566 = vld [vmem:[#allocation3 + $0x438] sm:$0xff]
  %v2567 = vld [vmem:[#allocation3 + $0x440] sm:$0xff]
  %v2568 = vld [vmem:[#allocation3 + $0x448] sm:$0xff]
  %v2569 = vld [vmem:[#allocation3 + $0x450] sm:$0xff]
  %v2570 = vld [vmem:[#allocation3 + $0x458] sm:$0xff]
  %v2571 = vld [vmem:[#allocation3 + $0x460] sm:$0xff]
  %v2572 = vld [vmem:[#allocation3 + $0x468] sm:$0xff]
  %v2573 = vld [vmem:[#allocation3 + $0x470] sm:$0xff]
  %v2574 = vld [vmem:[#allocation3 + $0x478] sm:$0xff]
  %v2575 = vld [vmem:[%s6 + $0x80] sm:$0xff]
  %v2576 = vld [vmem:[%s6 + $0x88] sm:$0xff]
  %v2577 = vld [vmem:[%s6 + $0x90] sm:$0xff]
  %v2578 = vld [vmem:[%s6 + $0x98] sm:$0xff]
  %v2579 = vld [vmem:[%s6 + $0xa0] sm:$0xff]
  %v2580 = vld [vmem:[%s6 + $0xa8] sm:$0xff]
  %v2581 = vld [vmem:[%s6 + $0xb0] sm:$0xff]
  %v2582 = vld [vmem:[%s6 + $0xb8] sm:$0xff]
  %2584 = vset.pattern.permute.xlu0 0
  %2585 = vperm.xlu0 %2584, %v2575
  %v2586 = vpop.permute.xlu0 %2585
  %2589 = vset.pattern.permute.xlu0 0
  %2590 = vperm.xlu0 %2589, %v2576
  %v2591 = vpop.permute.xlu0 %2590
  %2594 = vset.pattern.permute.xlu0 0
  %2595 = vperm.xlu0 %2594, %v2577
  %v2596 = vpop.permute.xlu0 %2595
  %2599 = vset.pattern.permute.xlu0 0
  %2600 = vperm.xlu0 %2599, %v2578
  %v2601 = vpop.permute.xlu0 %2600
  %2604 = vset.pattern.permute.xlu0 0
  %2605 = vperm.xlu0 %2604, %v2579
  %v2606 = vpop.permute.xlu0 %2605
  %2609 = vset.pattern.permute.xlu0 0
  %2610 = vperm.xlu0 %2609, %v2580
  %v2611 = vpop.permute.xlu0 %2610
  %2614 = vset.pattern.permute.xlu0 0
  %2615 = vperm.xlu0 %2614, %v2581
  %v2616 = vpop.permute.xlu0 %2615
  %2619 = vset.pattern.permute.xlu0 0
  %2620 = vperm.xlu0 %2619, %v2582
  %v2621 = vpop.permute.xlu0 %2620
  %2623 = vmatprep.subr.mxu0 0.0
  %2624 = vmatpush1.msra.mxu0 %v2446
  %2625 = vmatprep.subr.mxu0 0.0
  %2626 = vmatpush1.msra.mxu0 %v2445
  %2627 = vmatprep.subr.mxu0 0.0
  %2628 = vmatpush1.msra.mxu0 %v2444
  %2629 = vmatprep.subr.mxu0 0.0
  %2630 = vmatpush1.msra.mxu0 %v2443
  %2631 = vmatprep.subr.mxu0 0.0
  %2632 = vmatpush1.msra.mxu0 %v2442
  %2633 = vmatprep.subr.mxu0 0.0
  %2634 = vmatpush1.msra.mxu0 %v2441
  %2635 = vmatprep.subr.mxu0 0.0
  %2636 = vmatpush1.msra.mxu0 %v2440
  %2637 = vmatprep.subr.mxu0 0.0
  %2638 = vmatpush1.msra.mxu0 %v2439
  %2639 = vmatprep.subr.mxu0 0.0
  %2640 = vmatpush1.msra.mxu0 %v2438
  %2641 = vmatprep.subr.mxu0 0.0
  %2642 = vmatpush1.msra.mxu0 %v2437
  %2643 = vmatprep.subr.mxu0 0.0
  %2644 = vmatpush1.msra.mxu0 %v2436
  %2645 = vmatprep.subr.mxu0 0.0
  %2646 = vmatpush1.msra.mxu0 %v2435
  %2647 = vmatprep.subr.mxu0 0.0
  %2648 = vmatpush1.msra.mxu0 %v2434
  %2649 = vmatprep.subr.mxu0 0.0
  %2650 = vmatpush1.msra.mxu0 %v2433
  %2651 = vmatprep.subr.mxu0 0.0
  %2652 = vmatpush1.msra.mxu0 %v2432
  %2653 = vmatprep.subr.mxu0 0.0
  %2654 = vmatpush1.msra.mxu0 %v2431
  %2655 = vmatprep.subr.mxu0 0.0
  %2656 = vmatpush2.msra.mxu0 %v2462
  %2657 = vmatprep.subr.mxu0 0.0
  %2658 = vmatpush2.msra.mxu0 %v2461
  %2659 = vmatprep.subr.mxu0 0.0
  %2660 = vmatpush2.msra.mxu0 %v2460
  %2661 = vmatprep.subr.mxu0 0.0
  %2662 = vmatpush2.msra.mxu0 %v2459
  %2663 = vmatprep.subr.mxu0 0.0
  %2664 = vmatpush2.msra.mxu0 %v2458
  %2665 = vmatprep.subr.mxu0 0.0
  %2666 = vmatpush2.msra.mxu0 %v2457
  %2667 = vmatprep.subr.mxu0 0.0
  %2668 = vmatpush2.msra.mxu0 %v2456
  %2669 = vmatprep.subr.mxu0 0.0
  %2670 = vmatpush2.msra.mxu0 %v2455
  %2671 = vmatprep.subr.mxu0 0.0
  %2672 = vmatpush2.msra.mxu0 %v2454
  %2673 = vmatprep.subr.mxu0 0.0
  %2674 = vmatpush2.msra.mxu0 %v2453
  %2675 = vmatprep.subr.mxu0 0.0
  %2676 = vmatpush2.msra.mxu0 %v2452
  %2677 = vmatprep.subr.mxu0 0.0
  %2678 = vmatpush2.msra.mxu0 %v2451
  %2679 = vmatprep.subr.mxu0 0.0
  %2680 = vmatpush2.msra.mxu0 %v2450
  %2681 = vmatprep.subr.mxu0 0.0
  %2682 = vmatpush2.msra.mxu0 %v2449
  %2683 = vmatprep.subr.mxu0 0.0
  %2684 = vmatpush2.msra.mxu0 %v2448
  %2685 = vmatprep.subr.mxu0 0.0
  %2686 = vmatpush2.msra.mxu0 %v2447
  %2687 = vmatprep.mubr.f32.mxu0 %v2360
  %2688 = vmatmul.mubr.f32.gmra.mxu0 %v2359
  %v2689 = vpop.f32.mrf.mxu0
  %v2690 = vadd.f32 %v2586, %v2689
  %v2691 = vpop.f32.mrf.mxu0
  %2692 = vmatprep.mubr.f32.mxu0 %v2369
  %2693 = vmatmul.mubr.f32.gmra.mxu0 %v2368
  %v2694 = vpop.f32.mrf.mxu0
  %v2695 = vadd.f32 %v2591, %v2694
  %v2696 = vpop.f32.mrf.mxu0
  %2697 = vmatprep.mubr.f32.mxu0 %v2378
  %2698 = vmatmul.mubr.f32.gmra.mxu0 %v2377
  %v2699 = vpop.f32.mrf.mxu0
  %v2700 = vadd.f32 %v2596, %v2699
  %v2701 = vpop.f32.mrf.mxu0
  %2702 = vmatprep.mubr.f32.mxu0 %v2387
  %2703 = vmatmul.mubr.f32.gmra.mxu0 %v2386
  %v2704 = vpop.f32.mrf.mxu0
  %v2705 = vadd.f32 %v2601, %v2704
  %v2706 = vpop.f32.mrf.mxu0
  %2707 = vmatprep.mubr.f32.mxu0 %v2396
  %2708 = vmatmul.mubr.f32.gmra.mxu0 %v2395
  %v2709 = vpop.f32.mrf.mxu0
  %v2710 = vadd.f32 %v2606, %v2709
  %v2711 = vpop.f32.mrf.mxu0
  %2712 = vmatprep.mubr.f32.mxu0 %v2405
  %2713 = vmatmul.mubr.f32.gmra.mxu0 %v2404
  %v2714 = vpop.f32.mrf.mxu0
  %v2715 = vadd.f32 %v2611, %v2714
  %v2716 = vpop.f32.mrf.mxu0
  %2717 = vmatprep.mubr.f32.mxu0 %v2414
  %2718 = vmatmul.mubr.f32.gmra.mxu0 %v2413
  %v2719 = vpop.f32.mrf.mxu0
  %v2720 = vadd.f32 %v2616, %v2719
  %v2721 = vpop.f32.mrf.mxu0
  %2722 = vmatprep.mubr.f32.mxu0 %v2423
  %2723 = vmatmul.mubr.f32.gmra.mxu0 %v2422
  %v2724 = vpop.f32.mrf.mxu0
  %v2725 = vadd.f32 %v2621, %v2724
  %v2726 = vpop.f32.mrf.mxu0
  %2727 = vdwg.mxu0
  %2728 = vmatprep.subr.mxu0 0.0
  %2729 = vmatpush1.msra.mxu0 %v2478
  %2730 = vmatprep.subr.mxu0 0.0
  %2731 = vmatpush1.msra.mxu0 %v2477
  %2732 = vmatprep.subr.mxu0 0.0
  %2733 = vmatpush1.msra.mxu0 %v2476
  %2734 = vmatprep.subr.mxu0 0.0
  %2735 = vmatpush1.msra.mxu0 %v2475
  %2736 = vmatprep.subr.mxu0 0.0
  %2737 = vmatpush1.msra.mxu0 %v2474
  %2738 = vmatprep.subr.mxu0 0.0
  %2739 = vmatpush1.msra.mxu0 %v2473
  %2740 = vmatprep.subr.mxu0 0.0
  %2741 = vmatpush1.msra.mxu0 %v2472
  %2742 = vmatprep.subr.mxu0 0.0
  %2743 = vmatpush1.msra.mxu0 %v2471
  %2744 = vmatprep.subr.mxu0 0.0
  %2745 = vmatpush1.msra.mxu0 %v2470
  %2746 = vmatprep.subr.mxu0 0.0
  %2747 = vmatpush1.msra.mxu0 %v2469
  %2748 = vmatprep.subr.mxu0 0.0
  %2749 = vmatpush1.msra.mxu0 %v2468
  %2750 = vmatprep.subr.mxu0 0.0
  %2751 = vmatpush1.msra.mxu0 %v2467
  %2752 = vmatprep.subr.mxu0 0.0
  %2753 = vmatpush1.msra.mxu0 %v2466
  %2754 = vmatprep.subr.mxu0 0.0
  %2755 = vmatpush1.msra.mxu0 %v2465
  %2756 = vmatprep.subr.mxu0 0.0
  %2757 = vmatpush1.msra.mxu0 %v2464
  %2758 = vmatprep.subr.mxu0 0.0
  %2759 = vmatpush1.msra.mxu0 %v2463
  %2760 = vmatprep.subr.mxu0 0.0
  %2761 = vmatpush2.msra.mxu0 %v2494
  %2762 = vmatprep.subr.mxu0 0.0
  %2763 = vmatpush2.msra.mxu0 %v2493
  %2764 = vmatprep.subr.mxu0 0.0
  %2765 = vmatpush2.msra.mxu0 %v2492
  %2766 = vmatprep.subr.mxu0 0.0
  %2767 = vmatpush2.msra.mxu0 %v2491
  %2768 = vmatprep.subr.mxu0 0.0
  %2769 = vmatpush2.msra.mxu0 %v2490
  %2770 = vmatprep.subr.mxu0 0.0
  %2771 = vmatpush2.msra.mxu0 %v2489
  %2772 = vmatprep.subr.mxu0 0.0
  %2773 = vmatpush2.msra.mxu0 %v2488
  %2774 = vmatprep.subr.mxu0 0.0
  %2775 = vmatpush2.msra.mxu0 %v2487
  %2776 = vmatprep.subr.mxu0 0.0
  %2777 = vmatpush2.msra.mxu0 %v2486
  %2778 = vmatprep.subr.mxu0 0.0
  %2779 = vmatpush2.msra.mxu0 %v2485
  %2780 = vmatprep.subr.mxu0 0.0
  %2781 = vmatpush2.msra.mxu0 %v2484
  %2782 = vmatprep.subr.mxu0 0.0
  %2783 = vmatpush2.msra.mxu0 %v2483
  %2784 = vmatprep.subr.mxu0 0.0
  %2785 = vmatpush2.msra.mxu0 %v2482
  %2786 = vmatprep.subr.mxu0 0.0
  %2787 = vmatpush2.msra.mxu0 %v2481
  %2788 = vmatprep.subr.mxu0 0.0
  %2789 = vmatpush2.msra.mxu0 %v2480
  %2790 = vmatprep.subr.mxu0 0.0
  %2791 = vmatpush2.msra.mxu0 %v2479
  %2792 = vmatprep.mubr.f32.mxu0 %v2362
  %2793 = vmatmul.mubr.f32.gmra.mxu0 %v2361
  %v2794 = vpop.f32.mrf.mxu0
  %v2795 = vadd.f32 %v2690, %v2794
  %v2796 = vpop.f32.mrf.mxu0
  %2797 = vmatprep.mubr.f32.mxu0 %v2371
  %2798 = vmatmul.mubr.f32.gmra.mxu0 %v2370
  %v2799 = vpop.f32.mrf.mxu0
  %v2800 = vadd.f32 %v2695, %v2799
  %v2801 = vpop.f32.mrf.mxu0
  %2802 = vmatprep.mubr.f32.mxu0 %v2380
  %2803 = vmatmul.mubr.f32.gmra.mxu0 %v2379
  %v2804 = vpop.f32.mrf.mxu0
  %v2805 = vadd.f32 %v2700, %v2804
  %v2806 = vpop.f32.mrf.mxu0
  %2807 = vmatprep.mubr.f32.mxu0 %v2389
  %2808 = vmatmul.mubr.f32.gmra.mxu0 %v2388
  %v2809 = vpop.f32.mrf.mxu0
  %v2810 = vadd.f32 %v2705, %v2809
  %v2811 = vpop.f32.mrf.mxu0
  %2812 = vmatprep.mubr.f32.mxu0 %v2398
  %2813 = vmatmul.mubr.f32.gmra.mxu0 %v2397
  %v2814 = vpop.f32.mrf.mxu0
  %v2815 = vadd.f32 %v2710, %v2814
  %v2816 = vpop.f32.mrf.mxu0
  %2817 = vmatprep.mubr.f32.mxu0 %v2407
  %2818 = vmatmul.mubr.f32.gmra.mxu0 %v2406
  %v2819 = vpop.f32.mrf.mxu0
  %v2820 = vadd.f32 %v2715, %v2819
  %v2821 = vpop.f32.mrf.mxu0
  %2822 = vmatprep.mubr.f32.mxu0 %v2416
  %2823 = vmatmul.mubr.f32.gmra.mxu0 %v2415
  %v2824 = vpop.f32.mrf.mxu0
  %v2825 = vadd.f32 %v2720, %v2824
  %v2826 = vpop.f32.mrf.mxu0
  %2827 = vmatprep.mubr.f32.mxu0 %v2425
  %2828 = vmatmul.mubr.f32.gmra.mxu0 %v2424
  %v2829 = vpop.f32.mrf.mxu0
  %v2830 = vadd.f32 %v2725, %v2829
  %v2831 = vpop.f32.mrf.mxu0
  %2832 = vdwg.mxu0
  %2833 = vmatprep.subr.mxu0 0.0
  %2834 = vmatpush1.msra.mxu0 %v2510
  %2835 = vmatprep.subr.mxu0 0.0
  %2836 = vmatpush1.msra.mxu0 %v2509
  %2837 = vmatprep.subr.mxu0 0.0
  %2838 = vmatpush1.msra.mxu0 %v2508
  %2839 = vmatprep.subr.mxu0 0.0
  %2840 = vmatpush1.msra.mxu0 %v2507
  %2841 = vmatprep.subr.mxu0 0.0
  %2842 = vmatpush1.msra.mxu0 %v2506
  %2843 = vmatprep.subr.mxu0 0.0
  %2844 = vmatpush1.msra.mxu0 %v2505
  %2845 = vmatprep.subr.mxu0 0.0
  %2846 = vmatpush1.msra.mxu0 %v2504
  %2847 = vmatprep.subr.mxu0 0.0
  %2848 = vmatpush1.msra.mxu0 %v2503
  %2849 = vmatprep.subr.mxu0 0.0
  %2850 = vmatpush1.msra.mxu0 %v2502
  %2851 = vmatprep.subr.mxu0 0.0
  %2852 = vmatpush1.msra.mxu0 %v2501
  %2853 = vmatprep.subr.mxu0 0.0
  %2854 = vmatpush1.msra.mxu0 %v2500
  %2855 = vmatprep.subr.mxu0 0.0
  %2856 = vmatpush1.msra.mxu0 %v2499
  %2857 = vmatprep.subr.mxu0 0.0
  %2858 = vmatpush1.msra.mxu0 %v2498
  %2859 = vmatprep.subr.mxu0 0.0
  %2860 = vmatpush1.msra.mxu0 %v2497
  %2861 = vmatprep.subr.mxu0 0.0
  %2862 = vmatpush1.msra.mxu0 %v2496
  %2863 = vmatprep.subr.mxu0 0.0
  %2864 = vmatpush1.msra.mxu0 %v2495
  %2865 = vmatprep.subr.mxu0 0.0
  %2866 = vmatpush2.msra.mxu0 %v2526
  %2867 = vmatprep.subr.mxu0 0.0
  %2868 = vmatpush2.msra.mxu0 %v2525
  %2869 = vmatprep.subr.mxu0 0.0
  %2870 = vmatpush2.msra.mxu0 %v2524
  %2871 = vmatprep.subr.mxu0 0.0
  %2872 = vmatpush2.msra.mxu0 %v2523
  %2873 = vmatprep.subr.mxu0 0.0
  %2874 = vmatpush2.msra.mxu0 %v2522
  %2875 = vmatprep.subr.mxu0 0.0
  %2876 = vmatpush2.msra.mxu0 %v2521
  %2877 = vmatprep.subr.mxu0 0.0
  %2878 = vmatpush2.msra.mxu0 %v2520
  %2879 = vmatprep.subr.mxu0 0.0
  %2880 = vmatpush2.msra.mxu0 %v2519
  %2881 = vmatprep.subr.mxu0 0.0
  %2882 = vmatpush2.msra.mxu0 %v2518
  %2883 = vmatprep.subr.mxu0 0.0
  %2884 = vmatpush2.msra.mxu0 %v2517
  %2885 = vmatprep.subr.mxu0 0.0
  %2886 = vmatpush2.msra.mxu0 %v2516
  %2887 = vmatprep.subr.mxu0 0.0
  %2888 = vmatpush2.msra.mxu0 %v2515
  %2889 = vmatprep.subr.mxu0 0.0
  %2890 = vmatpush2.msra.mxu0 %v2514
  %2891 = vmatprep.subr.mxu0 0.0
  %2892 = vmatpush2.msra.mxu0 %v2513
  %2893 = vmatprep.subr.mxu0 0.0
  %2894 = vmatpush2.msra.mxu0 %v2512
  %2895 = vmatprep.subr.mxu0 0.0
  %2896 = vmatpush2.msra.mxu0 %v2511
  %2897 = vmatprep.mubr.f32.mxu0 %v2364
  %2898 = vmatmul.mubr.f32.gmra.mxu0 %v2363
  %v2899 = vpop.f32.mrf.mxu0
  %v2900 = vadd.f32 %v2795, %v2899
  %v2901 = vpop.f32.mrf.mxu0
  %2902 = vmatprep.mubr.f32.mxu0 %v2373
  %2903 = vmatmul.mubr.f32.gmra.mxu0 %v2372
  %v2904 = vpop.f32.mrf.mxu0
  %v2905 = vadd.f32 %v2800, %v2904
  %v2906 = vpop.f32.mrf.mxu0
  %2907 = vmatprep.mubr.f32.mxu0 %v2382
  %2908 = vmatmul.mubr.f32.gmra.mxu0 %v2381
  %v2909 = vpop.f32.mrf.mxu0
  %v2910 = vadd.f32 %v2805, %v2909
  %v2911 = vpop.f32.mrf.mxu0
  %2912 = vmatprep.mubr.f32.mxu0 %v2391
  %2913 = vmatmul.mubr.f32.gmra.mxu0 %v2390
  %v2914 = vpop.f32.mrf.mxu0
  %v2915 = vadd.f32 %v2810, %v2914
  %v2916 = vpop.f32.mrf.mxu0
  %2917 = vmatprep.mubr.f32.mxu0 %v2400
  %2918 = vmatmul.mubr.f32.gmra.mxu0 %v2399
  %v2919 = vpop.f32.mrf.mxu0
  %v2920 = vadd.f32 %v2815, %v2919
  %v2921 = vpop.f32.mrf.mxu0
  %2922 = vmatprep.mubr.f32.mxu0 %v2409
  %2923 = vmatmul.mubr.f32.gmra.mxu0 %v2408
  %v2924 = vpop.f32.mrf.mxu0
  %v2925 = vadd.f32 %v2820, %v2924
  %v2926 = vpop.f32.mrf.mxu0
  %2927 = vmatprep.mubr.f32.mxu0 %v2418
  %2928 = vmatmul.mubr.f32.gmra.mxu0 %v2417
  %v2929 = vpop.f32.mrf.mxu0
  %v2930 = vadd.f32 %v2825, %v2929
  %v2931 = vpop.f32.mrf.mxu0
  %2932 = vmatprep.mubr.f32.mxu0 %v2427
  %2933 = vmatmul.mubr.f32.gmra.mxu0 %v2426
  %v2934 = vpop.f32.mrf.mxu0
  %v2935 = vadd.f32 %v2830, %v2934
  %v2936 = vpop.f32.mrf.mxu0
  %2937 = vdwg.mxu0
  %2938 = vmatprep.subr.mxu0 0.0
  %2939 = vmatpush1.msra.mxu0 %v2542
  %2940 = vmatprep.subr.mxu0 0.0
  %2941 = vmatpush1.msra.mxu0 %v2541
  %2942 = vmatprep.subr.mxu0 0.0
  %2943 = vmatpush1.msra.mxu0 %v2540
  %2944 = vmatprep.subr.mxu0 0.0
  %2945 = vmatpush1.msra.mxu0 %v2539
  %2946 = vmatprep.subr.mxu0 0.0
  %2947 = vmatpush1.msra.mxu0 %v2538
  %2948 = vmatprep.subr.mxu0 0.0
  %2949 = vmatpush1.msra.mxu0 %v2537
  %2950 = vmatprep.subr.mxu0 0.0
  %2951 = vmatpush1.msra.mxu0 %v2536
  %2952 = vmatprep.subr.mxu0 0.0
  %2953 = vmatpush1.msra.mxu0 %v2535
  %2954 = vmatprep.subr.mxu0 0.0
  %2955 = vmatpush1.msra.mxu0 %v2534
  %2956 = vmatprep.subr.mxu0 0.0
  %2957 = vmatpush1.msra.mxu0 %v2533
  %2958 = vmatprep.subr.mxu0 0.0
  %2959 = vmatpush1.msra.mxu0 %v2532
  %2960 = vmatprep.subr.mxu0 0.0
  %2961 = vmatpush1.msra.mxu0 %v2531
  %2962 = vmatprep.subr.mxu0 0.0
  %2963 = vmatpush1.msra.mxu0 %v2530
  %2964 = vmatprep.subr.mxu0 0.0
  %2965 = vmatpush1.msra.mxu0 %v2529
  %2966 = vmatprep.subr.mxu0 0.0
  %2967 = vmatpush1.msra.mxu0 %v2528
  %2968 = vmatprep.subr.mxu0 0.0
  %2969 = vmatpush1.msra.mxu0 %v2527
  %2970 = vmatprep.subr.mxu0 0.0
  %2971 = vmatpush2.msra.mxu0 %v2558
  %2972 = vmatprep.subr.mxu0 0.0
  %2973 = vmatpush2.msra.mxu0 %v2557
  %2974 = vmatprep.subr.mxu0 0.0
  %2975 = vmatpush2.msra.mxu0 %v2556
  %2976 = vmatprep.subr.mxu0 0.0
  %2977 = vmatpush2.msra.mxu0 %v2555
  %2978 = vmatprep.subr.mxu0 0.0
  %2979 = vmatpush2.msra.mxu0 %v2554
  %2980 = vmatprep.subr.mxu0 0.0
  %2981 = vmatpush2.msra.mxu0 %v2553
  %2982 = vmatprep.subr.mxu0 0.0
  %2983 = vmatpush2.msra.mxu0 %v2552
  %2984 = vmatprep.subr.mxu0 0.0
  %2985 = vmatpush2.msra.mxu0 %v2551
  %2986 = vmatprep.subr.mxu0 0.0
  %2987 = vmatpush2.msra.mxu0 %v2550
  %2988 = vmatprep.subr.mxu0 0.0
  %2989 = vmatpush2.msra.mxu0 %v2549
  %2990 = vmatprep.subr.mxu0 0.0
  %2991 = vmatpush2.msra.mxu0 %v2548
  %2992 = vmatprep.subr.mxu0 0.0
  %2993 = vmatpush2.msra.mxu0 %v2547
  %2994 = vmatprep.subr.mxu0 0.0
  %2995 = vmatpush2.msra.mxu0 %v2546
  %2996 = vmatprep.subr.mxu0 0.0
  %2997 = vmatpush2.msra.mxu0 %v2545
  %2998 = vmatprep.subr.mxu0 0.0
  %2999 = vmatpush2.msra.mxu0 %v2544
  %3000 = vmatprep.subr.mxu0 0.0
  %3001 = vmatpush2.msra.mxu0 %v2543
  %3002 = vmatprep.mubr.f32.mxu0 %v2366
  %3003 = vmatmul.mubr.f32.gmra.mxu0 %v2365
  %v3004 = vpop.f32.mrf.mxu0
  %v3005 = vadd.f32 %v2900, %v3004
  %v3006 = vpop.f32.mrf.mxu0
  %3007 = vmatprep.mubr.f32.mxu0 %v2375
  %3008 = vmatmul.mubr.f32.gmra.mxu0 %v2374
  %v3009 = vpop.f32.mrf.mxu0
  %v3010 = vadd.f32 %v2905, %v3009
  %v3011 = vpop.f32.mrf.mxu0
  %3012 = vmatprep.mubr.f32.mxu0 %v2384
  %3013 = vmatmul.mubr.f32.gmra.mxu0 %v2383
  %v3014 = vpop.f32.mrf.mxu0
  %v3015 = vadd.f32 %v2910, %v3014
  %v3016 = vpop.f32.mrf.mxu0
  %3017 = vmatprep.mubr.f32.mxu0 %v2393
  %3018 = vmatmul.mubr.f32.gmra.mxu0 %v2392
  %v3019 = vpop.f32.mrf.mxu0
  %v3020 = vadd.f32 %v2915, %v3019
  %v3021 = vpop.f32.mrf.mxu0
  %3022 = vmatprep.mubr.f32.mxu0 %v2402
  %3023 = vmatmul.mubr.f32.gmra.mxu0 %v2401
  %v3024 = vpop.f32.mrf.mxu0
  %v3025 = vadd.f32 %v2920, %v3024
  %v3026 = vpop.f32.mrf.mxu0
  %3027 = vmatprep.mubr.f32.mxu0 %v2411
  %3028 = vmatmul.mubr.f32.gmra.mxu0 %v2410
  %v3029 = vpop.f32.mrf.mxu0
  %v3030 = vadd.f32 %v2925, %v3029
  %v3031 = vpop.f32.mrf.mxu0
  %3032 = vmatprep.mubr.f32.mxu0 %v2420
  %3033 = vmatmul.mubr.f32.gmra.mxu0 %v2419
  %v3034 = vpop.f32.mrf.mxu0
  %v3035 = vadd.f32 %v2930, %v3034
  %v3036 = vpop.f32.mrf.mxu0
  %3037 = vmatprep.mubr.f32.mxu0 %v2429
  %3038 = vmatmul.mubr.f32.gmra.mxu0 %v2428
  %v3039 = vpop.f32.mrf.mxu0
  %v3040 = vadd.f32 %v2935, %v3039
  %v3041 = vpop.f32.mrf.mxu0
  %3042 = vdwg.mxu0
  %3043 = vmatprep.subr.mxu0 0.0
  %3044 = vmatpush1.msra.mxu0 %v2574
  %3045 = vmatprep.subr.mxu0 0.0
  %3046 = vmatpush1.msra.mxu0 %v2573
  %3047 = vmatprep.subr.mxu0 0.0
  %3048 = vmatpush1.msra.mxu0 %v2572
  %3049 = vmatprep.subr.mxu0 0.0
  %3050 = vmatpush1.msra.mxu0 %v2571
  %3051 = vmatprep.subr.mxu0 0.0
  %3052 = vmatpush1.msra.mxu0 %v2570
  %3053 = vmatprep.subr.mxu0 0.0
  %3054 = vmatpush1.msra.mxu0 %v2569
  %3055 = vmatprep.subr.mxu0 0.0
  %3056 = vmatpush1.msra.mxu0 %v2568
  %3057 = vmatprep.subr.mxu0 0.0
  %3058 = vmatpush1.msra.mxu0 %v2567
  %3059 = vmatprep.subr.mxu0 0.0
  %3060 = vmatpush1.msra.mxu0 %v2566
  %3061 = vmatprep.subr.mxu0 0.0
  %3062 = vmatpush1.msra.mxu0 %v2565
  %3063 = vmatprep.subr.mxu0 0.0
  %3064 = vmatpush1.msra.mxu0 %v2564
  %3065 = vmatprep.subr.mxu0 0.0
  %3066 = vmatpush1.msra.mxu0 %v2563
  %3067 = vmatprep.subr.mxu0 0.0
  %3068 = vmatpush1.msra.mxu0 %v2562
  %3069 = vmatprep.subr.mxu0 0.0
  %3070 = vmatpush1.msra.mxu0 %v2561
  %3071 = vmatprep.subr.mxu0 0.0
  %3072 = vmatpush1.msra.mxu0 %v2560
  %3073 = vmatprep.subr.mxu0 0.0
  %3074 = vmatpush1.msra.mxu0 %v2559
  %3075 = vmatprep.subr.mxu0 0.0
  %3076 = vmatpush2.msra.mxu0 0.0
  %3077 = vmatprep.subr.mxu0 0.0
  %3078 = vmatpush2.msra.mxu0 0.0
  %3079 = vmatprep.subr.mxu0 0.0
  %3080 = vmatpush2.msra.mxu0 0.0
  %3081 = vmatprep.subr.mxu0 0.0
  %3082 = vmatpush2.msra.mxu0 0.0
  %3083 = vmatprep.subr.mxu0 0.0
  %3084 = vmatpush2.msra.mxu0 0.0
  %3085 = vmatprep.subr.mxu0 0.0
  %3086 = vmatpush2.msra.mxu0 0.0
  %3087 = vmatprep.subr.mxu0 0.0
  %3088 = vmatpush2.msra.mxu0 0.0
  %3089 = vmatprep.subr.mxu0 0.0
  %3090 = vmatpush2.msra.mxu0 0.0
  %3091 = vmatprep.subr.mxu0 0.0
  %3092 = vmatpush2.msra.mxu0 0.0
  %3093 = vmatprep.subr.mxu0 0.0
  %3094 = vmatpush2.msra.mxu0 0.0
  %3095 = vmatprep.subr.mxu0 0.0
  %3096 = vmatpush2.msra.mxu0 0.0
  %3097 = vmatprep.subr.mxu0 0.0
  %3098 = vmatpush2.msra.mxu0 0.0
  %3099 = vmatprep.subr.mxu0 0.0
  %3100 = vmatpush2.msra.mxu0 0.0
  %3101 = vmatprep.subr.mxu0 0.0
  %3102 = vmatpush2.msra.mxu0 0.0
  %3103 = vmatprep.subr.mxu0 0.0
  %3104 = vmatpush2.msra.mxu0 0.0
  %3105 = vmatprep.subr.mxu0 0.0
  %3106 = vmatpush2.msra.mxu0 0.0
  %3107 = vmatprep.mubr.f32.mxu0 0.0
  %3108 = vmatmul.mubr.f32.gmra.mxu0 %v2367
  %v3109 = vpop.f32.mrf.mxu0
  %v3110 = vadd.f32 %v3005, %v3109
  %v3111 = vpop.f32.mrf.mxu0
  %3112 = vmatprep.mubr.f32.mxu0 0.0
  %3113 = vmatmul.mubr.f32.gmra.mxu0 %v2376
  %v3114 = vpop.f32.mrf.mxu0
  %v3115 = vadd.f32 %v3010, %v3114
  %v3116 = vpop.f32.mrf.mxu0
  %3117 = vmatprep.mubr.f32.mxu0 0.0
  %3118 = vmatmul.mubr.f32.gmra.mxu0 %v2385
  %v3119 = vpop.f32.mrf.mxu0
  %v3120 = vadd.f32 %v3015, %v3119
  %v3121 = vpop.f32.mrf.mxu0
  %3122 = vmatprep.mubr.f32.mxu0 0.0
  %3123 = vmatmul.mubr.f32.gmra.mxu0 %v2394
  %v3124 = vpop.f32.mrf.mxu0
  %v3125 = vadd.f32 %v3020, %v3124
  %v3126 = vpop.f32.mrf.mxu0
  %3127 = vmatprep.mubr.f32.mxu0 0.0
  %3128 = vmatmul.mubr.f32.gmra.mxu0 %v2403
  %v3129 = vpop.f32.mrf.mxu0
  %v3130 = vadd.f32 %v3025, %v3129
  %v3131 = vpop.f32.mrf.mxu0
  %3132 = vmatprep.mubr.f32.mxu0 0.0
  %3133 = vmatmul.mubr.f32.gmra.mxu0 %v2412
  %v3134 = vpop.f32.mrf.mxu0
  %v3135 = vadd.f32 %v3030, %v3134
  %v3136 = vpop.f32.mrf.mxu0
  %3137 = vmatprep.mubr.f32.mxu0 0.0
  %3138 = vmatmul.mubr.f32.gmra.mxu0 %v2421
  %v3139 = vpop.f32.mrf.mxu0
  %v3140 = vadd.f32 %v3035, %v3139
  %v3141 = vpop.f32.mrf.mxu0
  %3142 = vmatprep.mubr.f32.mxu0 0.0
  %3143 = vmatmul.mubr.f32.gmra.mxu0 %v2430
  %v3144 = vpop.f32.mrf.mxu0
  %v3145 = vadd.f32 %v3040, %v3144
  %v3146 = vpop.f32.mrf.mxu0
  %3147 = vdwg.mxu0
  %v3148 = vmax.f32 %v3110, 0.0
  %v3149 = vmax.f32 %v3115, 0.0
  %v3150 = vmax.f32 %v3120, 0.0
  %v3151 = vmax.f32 %v3125, 0.0
  %v3152 = vmax.f32 %v3130, 0.0
  %v3153 = vmax.f32 %v3135, 0.0
  %v3154 = vmax.f32 %v3140, 0.0
  %v3155 = vmax.f32 %v3145, 0.0
  %3156 = vrot.lane.b32.xlu0 %v3148, 9
  %v3157 = vpop.permute.xlu0 %3156
  %3158 = vrot.lane.b32.xlu0 %v3149, 9
  %v3159 = vpop.permute.xlu0 %3158
  %3160 = vrot.lane.b32.xlu0 %v3150, 9
  %v3161 = vpop.permute.xlu0 %3160
  %3162 = vrot.lane.b32.xlu0 %v3151, 9
  %v3163 = vpop.permute.xlu0 %3162
  %3164 = vrot.lane.b32.xlu0 %v3152, 9
  %v3165 = vpop.permute.xlu0 %3164
  %3166 = vrot.lane.b32.xlu0 %v3153, 9
  %v3167 = vpop.permute.xlu0 %3166
  %3168 = vrot.lane.b32.xlu0 %v3154, 9
  %v3169 = vpop.permute.xlu0 %3168
  %3170 = vrot.lane.b32.xlu0 %v3155, 9
  %v3171 = vpop.permute.xlu0 %3170
  %v3172 = vld [vmem:[%s1] sm:$0x1]
  %v3173 = vlaneseq
  %v3174 = vshrl.u32 %v3173, 7
  %v3175 = vsub.s32 0, %v3174
  %v3176 = vrot.slane %v3172, %v3175
  %v3177 = vmul.f32 %v3157, %v3176
  %v3178 = vmul.f32 %v3159, %v3176
  %v3179 = vmul.f32 %v3161, %v3176
  %v3180 = vmul.f32 %v3163, %v3176
  %v3181 = vmul.f32 %v3165, %v3176
  %v3182 = vmul.f32 %v3167, %v3176
  %v3183 = vmul.f32 %v3169, %v3176
  %v3184 = vmul.f32 %v3171, %v3176
  %3185 = vst [vmem:[#allocation3] sm:$0xff] %v3177
  %3186 = vst [vmem:[#allocation3 + $0x8] sm:$0xff] %v3178
  %3187 = vst [vmem:[#allocation3 + $0x10] sm:$0xff] %v3179
  %3188 = vst [vmem:[#allocation3 + $0x18] sm:$0xff] %v3180
  %3189 = vst [vmem:[#allocation3 + $0x20] sm:$0xff] %v3181
  %3190 = vst [vmem:[#allocation3 + $0x28] sm:$0xff] %v3182
  %3191 = vst [vmem:[#allocation3 + $0x30] sm:$0xff] %v3183
  %3192 = vst [vmem:[#allocation3 + $0x38] sm:$0xff] %v3184
  %3193 = vrot.lane.b32.xlu0 %v3148, 8
  %v3194 = vpop.permute.xlu0 %3193
  %3195 = vrot.lane.b32.xlu0 %v3149, 8
  %v3196 = vpop.permute.xlu0 %3195
  %3197 = vrot.lane.b32.xlu0 %v3150, 8
  %v3198 = vpop.permute.xlu0 %3197
  %3199 = vrot.lane.b32.xlu0 %v3151, 8
  %v3200 = vpop.permute.xlu0 %3199
  %3201 = vrot.lane.b32.xlu0 %v3152, 8
  %v3202 = vpop.permute.xlu0 %3201
  %3203 = vrot.lane.b32.xlu0 %v3153, 8
  %v3204 = vpop.permute.xlu0 %3203
  %3205 = vrot.lane.b32.xlu0 %v3154, 8
  %v3206 = vpop.permute.xlu0 %3205
  %3207 = vrot.lane.b32.xlu0 %v3155, 8
  %v3208 = vpop.permute.xlu0 %3207
  %v3209 = vld [vmem:[%s1 + $0x1] sm:$0x1]
  %v3210 = vlaneseq
  %v3211 = vshrl.u32 %v3210, 7
  %v3212 = vsub.s32 0, %v3211
  %v3213 = vrot.slane %v3209, %v3212
  %v3214 = vmul.f32 %v3194, %v3213
  %v3215 = vmul.f32 %v3196, %v3213
  %v3216 = vmul.f32 %v3198, %v3213
  %v3217 = vmul.f32 %v3200, %v3213
  %v3218 = vmul.f32 %v3202, %v3213
  %v3219 = vmul.f32 %v3204, %v3213
  %v3220 = vmul.f32 %v3206, %v3213
  %v3221 = vmul.f32 %v3208, %v3213
  %3222 = vst [vmem:[#allocation3 + $0x40] sm:$0xff] %v3214
  %3223 = vst [vmem:[#allocation3 + $0x48] sm:$0xff] %v3215
  %3224 = vst [vmem:[#allocation3 + $0x50] sm:$0xff] %v3216
  %3225 = vst [vmem:[#allocation3 + $0x58] sm:$0xff] %v3217
  %3226 = vst [vmem:[#allocation3 + $0x60] sm:$0xff] %v3218
  %3227 = vst [vmem:[#allocation3 + $0x68] sm:$0xff] %v3219
  %3228 = vst [vmem:[#allocation3 + $0x70] sm:$0xff] %v3220
  %3229 = vst [vmem:[#allocation3 + $0x78] sm:$0xff] %v3221
  %3230 = vrot.lane.b32.xlu0 %v3148, 7
  %v3231 = vpop.permute.xlu0 %3230
  %3232 = vrot.lane.b32.xlu0 %v3149, 7
  %v3233 = vpop.permute.xlu0 %3232
  %3234 = vrot.lane.b32.xlu0 %v3150, 7
  %v3235 = vpop.permute.xlu0 %3234
  %3236 = vrot.lane.b32.xlu0 %v3151, 7
  %v3237 = vpop.permute.xlu0 %3236
  %3238 = vrot.lane.b32.xlu0 %v3152, 7
  %v3239 = vpop.permute.xlu0 %3238
  %3240 = vrot.lane.b32.xlu0 %v3153, 7
  %v3241 = vpop.permute.xlu0 %3240
  %3242 = vrot.lane.b32.xlu0 %v3154, 7
  %v3243 = vpop.permute.xlu0 %3242
  %3244 = vrot.lane.b32.xlu0 %v3155, 7
  %v3245 = vpop.permute.xlu0 %3244
  %v3246 = vld [vmem:[%s1 + $0x2] sm:$0x1]
  %v3247 = vlaneseq
  %v3248 = vshrl.u32 %v3247, 7
  %v3249 = vsub.s32 0, %v3248
  %v3250 = vrot.slane %v3246, %v3249
  %v3251 = vmul.f32 %v3231, %v3250
  %v3252 = vmul.f32 %v3233, %v3250
  %v3253 = vmul.f32 %v3235, %v3250
  %v3254 = vmul.f32 %v3237, %v3250
  %v3255 = vmul.f32 %v3239, %v3250
  %v3256 = vmul.f32 %v3241, %v3250
  %v3257 = vmul.f32 %v3243, %v3250
  %v3258 = vmul.f32 %v3245, %v3250
  %3259 = vst [vmem:[#allocation3 + $0x80] sm:$0xff] %v3251
  %3260 = vst [vmem:[#allocation3 + $0x88] sm:$0xff] %v3252
  %3261 = vst [vmem:[#allocation3 + $0x90] sm:$0xff] %v3253
  %3262 = vst [vmem:[#allocation3 + $0x98] sm:$0xff] %v3254
  %3263 = vst [vmem:[#allocation3 + $0xa0] sm:$0xff] %v3255
  %3264 = vst [vmem:[#allocation3 + $0xa8] sm:$0xff] %v3256
  %3265 = vst [vmem:[#allocation3 + $0xb0] sm:$0xff] %v3257
  %3266 = vst [vmem:[#allocation3 + $0xb8] sm:$0xff] %v3258
  %3267 = vrot.lane.b32.xlu0 %v3148, 1
  %v3268 = vpop.permute.xlu0 %3267
  %3269 = vrot.lane.b32.xlu0 %v3149, 1
  %v3270 = vpop.permute.xlu0 %3269
  %3271 = vrot.lane.b32.xlu0 %v3150, 1
  %v3272 = vpop.permute.xlu0 %3271
  %3273 = vrot.lane.b32.xlu0 %v3151, 1
  %v3274 = vpop.permute.xlu0 %3273
  %3275 = vrot.lane.b32.xlu0 %v3152, 1
  %v3276 = vpop.permute.xlu0 %3275
  %3277 = vrot.lane.b32.xlu0 %v3153, 1
  %v3278 = vpop.permute.xlu0 %3277
  %3279 = vrot.lane.b32.xlu0 %v3154, 1
  %v3280 = vpop.permute.xlu0 %3279
  %3281 = vrot.lane.b32.xlu0 %v3155, 1
  %v3282 = vpop.permute.xlu0 %3281
  %v3283 = vld [vmem:[%s1 + $0x3] sm:$0x1]
  %v3284 = vlaneseq
  %v3285 = vshrl.u32 %v3284, 7
  %v3286 = vsub.s32 0, %v3285
  %v3287 = vrot.slane %v3283, %v3286
  %v3288 = vmul.f32 %v3268, %v3287
  %v3289 = vmul.f32 %v3270, %v3287
  %v3290 = vmul.f32 %v3272, %v3287
  %v3291 = vmul.f32 %v3274, %v3287
  %v3292 = vmul.f32 %v3276, %v3287
  %v3293 = vmul.f32 %v3278, %v3287
  %v3294 = vmul.f32 %v3280, %v3287
  %v3295 = vmul.f32 %v3282, %v3287
  %3296 = vst [vmem:[#allocation3 + $0xc0] sm:$0xff] %v3288
  %3297 = vst [vmem:[#allocation3 + $0xc8] sm:$0xff] %v3289
  %3298 = vst [vmem:[#allocation3 + $0xd0] sm:$0xff] %v3290
  %3299 = vst [vmem:[#allocation3 + $0xd8] sm:$0xff] %v3291
  %3300 = vst [vmem:[#allocation3 + $0xe0] sm:$0xff] %v3292
  %3301 = vst [vmem:[#allocation3 + $0xe8] sm:$0xff] %v3293
  %3302 = vst [vmem:[#allocation3 + $0xf0] sm:$0xff] %v3294
  %3303 = vst [vmem:[#allocation3 + $0xf8] sm:$0xff] %v3295
  %3304 = vst [vmem:[#allocation3 + $0x100] sm:$0xff] %v3148
  %3305 = vst [vmem:[#allocation3 + $0x108] sm:$0xff] %v3149
  %3306 = vst [vmem:[#allocation3 + $0x110] sm:$0xff] %v3150
  %3307 = vst [vmem:[#allocation3 + $0x118] sm:$0xff] %v3151
  %3308 = vst [vmem:[#allocation3 + $0x120] sm:$0xff] %v3152
  %3309 = vst [vmem:[#allocation3 + $0x128] sm:$0xff] %v3153
  %3310 = vst [vmem:[#allocation3 + $0x130] sm:$0xff] %v3154
  %3311 = vst [vmem:[#allocation3 + $0x138] sm:$0xff] %v3155
  %3312 = vrot.lane.b32.xlu0 %v3148, 127
  %v3313 = vpop.permute.xlu0 %3312
  %3314 = vrot.lane.b32.xlu0 %v3149, 127
  %v3315 = vpop.permute.xlu0 %3314
  %3316 = vrot.lane.b32.xlu0 %v3150, 127
  %v3317 = vpop.permute.xlu0 %3316
  %3318 = vrot.lane.b32.xlu0 %v3151, 127
  %v3319 = vpop.permute.xlu0 %3318
  %3320 = vrot.lane.b32.xlu0 %v3152, 127
  %v3321 = vpop.permute.xlu0 %3320
  %3322 = vrot.lane.b32.xlu0 %v3153, 127
  %v3323 = vpop.permute.xlu0 %3322
  %3324 = vrot.lane.b32.xlu0 %v3154, 127
  %v3325 = vpop.permute.xlu0 %3324
  %3326 = vrot.lane.b32.xlu0 %v3155, 127
  %v3327 = vpop.permute.xlu0 %3326
  %v3328 = vld [vmem:[%s1 + $0x5] sm:$0x1]
  %v3329 = vlaneseq
  %v3330 = vshrl.u32 %v3329, 7
  %v3331 = vsub.s32 0, %v3330
  %v3332 = vrot.slane %v3328, %v3331
  %v3333 = vmul.f32 %v3313, %v3332
  %v3334 = vmul.f32 %v3315, %v3332
  %v3335 = vmul.f32 %v3317, %v3332
  %v3336 = vmul.f32 %v3319, %v3332
  %v3337 = vmul.f32 %v3321, %v3332
  %v3338 = vmul.f32 %v3323, %v3332
  %v3339 = vmul.f32 %v3325, %v3332
  %v3340 = vmul.f32 %v3327, %v3332
  %3341 = vst [vmem:[#allocation3 + $0x140] sm:$0xff] %v3333
  %3342 = vst [vmem:[#allocation3 + $0x148] sm:$0xff] %v3334
  %3343 = vst [vmem:[#allocation3 + $0x150] sm:$0xff] %v3335
  %3344 = vst [vmem:[#allocation3 + $0x158] sm:$0xff] %v3336
  %3345 = vst [vmem:[#allocation3 + $0x160] sm:$0xff] %v3337
  %3346 = vst [vmem:[#allocation3 + $0x168] sm:$0xff] %v3338
  %3347 = vst [vmem:[#allocation3 + $0x170] sm:$0xff] %v3339
  %3348 = vst [vmem:[#allocation3 + $0x178] sm:$0xff] %v3340
  %3349 = vrot.lane.b32.xlu0 %v3148, 121
  %v3350 = vpop.permute.xlu0 %3349
  %3351 = vrot.lane.b32.xlu0 %v3149, 121
  %v3352 = vpop.permute.xlu0 %3351
  %3353 = vrot.lane.b32.xlu0 %v3150, 121
  %v3354 = vpop.permute.xlu0 %3353
  %3355 = vrot.lane.b32.xlu0 %v3151, 121
  %v3356 = vpop.permute.xlu0 %3355
  %3357 = vrot.lane.b32.xlu0 %v3152, 121
  %v3358 = vpop.permute.xlu0 %3357
  %3359 = vrot.lane.b32.xlu0 %v3153, 121
  %v3360 = vpop.permute.xlu0 %3359
  %3361 = vrot.lane.b32.xlu0 %v3154, 121
  %v3362 = vpop.permute.xlu0 %3361
  %3363 = vrot.lane.b32.xlu0 %v3155, 121
  %v3364 = vpop.permute.xlu0 %3363
  %v3365 = vld [vmem:[%s1 + $0x6] sm:$0x1]
  %v3366 = vlaneseq
  %v3367 = vshrl.u32 %v3366, 7
  %v3368 = vsub.s32 0, %v3367
  %v3369 = vrot.slane %v3365, %v3368
  %v3370 = vmul.f32 %v3350, %v3369
  %v3371 = vmul.f32 %v3352, %v3369
  %v3372 = vmul.f32 %v3354, %v3369
  %v3373 = vmul.f32 %v3356, %v3369
  %v3374 = vmul.f32 %v3358, %v3369
  %v3375 = vmul.f32 %v3360, %v3369
  %v3376 = vmul.f32 %v3362, %v3369
  %v3377 = vmul.f32 %v3364, %v3369
  %3378 = vst [vmem:[#allocation3 + $0x180] sm:$0xff] %v3370
  %3379 = vst [vmem:[#allocation3 + $0x188] sm:$0xff] %v3371
  %3380 = vst [vmem:[#allocation3 + $0x190] sm:$0xff] %v3372
  %3381 = vst [vmem:[#allocation3 + $0x198] sm:$0xff] %v3373
  %3382 = vst [vmem:[#allocation3 + $0x1a0] sm:$0xff] %v3374
  %3383 = vst [vmem:[#allocation3 + $0x1a8] sm:$0xff] %v3375
  %3384 = vst [vmem:[#allocation3 + $0x1b0] sm:$0xff] %v3376
  %3385 = vst [vmem:[#allocation3 + $0x1b8] sm:$0xff] %v3377
  %3386 = vrot.lane.b32.xlu0 %v3148, 120
  %v3387 = vpop.permute.xlu0 %3386
  %3388 = vrot.lane.b32.xlu0 %v3149, 120
  %v3389 = vpop.permute.xlu0 %3388
  %3390 = vrot.lane.b32.xlu0 %v3150, 120
  %v3391 = vpop.permute.xlu0 %3390
  %3392 = vrot.lane.b32.xlu0 %v3151, 120
  %v3393 = vpop.permute.xlu0 %3392
  %3394 = vrot.lane.b32.xlu0 %v3152, 120
  %v3395 = vpop.permute.xlu0 %3394
  %3396 = vrot.lane.b32.xlu0 %v3153, 120
  %v3397 = vpop.permute.xlu0 %3396
  %3398 = vrot.lane.b32.xlu0 %v3154, 120
  %v3399 = vpop.permute.xlu0 %3398
  %3400 = vrot.lane.b32.xlu0 %v3155, 120
  %v3401 = vpop.permute.xlu0 %3400
  %v3402 = vld [vmem:[%s1 + $0x7] sm:$0x1]
  %v3403 = vlaneseq
  %v3404 = vshrl.u32 %v3403, 7
  %v3405 = vsub.s32 0, %v3404
  %v3406 = vrot.slane %v3402, %v3405
  %v3407 = vmul.f32 %v3387, %v3406
  %v3408 = vmul.f32 %v3389, %v3406
  %v3409 = vmul.f32 %v3391, %v3406
  %v3410 = vmul.f32 %v3393, %v3406
  %v3411 = vmul.f32 %v3395, %v3406
  %v3412 = vmul.f32 %v3397, %v3406
  %v3413 = vmul.f32 %v3399, %v3406
  %v3414 = vmul.f32 %v3401, %v3406
  %3415 = vst [vmem:[#allocation3 + $0x1c0] sm:$0xff] %v3407
  %3416 = vst [vmem:[#allocation3 + $0x1c8] sm:$0xff] %v3408
  %3417 = vst [vmem:[#allocation3 + $0x1d0] sm:$0xff] %v3409
  %3418 = vst [vmem:[#allocation3 + $0x1d8] sm:$0xff] %v3410
  %3419 = vst [vmem:[#allocation3 + $0x1e0] sm:$0xff] %v3411
  %3420 = vst [vmem:[#allocation3 + $0x1e8] sm:$0xff] %v3412
  %3421 = vst [vmem:[#allocation3 + $0x1f0] sm:$0xff] %v3413
  %3422 = vst [vmem:[#allocation3 + $0x1f8] sm:$0xff] %v3414
  %3423 = vrot.lane.b32.xlu0 %v3148, 119
  %v3424 = vpop.permute.xlu0 %3423
  %3425 = vrot.lane.b32.xlu0 %v3149, 119
  %v3426 = vpop.permute.xlu0 %3425
  %3427 = vrot.lane.b32.xlu0 %v3150, 119
  %v3428 = vpop.permute.xlu0 %3427
  %3429 = vrot.lane.b32.xlu0 %v3151, 119
  %v3430 = vpop.permute.xlu0 %3429
  %3431 = vrot.lane.b32.xlu0 %v3152, 119
  %v3432 = vpop.permute.xlu0 %3431
  %3433 = vrot.lane.b32.xlu0 %v3153, 119
  %v3434 = vpop.permute.xlu0 %3433
  %3435 = vrot.lane.b32.xlu0 %v3154, 119
  %v3436 = vpop.permute.xlu0 %3435
  %3437 = vrot.lane.b32.xlu0 %v3155, 119
  %v3438 = vpop.permute.xlu0 %3437
  %v3439 = vld [vmem:[%s1 + $0x8] sm:$0x1]
  %v3440 = vlaneseq
  %v3441 = vshrl.u32 %v3440, 7
  %v3442 = vsub.s32 0, %v3441
  %v3443 = vrot.slane %v3439, %v3442
  %v3444 = vmul.f32 %v3424, %v3443
  %v3445 = vmul.f32 %v3426, %v3443
  %v3446 = vmul.f32 %v3428, %v3443
  %v3447 = vmul.f32 %v3430, %v3443
  %v3448 = vmul.f32 %v3432, %v3443
  %v3449 = vmul.f32 %v3434, %v3443
  %v3450 = vmul.f32 %v3436, %v3443
  %v3451 = vmul.f32 %v3438, %v3443
  %3452 = vst [vmem:[#allocation3 + $0x200] sm:$0xff] %v3444
  %3453 = vst [vmem:[#allocation3 + $0x208] sm:$0xff] %v3445
  %3454 = vst [vmem:[#allocation3 + $0x210] sm:$0xff] %v3446
  %3455 = vst [vmem:[#allocation3 + $0x218] sm:$0xff] %v3447
  %3456 = vst [vmem:[#allocation3 + $0x220] sm:$0xff] %v3448
  %3457 = vst [vmem:[#allocation3 + $0x228] sm:$0xff] %v3449
  %3458 = vst [vmem:[#allocation3 + $0x230] sm:$0xff] %v3450
  %3459 = vst [vmem:[#allocation3 + $0x238] sm:$0xff] %v3451
  %v3460 = vld [vmem:[%s5] sm:$0xff]
  %v3461 = vld [vmem:[%s5 + $0x8] sm:$0xff]
  %v3462 = vld [vmem:[%s5 + $0x10] sm:$0xff]
  %v3463 = vld [vmem:[%s5 + $0x18] sm:$0xff]
  %v3464 = vld [vmem:[%s5 + $0x20] sm:$0xff]
  %v3465 = vld [vmem:[%s5 + $0x28] sm:$0xff]
  %v3466 = vld [vmem:[%s5 + $0x30] sm:$0xff]
  %v3467 = vld [vmem:[%s5 + $0x38] sm:$0xff]
  %v3468 = vld [vmem:[%s5 + $0x40] sm:$0xff]
  %v3469 = vld [vmem:[%s5 + $0x48] sm:$0xff]
  %v3470 = vld [vmem:[#allocation3] sm:$0xff]
  %v3471 = vld [vmem:[#allocation3 + $0x8] sm:$0xff]
  %v3472 = vld [vmem:[#allocation3 + $0x10] sm:$0xff]
  %v3473 = vld [vmem:[#allocation3 + $0x18] sm:$0xff]
  %v3474 = vld [vmem:[#allocation3 + $0x20] sm:$0xff]
  %v3475 = vld [vmem:[#allocation3 + $0x28] sm:$0xff]
  %v3476 = vld [vmem:[#allocation3 + $0x30] sm:$0xff]
  %v3477 = vld [vmem:[#allocation3 + $0x38] sm:$0xff]
  %v3478 = vld [vmem:[#allocation3 + $0x40] sm:$0xff]
  %v3479 = vld [vmem:[#allocation3 + $0x48] sm:$0xff]
  %v3480 = vld [vmem:[#allocation3 + $0x50] sm:$0xff]
  %v3481 = vld [vmem:[#allocation3 + $0x58] sm:$0xff]
  %v3482 = vld [vmem:[#allocation3 + $0x60] sm:$0xff]
  %v3483 = vld [vmem:[#allocation3 + $0x68] sm:$0xff]
  %v3484 = vld [vmem:[#allocation3 + $0x70] sm:$0xff]
  %v3485 = vld [vmem:[#allocation3 + $0x78] sm:$0xff]
  %v3486 = vld [vmem:[#allocation3 + $0x80] sm:$0xff]
  %v3487 = vld [vmem:[#allocation3 + $0x88] sm:$0xff]
  %v3488 = vld [vmem:[#allocation3 + $0x90] sm:$0xff]
  %v3489 = vld [vmem:[#allocation3 + $0x98] sm:$0xff]
  %v3490 = vld [vmem:[#allocation3 + $0xa0] sm:$0xff]
  %v3491 = vld [vmem:[#allocation3 + $0xa8] sm:$0xff]
  %v3492 = vld [vmem:[#allocation3 + $0xb0] sm:$0xff]
  %v3493 = vld [vmem:[#allocation3 + $0xb8] sm:$0xff]
  %v3494 = vld [vmem:[#allocation3 + $0xc0] sm:$0xff]
  %v3495 = vld [vmem:[#allocation3 + $0xc8] sm:$0xff]
  %v3496 = vld [vmem:[#allocation3 + $0xd0] sm:$0xff]
  %v3497 = vld [vmem:[#allocation3 + $0xd8] sm:$0xff]
  %v3498 = vld [vmem:[#allocation3 + $0xe0] sm:$0xff]
  %v3499 = vld [vmem:[#allocation3 + $0xe8] sm:$0xff]
  %v3500 = vld [vmem:[#allocation3 + $0xf0] sm:$0xff]
  %v3501 = vld [vmem:[#allocation3 + $0xf8] sm:$0xff]
  %v3502 = vld [vmem:[#allocation3 + $0x100] sm:$0xff]
  %v3503 = vld [vmem:[#allocation3 + $0x108] sm:$0xff]
  %v3504 = vld [vmem:[#allocation3 + $0x110] sm:$0xff]
  %v3505 = vld [vmem:[#allocation3 + $0x118] sm:$0xff]
  %v3506 = vld [vmem:[#allocation3 + $0x120] sm:$0xff]
  %v3507 = vld [vmem:[#allocation3 + $0x128] sm:$0xff]
  %v3508 = vld [vmem:[#allocation3 + $0x130] sm:$0xff]
  %v3509 = vld [vmem:[#allocation3 + $0x138] sm:$0xff]
  %v3510 = vld [vmem:[#allocation3 + $0x140] sm:$0xff]
  %v3511 = vld [vmem:[#allocation3 + $0x148] sm:$0xff]
  %v3512 = vld [vmem:[#allocation3 + $0x150] sm:$0xff]
  %v3513 = vld [vmem:[#allocation3 + $0x158] sm:$0xff]
  %v3514 = vld [vmem:[#allocation3 + $0x160] sm:$0xff]
  %v3515 = vld [vmem:[#allocation3 + $0x168] sm:$0xff]
  %v3516 = vld [vmem:[#allocation3 + $0x170] sm:$0xff]
  %v3517 = vld [vmem:[#allocation3 + $0x178] sm:$0xff]
  %v3518 = vld [vmem:[#allocation3 + $0x180] sm:$0xff]
  %v3519 = vld [vmem:[#allocation3 + $0x188] sm:$0xff]
  %v3520 = vld [vmem:[#allocation3 + $0x190] sm:$0xff]
  %v3521 = vld [vmem:[#allocation3 + $0x198] sm:$0xff]
  %v3522 = vld [vmem:[#allocation3 + $0x1a0] sm:$0xff]
  %v3523 = vld [vmem:[#allocation3 + $0x1a8] sm:$0xff]
  %v3524 = vld [vmem:[#allocation3 + $0x1b0] sm:$0xff]
  %v3525 = vld [vmem:[#allocation3 + $0x1b8] sm:$0xff]
  %v3526 = vld [vmem:[#allocation3 + $0x1c0] sm:$0xff]
  %v3527 = vld [vmem:[#allocation3 + $0x1c8] sm:$0xff]
  %v3528 = vld [vmem:[#allocation3 + $0x1d0] sm:$0xff]
  %v3529 = vld [vmem:[#allocation3 + $0x1d8] sm:$0xff]
  %v3530 = vld [vmem:[#allocation3 + $0x1e0] sm:$0xff]
  %v3531 = vld [vmem:[#allocation3 + $0x1e8] sm:$0xff]
  %v3532 = vld [vmem:[#allocation3 + $0x1f0] sm:$0xff]
  %v3533 = vld [vmem:[#allocation3 + $0x1f8] sm:$0xff]
  %v3534 = vld [vmem:[#allocation3 + $0x200] sm:$0xff]
  %v3535 = vld [vmem:[#allocation3 + $0x208] sm:$0xff]
  %v3536 = vld [vmem:[#allocation3 + $0x210] sm:$0xff]
  %v3537 = vld [vmem:[#allocation3 + $0x218] sm:$0xff]
  %v3538 = vld [vmem:[#allocation3 + $0x220] sm:$0xff]
  %v3539 = vld [vmem:[#allocation3 + $0x228] sm:$0xff]
  %v3540 = vld [vmem:[#allocation3 + $0x230] sm:$0xff]
  %v3541 = vld [vmem:[#allocation3 + $0x238] sm:$0xff]
  %v3542 = vld [vmem:[%s6 + $0xc0] sm:$0xff]
  %v3543 = vld [vmem:[%s6 + $0xc8] sm:$0xff]
  %3545 = vset.pattern.permute.xlu0 0
  %3546 = vperm.xlu0 %3545, %v3542
  %v3547 = vpop.permute.xlu0 %3546
  %3550 = vset.pattern.permute.xlu0 0
  %3551 = vperm.xlu0 %3550, %v3543
  %v3552 = vpop.permute.xlu0 %3551
  %v3555 = vsel %vm1291, %v3464, 0
  %v3558 = vsel %vm1291, %v3469, 0
  %3560 = vmatprep.subr.mxu0 0.0
  %3561 = vmatpush1.msra.mxu0 %v3485
  %3562 = vmatprep.subr.mxu0 0.0
  %3563 = vmatpush1.msra.mxu0 %v3484
  %3564 = vmatprep.subr.mxu0 0.0
  %3565 = vmatpush1.msra.mxu0 %v3483
  %3566 = vmatprep.subr.mxu0 0.0
  %3567 = vmatpush1.msra.mxu0 %v3482
  %3568 = vmatprep.subr.mxu0 0.0
  %3569 = vmatpush1.msra.mxu0 %v3481
  %3570 = vmatprep.subr.mxu0 0.0
  %3571 = vmatpush1.msra.mxu0 %v3480
  %3572 = vmatprep.subr.mxu0 0.0
  %3573 = vmatpush1.msra.mxu0 %v3479
  %3574 = vmatprep.subr.mxu0 0.0
  %3575 = vmatpush1.msra.mxu0 %v3478
  %3576 = vmatprep.subr.mxu0 0.0
  %3577 = vmatpush1.msra.mxu0 %v3477
  %3578 = vmatprep.subr.mxu0 0.0
  %3579 = vmatpush1.msra.mxu0 %v3476
  %3580 = vmatprep.subr.mxu0 0.0
  %3581 = vmatpush1.msra.mxu0 %v3475
  %3582 = vmatprep.subr.mxu0 0.0
  %3583 = vmatpush1.msra.mxu0 %v3474
  %3584 = vmatprep.subr.mxu0 0.0
  %3585 = vmatpush1.msra.mxu0 %v3473
  %3586 = vmatprep.subr.mxu0 0.0
  %3587 = vmatpush1.msra.mxu0 %v3472
  %3588 = vmatprep.subr.mxu0 0.0
  %3589 = vmatpush1.msra.mxu0 %v3471
  %3590 = vmatprep.subr.mxu0 0.0
  %3591 = vmatpush1.msra.mxu0 %v3470
  %3592 = vmatprep.subr.mxu0 0.0
  %3593 = vmatpush2.msra.mxu0 %v3501
  %3594 = vmatprep.subr.mxu0 0.0
  %3595 = vmatpush2.msra.mxu0 %v3500
  %3596 = vmatprep.subr.mxu0 0.0
  %3597 = vmatpush2.msra.mxu0 %v3499
  %3598 = vmatprep.subr.mxu0 0.0
  %3599 = vmatpush2.msra.mxu0 %v3498
  %3600 = vmatprep.subr.mxu0 0.0
  %3601 = vmatpush2.msra.mxu0 %v3497
  %3602 = vmatprep.subr.mxu0 0.0
  %3603 = vmatpush2.msra.mxu0 %v3496
  %3604 = vmatprep.subr.mxu0 0.0
  %3605 = vmatpush2.msra.mxu0 %v3495
  %3606 = vmatprep.subr.mxu0 0.0
  %3607 = vmatpush2.msra.mxu0 %v3494
  %3608 = vmatprep.subr.mxu0 0.0
  %3609 = vmatpush2.msra.mxu0 %v3493
  %3610 = vmatprep.subr.mxu0 0.0
  %3611 = vmatpush2.msra.mxu0 %v3492
  %3612 = vmatprep.subr.mxu0 0.0
  %3613 = vmatpush2.msra.mxu0 %v3491
  %3614 = vmatprep.subr.mxu0 0.0
  %3615 = vmatpush2.msra.mxu0 %v3490
  %3616 = vmatprep.subr.mxu0 0.0
  %3617 = vmatpush2.msra.mxu0 %v3489
  %3618 = vmatprep.subr.mxu0 0.0
  %3619 = vmatpush2.msra.mxu0 %v3488
  %3620 = vmatprep.subr.mxu0 0.0
  %3621 = vmatpush2.msra.mxu0 %v3487
  %3622 = vmatprep.subr.mxu0 0.0
  %3623 = vmatpush2.msra.mxu0 %v3486
  %3624 = vmatprep.mubr.f32.mxu0 %v3461
  %3625 = vmatmul.mubr.f32.gmra.mxu0 %v3460
  %v3626 = vpop.f32.mrf.mxu0
  %v3627 = vadd.f32 %v3547, %v3626
  %v3628 = vpop.f32.mrf.mxu0
  %3629 = vmatprep.mubr.f32.mxu0 %v3466
  %3630 = vmatmul.mubr.f32.gmra.mxu0 %v3465
  %v3631 = vpop.f32.mrf.mxu0
  %v3632 = vadd.f32 %v3552, %v3631
  %v3633 = vpop.f32.mrf.mxu0
  %3634 = vdwg.mxu0
  %3635 = vmatprep.subr.mxu0 0.0
  %3636 = vmatpush1.msra.mxu0 %v3517
  %3637 = vmatprep.subr.mxu0 0.0
  %3638 = vmatpush1.msra.mxu0 %v3516
  %3639 = vmatprep.subr.mxu0 0.0
  %3640 = vmatpush1.msra.mxu0 %v3515
  %3641 = vmatprep.subr.mxu0 0.0
  %3642 = vmatpush1.msra.mxu0 %v3514
  %3643 = vmatprep.subr.mxu0 0.0
  %3644 = vmatpush1.msra.mxu0 %v3513
  %3645 = vmatprep.subr.mxu0 0.0
  %3646 = vmatpush1.msra.mxu0 %v3512
  %3647 = vmatprep.subr.mxu0 0.0
  %3648 = vmatpush1.msra.mxu0 %v3511
  %3649 = vmatprep.subr.mxu0 0.0
  %3650 = vmatpush1.msra.mxu0 %v3510
  %3651 = vmatprep.subr.mxu0 0.0
  %3652 = vmatpush1.msra.mxu0 %v3509
  %3653 = vmatprep.subr.mxu0 0.0
  %3654 = vmatpush1.msra.mxu0 %v3508
  %3655 = vmatprep.subr.mxu0 0.0
  %3656 = vmatpush1.msra.mxu0 %v3507
  %3657 = vmatprep.subr.mxu0 0.0
  %3658 = vmatpush1.msra.mxu0 %v3506
  %3659 = vmatprep.subr.mxu0 0.0
  %3660 = vmatpush1.msra.mxu0 %v3505
  %3661 = vmatprep.subr.mxu0 0.0
  %3662 = vmatpush1.msra.mxu0 %v3504
  %3663 = vmatprep.subr.mxu0 0.0
  %3664 = vmatpush1.msra.mxu0 %v3503
  %3665 = vmatprep.subr.mxu0 0.0
  %3666 = vmatpush1.msra.mxu0 %v3502
  %3667 = vmatprep.subr.mxu0 0.0
  %3668 = vmatpush2.msra.mxu0 %v3533
  %3669 = vmatprep.subr.mxu0 0.0
  %3670 = vmatpush2.msra.mxu0 %v3532
  %3671 = vmatprep.subr.mxu0 0.0
  %3672 = vmatpush2.msra.mxu0 %v3531
  %3673 = vmatprep.subr.mxu0 0.0
  %3674 = vmatpush2.msra.mxu0 %v3530
  %3675 = vmatprep.subr.mxu0 0.0
  %3676 = vmatpush2.msra.mxu0 %v3529
  %3677 = vmatprep.subr.mxu0 0.0
  %3678 = vmatpush2.msra.mxu0 %v3528
  %3679 = vmatprep.subr.mxu0 0.0
  %3680 = vmatpush2.msra.mxu0 %v3527
  %3681 = vmatprep.subr.mxu0 0.0
  %3682 = vmatpush2.msra.mxu0 %v3526
  %3683 = vmatprep.subr.mxu0 0.0
  %3684 = vmatpush2.msra.mxu0 %v3525
  %3685 = vmatprep.subr.mxu0 0.0
  %3686 = vmatpush2.msra.mxu0 %v3524
  %3687 = vmatprep.subr.mxu0 0.0
  %3688 = vmatpush2.msra.mxu0 %v3523
  %3689 = vmatprep.subr.mxu0 0.0
  %3690 = vmatpush2.msra.mxu0 %v3522
  %3691 = vmatprep.subr.mxu0 0.0
  %3692 = vmatpush2.msra.mxu0 %v3521
  %3693 = vmatprep.subr.mxu0 0.0
  %3694 = vmatpush2.msra.mxu0 %v3520
  %3695 = vmatprep.subr.mxu0 0.0
  %3696 = vmatpush2.msra.mxu0 %v3519
  %3697 = vmatprep.subr.mxu0 0.0
  %3698 = vmatpush2.msra.mxu0 %v3518
  %3699 = vmatprep.mubr.f32.mxu0 %v3463
  %3700 = vmatmul.mubr.f32.gmra.mxu0 %v3462
  %v3701 = vpop.f32.mrf.mxu0
  %v3702 = vadd.f32 %v3627, %v3701
  %v3703 = vpop.f32.mrf.mxu0
  %3704 = vmatprep.mubr.f32.mxu0 %v3468
  %3705 = vmatmul.mubr.f32.gmra.mxu0 %v3467
  %v3706 = vpop.f32.mrf.mxu0
  %v3707 = vadd.f32 %v3632, %v3706
  %v3708 = vpop.f32.mrf.mxu0
  %3709 = vdwg.mxu0
  %3710 = vmatprep.subr.mxu0 0.0
  %3711 = vmatpush1.msra.mxu0 0.0
  %3712 = vmatprep.subr.mxu0 0.0
  %3713 = vmatpush1.msra.mxu0 0.0
  %3714 = vmatprep.subr.mxu0 0.0
  %3715 = vmatpush1.msra.mxu0 0.0
  %3716 = vmatprep.subr.mxu0 0.0
  %3717 = vmatpush1.msra.mxu0 0.0
  %3718 = vmatprep.subr.mxu0 0.0
  %3719 = vmatpush1.msra.mxu0 0.0
  %3720 = vmatprep.subr.mxu0 0.0
  %3721 = vmatpush1.msra.mxu0 0.0
  %3722 = vmatprep.subr.mxu0 0.0
  %3723 = vmatpush1.msra.mxu0 0.0
  %3724 = vmatprep.subr.mxu0 0.0
  %3725 = vmatpush1.msra.mxu0 0.0
  %3726 = vmatprep.subr.mxu0 0.0
  %3727 = vmatpush1.msra.mxu0 %v3541
  %3728 = vmatprep.subr.mxu0 0.0
  %3729 = vmatpush1.msra.mxu0 %v3540
  %3730 = vmatprep.subr.mxu0 0.0
  %3731 = vmatpush1.msra.mxu0 %v3539
  %3732 = vmatprep.subr.mxu0 0.0
  %3733 = vmatpush1.msra.mxu0 %v3538
  %3734 = vmatprep.subr.mxu0 0.0
  %3735 = vmatpush1.msra.mxu0 %v3537
  %3736 = vmatprep.subr.mxu0 0.0
  %3737 = vmatpush1.msra.mxu0 %v3536
  %3738 = vmatprep.subr.mxu0 0.0
  %3739 = vmatpush1.msra.mxu0 %v3535
  %3740 = vmatprep.subr.mxu0 0.0
  %3741 = vmatpush1.msra.mxu0 %v3534
  %3742 = vmatprep.subr.mxu0 0.0
  %3743 = vmatpush2.msra.mxu0 0.0
  %3744 = vmatprep.subr.mxu0 0.0
  %3745 = vmatpush2.msra.mxu0 0.0
  %3746 = vmatprep.subr.mxu0 0.0
  %3747 = vmatpush2.msra.mxu0 0.0
  %3748 = vmatprep.subr.mxu0 0.0
  %3749 = vmatpush2.msra.mxu0 0.0
  %3750 = vmatprep.subr.mxu0 0.0
  %3751 = vmatpush2.msra.mxu0 0.0
  %3752 = vmatprep.subr.mxu0 0.0
  %3753 = vmatpush2.msra.mxu0 0.0
  %3754 = vmatprep.subr.mxu0 0.0
  %3755 = vmatpush2.msra.mxu0 0.0
  %3756 = vmatprep.subr.mxu0 0.0
  %3757 = vmatpush2.msra.mxu0 0.0
  %3758 = vmatprep.subr.mxu0 0.0
  %3759 = vmatpush2.msra.mxu0 0.0
  %3760 = vmatprep.subr.mxu0 0.0
  %3761 = vmatpush2.msra.mxu0 0.0
  %3762 = vmatprep.subr.mxu0 0.0
  %3763 = vmatpush2.msra.mxu0 0.0
  %3764 = vmatprep.subr.mxu0 0.0
  %3765 = vmatpush2.msra.mxu0 0.0
  %3766 = vmatprep.subr.mxu0 0.0
  %3767 = vmatpush2.msra.mxu0 0.0
  %3768 = vmatprep.subr.mxu0 0.0
  %3769 = vmatpush2.msra.mxu0 0.0
  %3770 = vmatprep.subr.mxu0 0.0
  %3771 = vmatpush2.msra.mxu0 0.0
  %3772 = vmatprep.subr.mxu0 0.0
  %3773 = vmatpush2.msra.mxu0 0.0
  %3774 = vmatprep.mubr.f32.mxu0 0.0
  %3775 = vmatmul.mubr.f32.gmra.mxu0 %v3555
  %v3776 = vpop.f32.mrf.mxu0
  %v3777 = vadd.f32 %v3702, %v3776
  %v3778 = vpop.f32.mrf.mxu0
  %3779 = vmatprep.mubr.f32.mxu0 0.0
  %3780 = vmatmul.mubr.f32.gmra.mxu0 %v3558
  %v3781 = vpop.f32.mrf.mxu0
  %v3782 = vadd.f32 %v3707, %v3781
  %v3783 = vpop.f32.mrf.mxu0
  %3784 = vdwg.mxu0
  %v3785 = vmax.f32 %v3777, 0.0
  %v3786 = vmax.f32 %v3782, 0.0
  %3787 = vst [vmem:[%s7] sm:$0xff] %v3785
  %3788 = vst [vmem:[%s7 + $0x8] sm:$0xff] %v3786
  // Predicated region
  $region30: #{core_net_embedding_forward.1} parent=0 // pred_check
    _
  $region31: #{core_net_embedding_forward.1} parent=0 // pred_check_branch
    %3790 = sbr.rel (0) target = $region33
  $region32: #{core_net_embedding_forward.1} parent=0 // pred_region
    _
  $region33: #{core_net_embedding_forward.1} parent=0 // pred_fallthru
    _
  // Predicated region
  $region34: #{core_net_embedding_forward.1} parent=0 // pred_check
    _
  $region35: #{core_net_embedding_forward.1} parent=0 // pred_check_branch
    %3792 = sbr.rel (0) target = $region37
  $region36: #{core_net_embedding_forward.1} parent=0 // pred_region
    _
  $region37: #{core_net_embedding_forward.1} parent=0 // pred_fallthru
    _

</llo_original>
